<compile_context>
chip_gen: v7x
topology: tpu7x:2x2x1
jax: 0.10.0
libtpu: 0.0.40
codegen_flags: <defaults>
</compile_context>

<pallas_src>
import functools

import jax
import jax.numpy as jnp
from jax.experimental import pallas as pl
from jax.experimental.pallas import tpu as pltpu

LANES = 128
VMEM_LIMIT = 48 * 1024 * 1024   # < 64 MiB physical on v7x; well under 128 MiB on v5e/v6e


def _pick_tile(total: int, target: int) -> int:
    """Largest divisor of `total` that is <= target (>= 1)."""
    t = max(1, min(total, target))
    while total % t:
        t -= 1
    return t


# ----------------------------------------------------------------------------------
# Kernel 1: conv as ONE fused GEMM per row tile + per-block partial BN statistics.
# Grid = (N, row_tiles), both "parallel".
#   x_ref : (1, Hp, Wp, Cin)  bf16, resident per batch element (index_map ignores i)
#   w_ref : (K*K*Cin, Cp)     bf16, resident (fetched once)
#   y_ref : (1, TH, W, Cp)    bf16 conv output tile (lane-dense store)
#   psum_ref / psq_ref : (1, 1, 1, Cp) f32 per-block partial sum / sum-of-squares
# ----------------------------------------------------------------------------------
def _conv_stats_kernel(x_ref, w_ref, y_ref, psum_ref, psq_ref, *, TH, W, K, Cin, Cp):
    i = pl.program_id(1)
    r0 = pl.multiple_of(i * TH, TH)

    # Single dynamic load of the halo'd row slab; every tap slice below is a static slice
    # of this VMEM value.
    xv = x_ref[0, pl.ds(r0, TH + K - 1)]                      # (TH+K-1, Wp, Cin) bf16

    # im2col in VMEM: concatenate the K*K shifted slices along the channel axis so the conv
    # becomes a single (TH*W, K*K*Cin) x (K*K*Cin, Cp) GEMM with f32 MXU accumulation.
    pieces = []
    for kh in range(K):
        for kw in range(K):
            pieces.append(xv[kh:kh + TH, kw:kw + W, :])       # (TH, W, Cin) bf16
    lhs = jnp.concatenate(pieces, axis=-1).reshape(TH * W, K * K * Cin)

    acc = jnp.dot(lhs, w_ref[...], preferred_element_type=jnp.float32)   # (TH*W, Cp) f32

    # HBM intermediate in bf16; BN statistics from the f32 accumulator (unchanged accuracy).
    y_ref[...] = acc.reshape(1, TH, W, Cp).astype(y_ref.dtype)
    psum_ref[...] = jnp.sum(acc, axis=0).reshape(1, 1, 1, Cp)
    psq_ref[...] = jnp.sum(acc * acc, axis=0).reshape(1, 1, 1, Cp)


# ----------------------------------------------------------------------------------
# Kernel 2: BatchNorm apply (precomputed per-channel scale/shift) + LeakyReLU + MaxPool.
# One contiguous lane-dense load; pool via reshape + axis-max (no strided/int ref indexing).
# ----------------------------------------------------------------------------------
def _bn_lrelu_pool_kernel(y_ref, scale_ref, shift_ref, o_ref, *, ns, pool, RHo, Wo, Cp):
    v = y_ref[...].astype(jnp.float32).reshape(RHo, pool, Wo, pool, Cp)
    a = v * scale_ref[...] + shift_ref[...]                   # BN affine (per-channel, lane bcast)
    a = jnp.where(a >= 0.0, a, ns * a)                        # LeakyReLU
    m = jnp.max(a, axis=(1, 3))                               # 2x2 (pool x pool) max
    o_ref[...] = m.reshape(1, RHo, Wo, Cp)                    # single lane-dense store


# ----------------------------------------------------------------------------------
# Wrapper: NCHW in / NCHW out (PyTorch convention). Internally NHWC with C padded to 128.
# ----------------------------------------------------------------------------------
def conv_block_forward(x_nchw, weight, bias, gamma, beta, *,
                       stride=1, padding=3, negative_slope=0.1, eps=1e-5,
                       pooling=True, pooling_size=2):
    # Conv bias cancels exactly under train-mode BatchNorm (mean removed, variance unchanged).
    del bias

    N, Cin, H, W = x_nchw.shape
    Cout, Cin2, K, K2 = weight.shape
    assert Cin2 == Cin and K2 == K
    assert stride == 1 and 2 * padding == K - 1, "kernel implements the default 'same' conv config"
    pool = pooling_size if pooling else 1
    assert H % pool == 0 and W % pool == 0

    Cp = ((Cout + LANES - 1) // LANES) * LANES               # lane-dense padded channel count
    Hp, Wp = H + 2 * padding, W + 2 * padding
    KKC = K * K * Cin

    # Row-tile sizing from a VMEM budget (target ~4K output pixels per tile) rather than 8 rows.
    TH = _pick_tile(H, max(8, 4096 // max(W, 1)))
    RT = H // TH

    # Plain-JAX glue (O(input)/O(weight) bytes): bf16 BEFORE the pad/transpose pre-pass.
    x_pad = jnp.pad(jnp.transpose(x_nchw, (0, 2, 3, 1)).astype(jnp.bfloat16),
                    ((0, 0), (padding, padding), (padding, padding), (0, 0)))     # (N,Hp,Wp,Cin)
    # Fused-GEMM RHS: (kh, kw, cin) ordering must match the in-kernel concatenation order.
    w2 = jnp.transpose(weight, (2, 3, 1, 0)).astype(jnp.float32).reshape(KKC, Cout)
    w2 = jnp.pad(w2, ((0, 0), (0, Cp - Cout))).astype(jnp.bfloat16)               # (KKC, Cp)

    # --- Pallas call 1: conv (one GEMM per tile) + per-block BN partial statistics ---
    kernel1 = functools.partial(_conv_stats_kernel, TH=TH, W=W, K=K, Cin=Cin, Cp=Cp)
    y, psum, psq = pl.pallas_call(
        kernel1,
        out_shape=(
            jax.ShapeDtypeStruct((N, H, W, Cp), jnp.bfloat16),
            jax.ShapeDtypeStruct((N, RT, 1, Cp), jnp.float32),
            jax.ShapeDtypeStruct((N, RT, 1, Cp), jnp.float32),
        ),
        grid_spec=pltpu.PrefetchScalarGridSpec(
            num_scalar_prefetch=0,
            grid=(N, RT),
            in_specs=[
                pl.BlockSpec((1, Hp, Wp, Cin), lambda n, i: (n, 0, 0, 0)),   # resident per n
                pl.BlockSpec((KKC, Cp), lambda n, i: (0, 0)),                # resident weights
            ],
            out_specs=(
                pl.BlockSpec((1, TH, W, Cp), lambda n, i: (n, i, 0, 0)),
                pl.BlockSpec((1, 1, 1, Cp), lambda n, i: (n, i, 0, 0)),
                pl.BlockSpec((1, 1, 1, Cp), lambda n, i: (n, i, 0, 0)),
            ),
        ),
        compiler_params=pltpu.CompilerParams(
            dimension_semantics=("parallel", "parallel"),
            vmem_limit_bytes=VMEM_LIMIT),
    )(x_pad, w2)

    # --- BN statistics -> per-channel scale/shift (tiny (Cp,) math in plain JAX) ---
    cnt = jnp.float32(N * H * W)
    ch_sum = jnp.sum(psum, axis=(0, 1, 2))
    ch_sq = jnp.sum(psq, axis=(0, 1, 2))
    mean = ch_sum / cnt
    var = jnp.maximum(ch_sq / cnt - mean * mean, 0.0)         # clamp guards E[x^2]-E[x]^2 cancellation
    gamma_p = jnp.pad(gamma.astype(jnp.float32), (0, Cp - Cout))
    beta_p = jnp.pad(beta.astype(jnp.float32), (0, Cp - Cout))
    scale = gamma_p * jax.lax.rsqrt(var + eps)
    shift = beta_p - mean * scale

    # --- Pallas call 2: BN apply + LeakyReLU + MaxPool (row-tiled) ---
    Ho, Wo = H // pool, W // pool
    RHo = _pick_tile(Ho, max(8, 4096 // max(Wo, 1)))

    kernel2 = functools.partial(_bn_lrelu_pool_kernel, ns=negative_slope, pool=pool,
                                RHo=RHo, Wo=Wo, Cp=Cp)
    out_nhwc = pl.pallas_call(
        kernel2,
        out_shape=jax.ShapeDtypeStruct((N, Ho, Wo, Cp), jnp.float32),
        grid_spec=pltpu.PrefetchScalarGridSpec(
            num_scalar_prefetch=0,
            grid=(N, Ho // RHo),
            in_specs=[
                pl.BlockSpec((1, RHo * pool, W, Cp), lambda n, j: (n, j, 0, 0)),
                pl.BlockSpec((1, Cp), lambda n, j: (0, 0)),
                pl.BlockSpec((1, Cp), lambda n, j: (0, 0)),
            ],
            out_specs=pl.BlockSpec((1, RHo, Wo, Cp), lambda n, j: (n, j, 0, 0)),
        ),
        compiler_params=pltpu.CompilerParams(
            dimension_semantics=("parallel", "parallel"),
            vmem_limit_bytes=VMEM_LIMIT),
    )(y, scale.reshape(1, Cp), shift.reshape(1, Cp))

    out_nhwc = out_nhwc[..., :Cout]                           # drop lane padding (tiny epilogue)
    return jnp.transpose(out_nhwc, (0, 3, 1, 2))              # back to NCHW


# ----------------------------------------------------------------------------------
# Pure-JAX reference (mirrors PyTorch ConvBlock.forward in training mode).
# ----------------------------------------------------------------------------------
def _reference(x, weight, bias, gamma, beta, *, padding=3, negative_slope=0.1,
               eps=1e-5, pool=2):
    y = jax.lax.conv_general_dilated(
        x, weight, window_strides=(1, 1),
        padding=((padding, padding), (padding, padding)),
        dimension_numbers=("NCHW", "OIHW", "NCHW"), precision=jax.lax.Precision.HIGHEST)
    y = y + bias.reshape(1, -1, 1, 1)
    mean = jnp.mean(y, axis=(0, 2, 3), keepdims=True)
    var = jnp.mean((y - mean) ** 2, axis=(0, 2, 3), keepdims=True)   # biased var (train-mode norm)
    y = (y - mean) / jnp.sqrt(var + eps) * gamma.reshape(1, -1, 1, 1) + beta.reshape(1, -1, 1, 1)
    y = jnp.where(y >= 0.0, y, negative_slope * y)
    y = jax.lax.reduce_window(y, -jnp.inf, jax.lax.max,
                              (1, 1, pool, pool), (1, 1, pool, pool), "VALID")
    return y


if __name__ == "__main__":
    key = jax.random.PRNGKey(0)
    N, Cin, H, W = 2, 4, 16, 16
    Cout, K, padding = 8, 7, 3

    k1, k2, k3 = jax.random.split(key, 3)
    x = jax.random.normal(k1, (N, Cin, H, W), jnp.float32)
    weight = jax.random.normal(k2, (Cout, Cin, K, K), jnp.float32) * 0.05
    bias = jax.random.normal(k3, (Cout,), jnp.float32) * 0.05
    gamma = jnp.ones((Cout,), jnp.float32)   # BatchNorm2d default init
    beta = jnp.zeros((Cout,), jnp.float32)

    out = conv_block_forward(x, weight, bias, gamma, beta,
                             padding=padding, negative_slope=0.1,
                             pooling=True, pooling_size=2)
    out = jax.block_until_ready(out)

    ref = _reference(x, weight, bias, gamma, beta, padding=padding,
                     negative_slope=0.1, pool=2)
    assert out.shape == (N, Cout, H // 2, W // 2), out.shape
    max_err = float(jnp.max(jnp.abs(out - ref)))
    # bf16 MXU operands + bf16 intermediate -> slightly looser tolerance than pure-f32.
    assert bool(jnp.allclose(out, ref, atol=3e-2, rtol=3e-2)), \
        f"mismatch vs reference (max abs err {max_err})"

    print("KERNEL_OK")
</pallas_src>

<mosaic_0001>
module attributes {stable_mosaic.version = 11 : i64} {
  func.func @_conv_stats_kernel(%arg0: i32, %arg1: i32, %arg2: memref<1x22x22x4xbf16, #tpu.memory_space<vmem>>, %arg3: memref<196x128xbf16, #tpu.memory_space<vmem>>, %arg4: memref<1x16x16x128xbf16, #tpu.memory_space<vmem>>, %arg5: memref<1x1x1x128xf32, #tpu.memory_space<vmem>>, %arg6: memref<1x1x1x128xf32, #tpu.memory_space<vmem>>) attributes {dimension_semantics = [#tpu.dimension_semantics<parallel>, #tpu.dimension_semantics<parallel>], iteration_bounds = array<i64: 2, 1>, scalar_prefetch = 0 : i64, scratch_operands = 0 : i64, tpu.core_type = #tpu.core_type<tc>, window_params = [{transform_indices = @transform_0, window_bounds = array<i64: 1, 22, 22, 4>}, {pipeline_mode = #tpu.pipeline_mode<synchronous>, transform_indices = @transform_1, window_bounds = array<i64: 196, 128>}, {transform_indices = @transform_2, window_bounds = array<i64: 1, 16, 16, 128>}, {transform_indices = @transform_3, window_bounds = array<i64: 1, 1, 1, 128>}, {transform_indices = @transform_4, window_bounds = array<i64: 1, 1, 1, 128>}]} {
    %c16_i32 = arith.constant 16 : i32
    %0 = arith.muli %arg1, %c16_i32 : i32
    %1 = tpu.assume_multiple %0, 16 : i32
    %c0 = arith.constant 0 : index
    %2 = arith.index_cast %1 : i32 to index
    %c0_0 = arith.constant 0 : index
    %c0_1 = arith.constant 0 : index
    %3 = vector.load %arg2[%c0, %2, %c0_0, %c0_1] : memref<1x22x22x4xbf16, #tpu.memory_space<vmem>>, vector<1x22x22x4xbf16>
    %4 = vector.shape_cast %3 : vector<1x22x22x4xbf16> to vector<22x22x4xbf16>
    %5 = vector.extract_strided_slice %4 {offsets = [0, 0, 0], sizes = [16, 16, 4], strides = [1, 1, 1]} : vector<22x22x4xbf16> to vector<16x16x4xbf16>
    %6 = vector.extract_strided_slice %4 {offsets = [0, 1, 0], sizes = [16, 16, 4], strides = [1, 1, 1]} : vector<22x22x4xbf16> to vector<16x16x4xbf16>
    %7 = vector.extract_strided_slice %4 {offsets = [0, 2, 0], sizes = [16, 16, 4], strides = [1, 1, 1]} : vector<22x22x4xbf16> to vector<16x16x4xbf16>
    %8 = vector.extract_strided_slice %4 {offsets = [0, 3, 0], sizes = [16, 16, 4], strides = [1, 1, 1]} : vector<22x22x4xbf16> to vector<16x16x4xbf16>
    %9 = vector.extract_strided_slice %4 {offsets = [0, 4, 0], sizes = [16, 16, 4], strides = [1, 1, 1]} : vector<22x22x4xbf16> to vector<16x16x4xbf16>
    %10 = vector.extract_strided_slice %4 {offsets = [0, 5, 0], sizes = [16, 16, 4], strides = [1, 1, 1]} : vector<22x22x4xbf16> to vector<16x16x4xbf16>
    %11 = vector.extract_strided_slice %4 {offsets = [0, 6, 0], sizes = [16, 16, 4], strides = [1, 1, 1]} : vector<22x22x4xbf16> to vector<16x16x4xbf16>
    %12 = vector.extract_strided_slice %4 {offsets = [1, 0, 0], sizes = [16, 16, 4], strides = [1, 1, 1]} : vector<22x22x4xbf16> to vector<16x16x4xbf16>
    %13 = vector.extract_strided_slice %4 {offsets = [1, 1, 0], sizes = [16, 16, 4], strides = [1, 1, 1]} : vector<22x22x4xbf16> to vector<16x16x4xbf16>
    %14 = vector.extract_strided_slice %4 {offsets = [1, 2, 0], sizes = [16, 16, 4], strides = [1, 1, 1]} : vector<22x22x4xbf16> to vector<16x16x4xbf16>
    %15 = vector.extract_strided_slice %4 {offsets = [1, 3, 0], sizes = [16, 16, 4], strides = [1, 1, 1]} : vector<22x22x4xbf16> to vector<16x16x4xbf16>
    %16 = vector.extract_strided_slice %4 {offsets = [1, 4, 0], sizes = [16, 16, 4], strides = [1, 1, 1]} : vector<22x22x4xbf16> to vector<16x16x4xbf16>
    %17 = vector.extract_strided_slice %4 {offsets = [1, 5, 0], sizes = [16, 16, 4], strides = [1, 1, 1]} : vector<22x22x4xbf16> to vector<16x16x4xbf16>
    %18 = vector.extract_strided_slice %4 {offsets = [1, 6, 0], sizes = [16, 16, 4], strides = [1, 1, 1]} : vector<22x22x4xbf16> to vector<16x16x4xbf16>
    %19 = vector.extract_strided_slice %4 {offsets = [2, 0, 0], sizes = [16, 16, 4], strides = [1, 1, 1]} : vector<22x22x4xbf16> to vector<16x16x4xbf16>
    %20 = vector.extract_strided_slice %4 {offsets = [2, 1, 0], sizes = [16, 16, 4], strides = [1, 1, 1]} : vector<22x22x4xbf16> to vector<16x16x4xbf16>
    %21 = vector.extract_strided_slice %4 {offsets = [2, 2, 0], sizes = [16, 16, 4], strides = [1, 1, 1]} : vector<22x22x4xbf16> to vector<16x16x4xbf16>
    %22 = vector.extract_strided_slice %4 {offsets = [2, 3, 0], sizes = [16, 16, 4], strides = [1, 1, 1]} : vector<22x22x4xbf16> to vector<16x16x4xbf16>
    %23 = vector.extract_strided_slice %4 {offsets = [2, 4, 0], sizes = [16, 16, 4], strides = [1, 1, 1]} : vector<22x22x4xbf16> to vector<16x16x4xbf16>
    %24 = vector.extract_strided_slice %4 {offsets = [2, 5, 0], sizes = [16, 16, 4], strides = [1, 1, 1]} : vector<22x22x4xbf16> to vector<16x16x4xbf16>
    %25 = vector.extract_strided_slice %4 {offsets = [2, 6, 0], sizes = [16, 16, 4], strides = [1, 1, 1]} : vector<22x22x4xbf16> to vector<16x16x4xbf16>
    %26 = vector.extract_strided_slice %4 {offsets = [3, 0, 0], sizes = [16, 16, 4], strides = [1, 1, 1]} : vector<22x22x4xbf16> to vector<16x16x4xbf16>
    %27 = vector.extract_strided_slice %4 {offsets = [3, 1, 0], sizes = [16, 16, 4], strides = [1, 1, 1]} : vector<22x22x4xbf16> to vector<16x16x4xbf16>
    %28 = vector.extract_strided_slice %4 {offsets = [3, 2, 0], sizes = [16, 16, 4], strides = [1, 1, 1]} : vector<22x22x4xbf16> to vector<16x16x4xbf16>
    %29 = vector.extract_strided_slice %4 {offsets = [3, 3, 0], sizes = [16, 16, 4], strides = [1, 1, 1]} : vector<22x22x4xbf16> to vector<16x16x4xbf16>
    %30 = vector.extract_strided_slice %4 {offsets = [3, 4, 0], sizes = [16, 16, 4], strides = [1, 1, 1]} : vector<22x22x4xbf16> to vector<16x16x4xbf16>
    %31 = vector.extract_strided_slice %4 {offsets = [3, 5, 0], sizes = [16, 16, 4], strides = [1, 1, 1]} : vector<22x22x4xbf16> to vector<16x16x4xbf16>
    %32 = vector.extract_strided_slice %4 {offsets = [3, 6, 0], sizes = [16, 16, 4], strides = [1, 1, 1]} : vector<22x22x4xbf16> to vector<16x16x4xbf16>
    %33 = vector.extract_strided_slice %4 {offsets = [4, 0, 0], sizes = [16, 16, 4], strides = [1, 1, 1]} : vector<22x22x4xbf16> to vector<16x16x4xbf16>
    %34 = vector.extract_strided_slice %4 {offsets = [4, 1, 0], sizes = [16, 16, 4], strides = [1, 1, 1]} : vector<22x22x4xbf16> to vector<16x16x4xbf16>
    %35 = vector.extract_strided_slice %4 {offsets = [4, 2, 0], sizes = [16, 16, 4], strides = [1, 1, 1]} : vector<22x22x4xbf16> to vector<16x16x4xbf16>
    %36 = vector.extract_strided_slice %4 {offsets = [4, 3, 0], sizes = [16, 16, 4], strides = [1, 1, 1]} : vector<22x22x4xbf16> to vector<16x16x4xbf16>
    %37 = vector.extract_strided_slice %4 {offsets = [4, 4, 0], sizes = [16, 16, 4], strides = [1, 1, 1]} : vector<22x22x4xbf16> to vector<16x16x4xbf16>
    %38 = vector.extract_strided_slice %4 {offsets = [4, 5, 0], sizes = [16, 16, 4], strides = [1, 1, 1]} : vector<22x22x4xbf16> to vector<16x16x4xbf16>
    %39 = vector.extract_strided_slice %4 {offsets = [4, 6, 0], sizes = [16, 16, 4], strides = [1, 1, 1]} : vector<22x22x4xbf16> to vector<16x16x4xbf16>
    %40 = vector.extract_strided_slice %4 {offsets = [5, 0, 0], sizes = [16, 16, 4], strides = [1, 1, 1]} : vector<22x22x4xbf16> to vector<16x16x4xbf16>
    %41 = vector.extract_strided_slice %4 {offsets = [5, 1, 0], sizes = [16, 16, 4], strides = [1, 1, 1]} : vector<22x22x4xbf16> to vector<16x16x4xbf16>
    %42 = vector.extract_strided_slice %4 {offsets = [5, 2, 0], sizes = [16, 16, 4], strides = [1, 1, 1]} : vector<22x22x4xbf16> to vector<16x16x4xbf16>
    %43 = vector.extract_strided_slice %4 {offsets = [5, 3, 0], sizes = [16, 16, 4], strides = [1, 1, 1]} : vector<22x22x4xbf16> to vector<16x16x4xbf16>
    %44 = vector.extract_strided_slice %4 {offsets = [5, 4, 0], sizes = [16, 16, 4], strides = [1, 1, 1]} : vector<22x22x4xbf16> to vector<16x16x4xbf16>
    %45 = vector.extract_strided_slice %4 {offsets = [5, 5, 0], sizes = [16, 16, 4], strides = [1, 1, 1]} : vector<22x22x4xbf16> to vector<16x16x4xbf16>
    %46 = vector.extract_strided_slice %4 {offsets = [5, 6, 0], sizes = [16, 16, 4], strides = [1, 1, 1]} : vector<22x22x4xbf16> to vector<16x16x4xbf16>
    %47 = vector.extract_strided_slice %4 {offsets = [6, 0, 0], sizes = [16, 16, 4], strides = [1, 1, 1]} : vector<22x22x4xbf16> to vector<16x16x4xbf16>
    %48 = vector.extract_strided_slice %4 {offsets = [6, 1, 0], sizes = [16, 16, 4], strides = [1, 1, 1]} : vector<22x22x4xbf16> to vector<16x16x4xbf16>
    %49 = vector.extract_strided_slice %4 {offsets = [6, 2, 0], sizes = [16, 16, 4], strides = [1, 1, 1]} : vector<22x22x4xbf16> to vector<16x16x4xbf16>
    %50 = vector.extract_strided_slice %4 {offsets = [6, 3, 0], sizes = [16, 16, 4], strides = [1, 1, 1]} : vector<22x22x4xbf16> to vector<16x16x4xbf16>
    %51 = vector.extract_strided_slice %4 {offsets = [6, 4, 0], sizes = [16, 16, 4], strides = [1, 1, 1]} : vector<22x22x4xbf16> to vector<16x16x4xbf16>
    %52 = vector.extract_strided_slice %4 {offsets = [6, 5, 0], sizes = [16, 16, 4], strides = [1, 1, 1]} : vector<22x22x4xbf16> to vector<16x16x4xbf16>
    %53 = vector.extract_strided_slice %4 {offsets = [6, 6, 0], sizes = [16, 16, 4], strides = [1, 1, 1]} : vector<22x22x4xbf16> to vector<16x16x4xbf16>
    %54 = tpu.concatenate %5, %6, %7, %8, %9, %10, %11, %12, %13, %14, %15, %16, %17, %18, %19, %20 in 2 : vector<16x16x4xbf16>, vector<16x16x4xbf16>, vector<16x16x4xbf16>, vector<16x16x4xbf16>, vector<16x16x4xbf16>, vector<16x16x4xbf16>, vector<16x16x4xbf16>, vector<16x16x4xbf16>, vector<16x16x4xbf16>, vector<16x16x4xbf16>, vector<16x16x4xbf16>, vector<16x16x4xbf16>, vector<16x16x4xbf16>, vector<16x16x4xbf16>, vector<16x16x4xbf16>, vector<16x16x4xbf16> -> vector<16x16x64xbf16>
    %55 = tpu.concatenate %21, %22, %23, %24, %25, %26, %27, %28, %29, %30, %31, %32, %33, %34, %35, %36 in 2 : vector<16x16x4xbf16>, vector<16x16x4xbf16>, vector<16x16x4xbf16>, vector<16x16x4xbf16>, vector<16x16x4xbf16>, vector<16x16x4xbf16>, vector<16x16x4xbf16>, vector<16x16x4xbf16>, vector<16x16x4xbf16>, vector<16x16x4xbf16>, vector<16x16x4xbf16>, vector<16x16x4xbf16>, vector<16x16x4xbf16>, vector<16x16x4xbf16>, vector<16x16x4xbf16>, vector<16x16x4xbf16> -> vector<16x16x64xbf16>
    %56 = tpu.concatenate %37, %38, %39, %40, %41, %42, %43, %44, %45, %46, %47, %48, %49, %50, %51, %52 in 2 : vector<16x16x4xbf16>, vector<16x16x4xbf16>, vector<16x16x4xbf16>, vector<16x16x4xbf16>, vector<16x16x4xbf16>, vector<16x16x4xbf16>, vector<16x16x4xbf16>, vector<16x16x4xbf16>, vector<16x16x4xbf16>, vector<16x16x4xbf16>, vector<16x16x4xbf16>, vector<16x16x4xbf16>, vector<16x16x4xbf16>, vector<16x16x4xbf16>, vector<16x16x4xbf16>, vector<16x16x4xbf16> -> vector<16x16x64xbf16>
    %57 = tpu.concatenate %54, %55, %56, %53 in 2 : vector<16x16x64xbf16>, vector<16x16x64xbf16>, vector<16x16x64xbf16>, vector<16x16x4xbf16> -> vector<16x16x196xbf16>
    %58 = vector.shape_cast %57 : vector<16x16x196xbf16> to vector<256x196xbf16>
    %c0_2 = arith.constant 0 : index
    %c0_3 = arith.constant 0 : index
    %59 = vector.load %arg3[%c0_2, %c0_3] : memref<196x128xbf16, #tpu.memory_space<vmem>>, vector<196x128xbf16>
    %cst = arith.constant dense<0.000000e+00> : vector<256x128xf32>
    %60 = tpu.matmul %58, %59, %cst {dimension_numbers = #tpu.dot_dimension_numbers<[1], [0], [0], [1], [0, 0, 1, 1], [], []>} : vector<256x196xbf16>, vector<196x128xbf16>, vector<256x128xf32> -> vector<256x128xf32>
    %61 = vector.shape_cast %60 : vector<256x128xf32> to vector<1x16x16x128xf32>
    %62 = arith.truncf %61 : vector<1x16x16x128xf32> to vector<1x16x16x128xbf16>
    %c0_4 = arith.constant 0 : index
    %c0_5 = arith.constant 0 : index
    %c0_6 = arith.constant 0 : index
    %c0_7 = arith.constant 0 : index
    %63 = vector.load %arg4[%c0_4, %c0_5, %c0_6, %c0_7] : memref<1x16x16x128xbf16, #tpu.memory_space<vmem>>, vector<1x16x16x128xbf16>
    tpu.vector_store %arg4[%c0_4, %c0_5, %c0_6, %c0_7], %62 {strides = array<i32>} : memref<1x16x16x128xbf16, #tpu.memory_space<vmem>>, vector<1x16x16x128xbf16>,
    %cst_8 = arith.constant dense<0.000000e+00> : vector<128xf32>
    %64 = vector.multi_reduction <add>, %60, %cst_8 [0] : vector<256x128xf32> to vector<128xf32>
    %65 = vector.shape_cast %64 : vector<128xf32> to vector<1x1x1x128xf32>
    %c0_9 = arith.constant 0 : index
    %c0_10 = arith.constant 0 : index
    %c0_11 = arith.constant 0 : index
    %c0_12 = arith.constant 0 : index
    %66 = vector.load %arg5[%c0_9, %c0_10, %c0_11, %c0_12] : memref<1x1x1x128xf32, #tpu.memory_space<vmem>>, vector<1x1x1x128xf32>
    tpu.vector_store %arg5[%c0_9, %c0_10, %c0_11, %c0_12], %65 {strides = array<i32>} : memref<1x1x1x128xf32, #tpu.memory_space<vmem>>, vector<1x1x1x128xf32>,
    %67 = arith.mulf %60, %60 : vector<256x128xf32>
    %cst_13 = arith.constant dense<0.000000e+00> : vector<128xf32>
    %68 = vector.multi_reduction <add>, %67, %cst_13 [0] : vector<256x128xf32> to vector<128xf32>
    %69 = vector.shape_cast %68 : vector<128xf32> to vector<1x1x1x128xf32>
    %c0_14 = arith.constant 0 : index
    %c0_15 = arith.constant 0 : index
    %c0_16 = arith.constant 0 : index
    %c0_17 = arith.constant 0 : index
    %70 = vector.load %arg6[%c0_14, %c0_15, %c0_16, %c0_17] : memref<1x1x1x128xf32, #tpu.memory_space<vmem>>, vector<1x1x1x128xf32>
    tpu.vector_store %arg6[%c0_14, %c0_15, %c0_16, %c0_17], %69 {strides = array<i32>} : memref<1x1x1x128xf32, #tpu.memory_space<vmem>>, vector<1x1x1x128xf32>,
    return
  }
  func.func @transform_0(%arg0: i32, %arg1: i32) -> (i32, i32, i32, i32) {
    %c0_i32 = arith.constant 0 : i32
    %c0_i32_0 = arith.constant 0 : i32
    %c0_i32_1 = arith.constant 0 : i32
    %c0_i32_2 = arith.constant 0 : i32
    return %arg0, %c0_i32, %c0_i32_0, %c0_i32_1 : i32, i32, i32, i32
  }
  func.func @transform_1(%arg0: i32, %arg1: i32) -> (i32, i32) {
    %c0_i32 = arith.constant 0 : i32
    %c0_i32_0 = arith.constant 0 : i32
    %c0_i32_1 = arith.constant 0 : i32
    return %c0_i32, %c0_i32_0 : i32, i32
  }
  func.func @transform_2(%arg0: i32, %arg1: i32) -> (i32, i32, i32, i32) {
    %c0_i32 = arith.constant 0 : i32
    %c0_i32_0 = arith.constant 0 : i32
    %c0_i32_1 = arith.constant 0 : i32
    return %arg0, %arg1, %c0_i32, %c0_i32_0 : i32, i32, i32, i32
  }
  func.func @transform_3(%arg0: i32, %arg1: i32) -> (i32, i32, i32, i32) {
    %c0_i32 = arith.constant 0 : i32
    %c0_i32_0 = arith.constant 0 : i32
    %c0_i32_1 = arith.constant 0 : i32
    return %arg0, %arg1, %c0_i32, %c0_i32_0 : i32, i32, i32, i32
  }
  func.func @transform_4(%arg0: i32, %arg1: i32) -> (i32, i32, i32, i32) {
    %c0_i32 = arith.constant 0 : i32
    %c0_i32_0 = arith.constant 0 : i32
    %c0_i32_1 = arith.constant 0 : i32
    return %arg0, %arg1, %c0_i32, %c0_i32_0 : i32, i32, i32, i32
  }
}

</mosaic_0001>

<llo_original>
// kernel: tpu_custom_call.1
$region0: #{tpu_custom_call.1}
  #allocation0 [shape = 'u32[]', space=smem, size = 0x4, offset = 0x4, fixed_abs, tag = 'smem constant byte address 0x4 - core index']
  #allocation1 [shape = 'u32[144,128]{1,0:T(1,128)}', space=vmem, size = 0x12000, scoped, tag = 'internal scratch']
  %s0 = inlined_call_operand.vmem [shape: bf16[2,22,22,4], index: 0, kind: input, shape index: {}]
  %s1 = inlined_call_operand.vmem [shape: bf16[196,128], index: 1, kind: input, shape index: {}]
  %s2 = inlined_call_operand.hbm [shape: bf16[2,16,16,128], index: 2, kind: output, shape index: {0}]
  %s3 = inlined_call_operand.hbm [shape: f32[2,1,1,128], index: 3, kind: output, shape index: {1}]
  %s4 = inlined_call_operand.hbm [shape: f32[2,1,1,128], index: 4, kind: output, shape index: {2}]
  %5 = xla_tuple %s2, %s3, %s4
  %s6 = sld [smem:[#allocation0]]
  $region57: #{tpu_custom_call.1} parent=0
    _
  %s8 = ssub.s32 1, %s6
  %s9 = scalar_select 0, %s8, %s6
  $region1: #{tpu_custom_call.1} parent=0
    #allocation2 [shape = 'u8[131072]{0}', space=vmem, size = 0x20000, scoped, tag = 'output window, operand 0']
    #allocation3 [shape = 's32[2]{0}', space=sflag, size = 0x8, scoped, tag = 'scoped memory for tpu_custom_call.1']
    #allocation4 [shape = 'u8[1024]{0}', space=vmem, size = 0x400, scoped, tag = 'output window, operand 1']
    #allocation5 [shape = 's32[2]{0}', space=sflag, size = 0x8, scoped, tag = 'scoped memory for tpu_custom_call.1']
    #allocation6 [shape = 'u8[1024]{0}', space=vmem, size = 0x400, scoped, tag = 'output window, operand 2']
    %10 = vsyncpa [#allocation3], 0
    %s11 = scalar_lea.sflag [#allocation3], 1
    %12 = vsyncpa %s11, 0
    %13 = vsyncpa [#allocation5], 0
    %s14 = scalar_lea.sflag [#allocation5], 1
    %15 = vsyncpa %s14, 0
    loop: start=0, step=1, limit=4
    $region2: #{tpu_custom_call.1} parent=1 // loop_pre_header
      _
    $region3: #{tpu_custom_call.1} parent=1 // loop_header
      %s17 = sphi 0, %s21
      %p18 = scmp.ge.s32.totalorder %s17, 4
      %s24 = sphi 0, %s36
      %s25 = sphi 0, %s32
      %s26 = sphi 0, %s24
      %s27 = sphi 0, %s25
      %s28 = sphi 0, %s26
      %s29 = sphi 0, %s27
      %s39 = sphi 0, %s41
      %s42 = sphi 0, %s39
      %s43 = sphi 0, %s42
      %s59 = sphi 0, %s43
      %s63 = sphi 0, %s63
      %s65 = sphi 0, %s63
      %s66 = sphi 0, %s65
      %s80 = sphi 0, %s66
      %s88 = sphi 0, %s90
      %s91 = sphi 0, %s88
      %s92 = sphi 0, %s91
      %s108 = sphi 0, %s92
      %s116 = sphi 0, %s118
      %s119 = sphi 0, %s116
      %s120 = sphi 0, %s119
      %s136 = sphi 0, %s120
      %s144 = sphi 0, %s146
      %s147 = sphi 0, %s144
      %s148 = sphi 0, %s147
      %s164 = sphi 0, %s148
    $region4: #{tpu_custom_call.1} parent=1 // loop_header_branch
      %20 = sbr.rel (%p18) target = $region8
    $region5: #{tpu_custom_call.1} parent=1 // loop_body
      %s22 = ssub.s32 %s17, 1
      %s23 = ssub.s32 %s17, 2
      %s30 = sadd.s32 1, %s25
      %p31 = scmp.ge.s32.totalorder %s30, 1
      %s32 = scalar_select %p31, 0, %s30
      %s33 = sadd.s32 1, %s24
      %s34 = scalar_select %p31, %s33, %s24
      %p35 = scmp.ge.s32.totalorder %s34, 2
      %s36 = scalar_select %p35, 0, %s34
      %s37 = ssub.s32 %s24, %s36
      %p38 = scmp.eq.s32.totalorder %s37, 0
      %s40 = sadd.s32 %s39, 1
      %s41 = scalar_select %p38, %s39, %s40
      %p44 = pneg %p38
      %p45 = scmp.eq.s32.totalorder %s17, 1
      %p46 = por %p44, %p45
      %p47 = scmp.ne.s32.totalorder %s39, %s42
      %p48 = scmp.eq.s32.totalorder %s17, 0
      %p49 = por %p47, %p48
      %p50 = scmp.ne.s32.totalorder %s39, %s42
      %p51 = scmp.eq.s32.totalorder %s22, 1
      %p52 = por %p50, %p51
      %p53 = scmp.ne.s32.totalorder %s42, %s43
      %p54 = scmp.eq.s32.totalorder %s22, 0
      %p55 = por %p53, %p54
      %p56 = scmp.ne.s32.totalorder %s42, %s43
      %p57 = scmp.eq.s32.totalorder %s23, 1
      %p58 = por %p56, %p57
      %p60 = scmp.ne.s32.totalorder %s43, %s59
      %p61 = scmp.eq.s32.totalorder %s23, 0
      %p62 = por %p60, %p61
      %s64 = sadd.s32 %s63, 1
      %p67 = scmp.eq.s32.totalorder %s17, 1
      %p68 = scmp.ne.s32.totalorder %s63, %s65
      %p69 = scmp.eq.s32.totalorder %s17, 0
      %p70 = por %p68, %p69
      %p71 = scmp.ne.s32.totalorder %s63, %s65
      %p72 = scmp.eq.s32.totalorder %s22, 1
      %p73 = por %p71, %p72
      %p74 = scmp.ne.s32.totalorder %s65, %s66
      %p75 = scmp.eq.s32.totalorder %s22, 0
      %p76 = por %p74, %p75
      %p77 = scmp.ne.s32.totalorder %s65, %s66
      %p78 = scmp.eq.s32.totalorder %s23, 1
      %p79 = por %p77, %p78
      %p81 = scmp.ne.s32.totalorder %s66, %s80
      %p82 = scmp.eq.s32.totalorder %s23, 0
      %p83 = por %p81, %p82
      %s84 = ssub.s32 %s24, %s36
      %s85 = ssub.s32 %s25, %s32
      %s86 = sor.u32 %s84, %s85
      %p87 = scmp.eq.s32.totalorder %s86, 0
      %s89 = sadd.s32 %s88, 1
      %s90 = scalar_select %p87, %s88, %s89
      %p93 = pneg %p87
      %p94 = scmp.eq.s32.totalorder %s17, 1
      %p95 = por %p93, %p94
      %p96 = scmp.ne.s32.totalorder %s88, %s91
      %p97 = scmp.eq.s32.totalorder %s17, 0
      %p98 = por %p96, %p97
      %p99 = scmp.ne.s32.totalorder %s88, %s91
      %p100 = scmp.eq.s32.totalorder %s22, 1
      %p101 = por %p99, %p100
      %p102 = scmp.ne.s32.totalorder %s91, %s92
      %p103 = scmp.eq.s32.totalorder %s22, 0
      %p104 = por %p102, %p103
      %p105 = scmp.ne.s32.totalorder %s91, %s92
      %p106 = scmp.eq.s32.totalorder %s23, 1
      %p107 = por %p105, %p106
      %p109 = scmp.ne.s32.totalorder %s92, %s108
      %p110 = scmp.eq.s32.totalorder %s23, 0
      %p111 = por %p109, %p110
      %s112 = ssub.s32 %s24, %s36
      %s113 = ssub.s32 %s25, %s32
      %s114 = sor.u32 %s112, %s113
      %p115 = scmp.eq.s32.totalorder %s114, 0
      %s117 = sadd.s32 %s116, 1
      %s118 = scalar_select %p115, %s116, %s117
      %p121 = pneg %p115
      %p122 = scmp.eq.s32.totalorder %s17, 1
      %p123 = por %p121, %p122
      %p124 = scmp.ne.s32.totalorder %s116, %s119
      %p125 = scmp.eq.s32.totalorder %s17, 0
      %p126 = por %p124, %p125
      %p127 = scmp.ne.s32.totalorder %s116, %s119
      %p128 = scmp.eq.s32.totalorder %s22, 1
      %p129 = por %p127, %p128
      %p130 = scmp.ne.s32.totalorder %s119, %s120
      %p131 = scmp.eq.s32.totalorder %s22, 0
      %p132 = por %p130, %p131
      %p133 = scmp.ne.s32.totalorder %s119, %s120
      %p134 = scmp.eq.s32.totalorder %s23, 1
      %p135 = por %p133, %p134
      %p137 = scmp.ne.s32.totalorder %s120, %s136
      %p138 = scmp.eq.s32.totalorder %s23, 0
      %p139 = por %p137, %p138
      %s140 = ssub.s32 %s24, %s36
      %s141 = ssub.s32 %s25, %s32
      %s142 = sor.u32 %s140, %s141
      %p143 = scmp.eq.s32.totalorder %s142, 0
      %s145 = sadd.s32 %s144, 1
      %s146 = scalar_select %p143, %s144, %s145
      %p149 = pneg %p143
      %p150 = scmp.eq.s32.totalorder %s17, 1
      %p151 = por %p149, %p150
      %p152 = scmp.ne.s32.totalorder %s144, %s147
      %p153 = scmp.eq.s32.totalorder %s17, 0
      %p154 = por %p152, %p153
      %p155 = scmp.ne.s32.totalorder %s144, %s147
      %p156 = scmp.eq.s32.totalorder %s22, 1
      %p157 = por %p155, %p156
      %p158 = scmp.ne.s32.totalorder %s147, %s148
      %p159 = scmp.eq.s32.totalorder %s22, 0
      %p160 = por %p158, %p159
      %p161 = scmp.ne.s32.totalorder %s147, %s148
      %p162 = scmp.eq.s32.totalorder %s23, 1
      %p163 = por %p161, %p162
      %p165 = scmp.ne.s32.totalorder %s148, %s164
      %p166 = scmp.eq.s32.totalorder %s23, 0
      %p167 = por %p165, %p166
      %p168 = scmp.le.s32.totalorder 1, %s17
      %p169 = scmp.lt.s32.totalorder %s17, 3
      %p170 = pnand %p168, %p169
      %p171 = pneg %p170
      // Predicated region
      $region9: #{tpu_custom_call.1} parent=5 // pred_check
        _
      $region10: #{tpu_custom_call.1} parent=5 // pred_check_branch
        %173 = sbr.rel (%p170) target = $region12
      $region11: #{tpu_custom_call.1} parent=5 // pred_region
        %s174 = ssub.s32 %s17, 1
        // Predicated region
        $region13: #{tpu_custom_call.1} parent=11 // pred_check
          %p175 = pneg %p76
        $region14: #{tpu_custom_call.1} parent=11 // pred_check_branch
          %177 = sbr.rel (%p175) target = $region16
        $region15: #{tpu_custom_call.1} parent=11 // pred_region
          _
        $region16: #{tpu_custom_call.1} parent=11 // pred_fallthru
          _
      $region12: #{tpu_custom_call.1} parent=5 // pred_fallthru
        _
      %p178 = scmp.lt.s32.totalorder %s17, 2
      // Predicated region
      $region17: #{tpu_custom_call.1} parent=5 // pred_check
        %p179 = pneg %p178
      $region18: #{tpu_custom_call.1} parent=5 // pred_check_branch
        %181 = sbr.rel (%p179) target = $region20
      $region19: #{tpu_custom_call.1} parent=5 // pred_region
        // Predicated region
        $region21: #{tpu_custom_call.1} parent=19 // pred_check
          %p182 = pneg %p49
        $region22: #{tpu_custom_call.1} parent=19 // pred_check_branch
          %184 = sbr.rel (%p182) target = $region24
        $region23: #{tpu_custom_call.1} parent=19 // pred_region
          %p185 = scmp.lt.s32.totalorder %s24, 1
          %s186 = scalar_select %p185, %s24, 1
          %s187 = smul.addr %s186, 66
          %s188 = smul.addr %s187, 4
          %s189 = scalar_lea.vmem %s0, %s188
        $region24: #{tpu_custom_call.1} parent=19 // pred_fallthru
          _
      $region20: #{tpu_custom_call.1} parent=5 // pred_fallthru
        _
      %p190 = scmp.le.s32.totalorder 1, %s17
      %p191 = scmp.lt.s32.totalorder %s17, 3
      %p192 = pnand %p190, %p191
      %p193 = pneg %p192
      // Predicated region
      $region25: #{tpu_custom_call.1} parent=5 // pred_check
        _
      $region26: #{tpu_custom_call.1} parent=5 // pred_check_branch
        %195 = sbr.rel (%p192) target = $region28
      $region27: #{tpu_custom_call.1} parent=5 // pred_region
        %s196 = ssub.s32 %s17, 1
        %p197 = scmp.lt.s32.totalorder %s26, 1
        %s198 = scalar_select %p197, %s26, 1
        %s199 = smul.addr %s198, 66
        %s200 = smul.addr %s199, 4
        %s201 = scalar_lea.vmem %s0, %s200
        %p202 = pneg %p55
        %p203 = pneg %p52
        %p204 = pneg %p76
        %p205 = pneg %p73
        %p206 = pneg %p104
        %p207 = pneg %p101
        %s208 = sand.u32 %s91, 1
        %s209 = scalar_lea.sflag [#allocation3], %s208
        %s210 = sand.u32 %s91, 1
        %s211 = smul.addr %s210, 128
        %s212 = scalar_lea.vmem [#allocation2], %s211
        %p213 = pneg %p132
        %p214 = pneg %p129
        %s215 = sand.u32 %s22, 1
        %s216 = scalar_lea.sflag [#allocation5], %s215
        %s217 = sand.u32 %s119, 1
        %s218 = scalar_lea.vmem [#allocation4], %s217
        %p219 = pneg %p160
        %p220 = pneg %p157
        %s221 = sand.u32 %s22, 1
        %s222 = scalar_lea.sflag [#allocation5], %s221
        %s223 = sand.u32 %s147, 1
        %s224 = scalar_lea.vmem [#allocation6], %s223
        %p225 = scmp.lt.s32.totalorder %s26, 1
        %s226 = scalar_select %p225, %s26, 1
        %s227 = smul.addr %s226, 66
        %s228 = smul.addr %s227, 4
        %s229 = scalar_lea.vmem %s0, %s228
        %s230 = smul.u32 16, %s27
        %s232 = smul.u32 %s27, 16
        %s233 = smul.u32 %s232, 3
        %s234 = smul.addr %s233, 4
        %s235 = scalar_lea.vmem %s229, %s234
        %v236 = vld [vmem:[%s235] sm:$0xf]
        %v237 = vld [vmem:[%s235 + $0x4] sm:$0xf]
        %v238 = vld [vmem:[%s235 + $0x8] sm:$0x7]
        %v239 = vld [vmem:[%s235 + $0xc] sm:$0xf]
        %v240 = vld [vmem:[%s235 + $0x10] sm:$0xf]
        %v241 = vld [vmem:[%s235 + $0x14] sm:$0x7]
        %v242 = vld [vmem:[%s235 + $0x18] sm:$0xf]
        %v243 = vld [vmem:[%s235 + $0x1c] sm:$0xf]
        %v244 = vld [vmem:[%s235 + $0x20] sm:$0x7]
        %v245 = vld [vmem:[%s235 + $0x24] sm:$0xf]
        %v246 = vld [vmem:[%s235 + $0x28] sm:$0xf]
        %v247 = vld [vmem:[%s235 + $0x2c] sm:$0x7]
        %v248 = vld [vmem:[%s235 + $0x30] sm:$0xf]
        %v249 = vld [vmem:[%s235 + $0x34] sm:$0xf]
        %v250 = vld [vmem:[%s235 + $0x38] sm:$0x7]
        %v251 = vld [vmem:[%s235 + $0x3c] sm:$0xf]
        %v252 = vld [vmem:[%s235 + $0x40] sm:$0xf]
        %v253 = vld [vmem:[%s235 + $0x44] sm:$0x7]
        %v254 = vld [vmem:[%s235 + $0x48] sm:$0xf]
        %v255 = vld [vmem:[%s235 + $0x4c] sm:$0xf]
        %v256 = vld [vmem:[%s235 + $0x50] sm:$0x7]
        %v257 = vld [vmem:[%s235 + $0x54] sm:$0xf]
        %v258 = vld [vmem:[%s235 + $0x58] sm:$0xf]
        %v259 = vld [vmem:[%s235 + $0x5c] sm:$0x7]
        %v260 = vld [vmem:[%s235 + $0x60] sm:$0xf]
        %v261 = vld [vmem:[%s235 + $0x64] sm:$0xf]
        %v262 = vld [vmem:[%s235 + $0x68] sm:$0x7]
        %v263 = vld [vmem:[%s235 + $0x6c] sm:$0xf]
        %v264 = vld [vmem:[%s235 + $0x70] sm:$0xf]
        %v265 = vld [vmem:[%s235 + $0x74] sm:$0x7]
        %v266 = vld [vmem:[%s235 + $0x78] sm:$0xf]
        %v267 = vld [vmem:[%s235 + $0x7c] sm:$0xf]
        %v268 = vld [vmem:[%s235 + $0x80] sm:$0x7]
        %v269 = vld [vmem:[%s235 + $0x84] sm:$0xf]
        %v270 = vld [vmem:[%s235 + $0x88] sm:$0xf]
        %v271 = vld [vmem:[%s235 + $0x8c] sm:$0x7]
        %v272 = vld [vmem:[%s235 + $0x90] sm:$0xf]
        %v273 = vld [vmem:[%s235 + $0x94] sm:$0xf]
        %v274 = vld [vmem:[%s235 + $0x98] sm:$0x7]
        %v275 = vld [vmem:[%s235 + $0x9c] sm:$0xf]
        %v276 = vld [vmem:[%s235 + $0xa0] sm:$0xf]
        %v277 = vld [vmem:[%s235 + $0xa4] sm:$0x7]
        %v278 = vld [vmem:[%s235 + $0xa8] sm:$0xf]
        %v279 = vld [vmem:[%s235 + $0xac] sm:$0xf]
        %v280 = vld [vmem:[%s235 + $0xb0] sm:$0x7]
        %v281 = vld [vmem:[%s235 + $0xb4] sm:$0xf]
        %v282 = vld [vmem:[%s235 + $0xb8] sm:$0xf]
        %v283 = vld [vmem:[%s235 + $0xbc] sm:$0x7]
        %v284 = vld [vmem:[%s235 + $0xc0] sm:$0xf]
        %v285 = vld [vmem:[%s235 + $0xc4] sm:$0xf]
        %v286 = vld [vmem:[%s235 + $0xc8] sm:$0x7]
        %v287 = vld [vmem:[%s235 + $0xcc] sm:$0xf]
        %v288 = vld [vmem:[%s235 + $0xd0] sm:$0xf]
        %v289 = vld [vmem:[%s235 + $0xd4] sm:$0x7]
        %v290 = vld [vmem:[%s235 + $0xd8] sm:$0xf]
        %v291 = vld [vmem:[%s235 + $0xdc] sm:$0xf]
        %v292 = vld [vmem:[%s235 + $0xe0] sm:$0x7]
        %v293 = vld [vmem:[%s235 + $0xe4] sm:$0xf]
        %v294 = vld [vmem:[%s235 + $0xe8] sm:$0xf]
        %v295 = vld [vmem:[%s235 + $0xec] sm:$0x7]
        %v296 = vld [vmem:[%s235 + $0xf0] sm:$0xf]
        %v297 = vld [vmem:[%s235 + $0xf4] sm:$0xf]
        %v298 = vld [vmem:[%s235 + $0xf8] sm:$0x7]
        %v299 = vld [vmem:[%s235 + $0xfc] sm:$0xf]
        %v300 = vld [vmem:[%s235 + $0x100] sm:$0xf]
        %v301 = vld [vmem:[%s235 + $0x104] sm:$0x7]
        %v334 = vunpack.c.l.b16 %v236
        %v335 = vunpack.c.l.b16 %v237
        %v336 = vunpack.c.l.b16 %v239
        %v337 = vunpack.c.l.b16 %v240
        %v338 = vunpack.c.l.b16 %v242
        %v339 = vunpack.c.l.b16 %v243
        %v340 = vunpack.c.l.b16 %v245
        %v341 = vunpack.c.l.b16 %v246
        %v342 = vunpack.c.l.b16 %v248
        %v343 = vunpack.c.l.b16 %v249
        %v344 = vunpack.c.l.b16 %v251
        %v345 = vunpack.c.l.b16 %v252
        %v346 = vunpack.c.l.b16 %v254
        %v347 = vunpack.c.l.b16 %v255
        %v348 = vunpack.c.l.b16 %v257
        %v349 = vunpack.c.l.b16 %v258
        %v350 = vunpack.c.l.b16 %v260
        %v351 = vunpack.c.l.b16 %v261
        %v352 = vunpack.c.l.b16 %v263
        %v353 = vunpack.c.l.b16 %v264
        %v354 = vunpack.c.l.b16 %v266
        %v355 = vunpack.c.l.b16 %v267
        %v356 = vunpack.c.l.b16 %v269
        %v357 = vunpack.c.l.b16 %v270
        %v358 = vunpack.c.l.b16 %v272
        %v359 = vunpack.c.l.b16 %v273
        %v360 = vunpack.c.l.b16 %v275
        %v361 = vunpack.c.l.b16 %v276
        %v362 = vunpack.c.l.b16 %v278
        %v363 = vunpack.c.l.b16 %v279
        %v364 = vunpack.c.l.b16 %v281
        %v365 = vunpack.c.l.b16 %v282
        %v366 = vpack.c.b16 %v335, %v334
        %v367 = vpack.c.b16 %v337, %v336
        %v368 = vpack.c.b16 %v339, %v338
        %v369 = vpack.c.b16 %v341, %v340
        %v370 = vpack.c.b16 %v343, %v342
        %v371 = vpack.c.b16 %v345, %v344
        %v372 = vpack.c.b16 %v347, %v346
        %v373 = vpack.c.b16 %v349, %v348
        %v374 = vpack.c.b16 %v351, %v350
        %v375 = vpack.c.b16 %v353, %v352
        %v376 = vpack.c.b16 %v355, %v354
        %v377 = vpack.c.b16 %v357, %v356
        %v378 = vpack.c.b16 %v359, %v358
        %v379 = vpack.c.b16 %v361, %v360
        %v380 = vpack.c.b16 %v363, %v362
        %v381 = vpack.c.b16 %v365, %v364
        %v398 = vunpack.c.l.b16 %v238
        %v399 = vunpack.c.l.b16 %v241
        %v400 = vunpack.c.l.b16 %v244
        %v401 = vunpack.c.l.b16 %v247
        %v402 = vunpack.c.l.b16 %v250
        %v403 = vunpack.c.l.b16 %v253
        %v404 = vunpack.c.l.b16 %v256
        %v405 = vunpack.c.l.b16 %v259
        %v406 = vunpack.c.l.b16 %v262
        %v407 = vunpack.c.l.b16 %v265
        %v408 = vunpack.c.l.b16 %v268
        %v409 = vunpack.c.l.b16 %v271
        %v410 = vunpack.c.l.b16 %v274
        %v411 = vunpack.c.l.b16 %v277
        %v412 = vunpack.c.l.b16 %v280
        %v413 = vunpack.c.l.b16 %v283
        %v414 = vpack.c.b16 %v398, %v398
        %v415 = vpack.c.b16 %v399, %v399
        %v416 = vpack.c.b16 %v400, %v400
        %v417 = vpack.c.b16 %v401, %v401
        %v418 = vpack.c.b16 %v402, %v402
        %v419 = vpack.c.b16 %v403, %v403
        %v420 = vpack.c.b16 %v404, %v404
        %v421 = vpack.c.b16 %v405, %v405
        %v422 = vpack.c.b16 %v406, %v406
        %v423 = vpack.c.b16 %v407, %v407
        %v424 = vpack.c.b16 %v408, %v408
        %v425 = vpack.c.b16 %v409, %v409
        %v426 = vpack.c.b16 %v410, %v410
        %v427 = vpack.c.b16 %v411, %v411
        %v428 = vpack.c.b16 %v412, %v412
        %v429 = vpack.c.b16 %v413, %v413
        %vm430 = vsmask.f32 7424
        %v432 = vshrl.u32 %v366, 16
        %v434 = vshll.u32 %v366, 16
        %v436 = vrot.slane %v434, 1
        %v437 = vor.u32 %v432, %v436
        %v439 = vshll.u32 %v414, 16
        %v441 = vrot.slane %v439, 1
        %v442 = vsel %vm430, %v437, %v441
        %v444 = vshrl.u32 %v367, 16
        %v446 = vshll.u32 %v367, 16
        %v448 = vrot.slane %v446, 1
        %v449 = vor.u32 %v444, %v448
        %v451 = vshll.u32 %v415, 16
        %v453 = vrot.slane %v451, 1
        %v454 = vsel %vm430, %v449, %v453
        %v456 = vshrl.u32 %v368, 16
        %v458 = vshll.u32 %v368, 16
        %v460 = vrot.slane %v458, 1
        %v461 = vor.u32 %v456, %v460
        %v463 = vshll.u32 %v416, 16
        %v465 = vrot.slane %v463, 1
        %v466 = vsel %vm430, %v461, %v465
        %v468 = vshrl.u32 %v369, 16
        %v470 = vshll.u32 %v369, 16
        %v472 = vrot.slane %v470, 1
        %v473 = vor.u32 %v468, %v472
        %v475 = vshll.u32 %v417, 16
        %v477 = vrot.slane %v475, 1
        %v478 = vsel %vm430, %v473, %v477
        %v480 = vshrl.u32 %v370, 16
        %v482 = vshll.u32 %v370, 16
        %v484 = vrot.slane %v482, 1
        %v485 = vor.u32 %v480, %v484
        %v487 = vshll.u32 %v418, 16
        %v489 = vrot.slane %v487, 1
        %v490 = vsel %vm430, %v485, %v489
        %v492 = vshrl.u32 %v371, 16
        %v494 = vshll.u32 %v371, 16
        %v496 = vrot.slane %v494, 1
        %v497 = vor.u32 %v492, %v496
        %v499 = vshll.u32 %v419, 16
        %v501 = vrot.slane %v499, 1
        %v502 = vsel %vm430, %v497, %v501
        %v504 = vshrl.u32 %v372, 16
        %v506 = vshll.u32 %v372, 16
        %v508 = vrot.slane %v506, 1
        %v509 = vor.u32 %v504, %v508
        %v511 = vshll.u32 %v420, 16
        %v513 = vrot.slane %v511, 1
        %v514 = vsel %vm430, %v509, %v513
        %v516 = vshrl.u32 %v373, 16
        %v518 = vshll.u32 %v373, 16
        %v520 = vrot.slane %v518, 1
        %v521 = vor.u32 %v516, %v520
        %v523 = vshll.u32 %v421, 16
        %v525 = vrot.slane %v523, 1
        %v526 = vsel %vm430, %v521, %v525
        %v528 = vshrl.u32 %v374, 16
        %v530 = vshll.u32 %v374, 16
        %v532 = vrot.slane %v530, 1
        %v533 = vor.u32 %v528, %v532
        %v535 = vshll.u32 %v422, 16
        %v537 = vrot.slane %v535, 1
        %v538 = vsel %vm430, %v533, %v537
        %v540 = vshrl.u32 %v375, 16
        %v542 = vshll.u32 %v375, 16
        %v544 = vrot.slane %v542, 1
        %v545 = vor.u32 %v540, %v544
        %v547 = vshll.u32 %v423, 16
        %v549 = vrot.slane %v547, 1
        %v550 = vsel %vm430, %v545, %v549
        %v552 = vshrl.u32 %v376, 16
        %v554 = vshll.u32 %v376, 16
        %v556 = vrot.slane %v554, 1
        %v557 = vor.u32 %v552, %v556
        %v559 = vshll.u32 %v424, 16
        %v561 = vrot.slane %v559, 1
        %v562 = vsel %vm430, %v557, %v561
        %v564 = vshrl.u32 %v377, 16
        %v566 = vshll.u32 %v377, 16
        %v568 = vrot.slane %v566, 1
        %v569 = vor.u32 %v564, %v568
        %v571 = vshll.u32 %v425, 16
        %v573 = vrot.slane %v571, 1
        %v574 = vsel %vm430, %v569, %v573
        %v576 = vshrl.u32 %v378, 16
        %v578 = vshll.u32 %v378, 16
        %v580 = vrot.slane %v578, 1
        %v581 = vor.u32 %v576, %v580
        %v583 = vshll.u32 %v426, 16
        %v585 = vrot.slane %v583, 1
        %v586 = vsel %vm430, %v581, %v585
        %v588 = vshrl.u32 %v379, 16
        %v590 = vshll.u32 %v379, 16
        %v592 = vrot.slane %v590, 1
        %v593 = vor.u32 %v588, %v592
        %v595 = vshll.u32 %v427, 16
        %v597 = vrot.slane %v595, 1
        %v598 = vsel %vm430, %v593, %v597
        %v600 = vshrl.u32 %v380, 16
        %v602 = vshll.u32 %v380, 16
        %v604 = vrot.slane %v602, 1
        %v605 = vor.u32 %v600, %v604
        %v607 = vshll.u32 %v428, 16
        %v609 = vrot.slane %v607, 1
        %v610 = vsel %vm430, %v605, %v609
        %v612 = vshrl.u32 %v381, 16
        %v614 = vshll.u32 %v381, 16
        %v616 = vrot.slane %v614, 1
        %v617 = vor.u32 %v612, %v616
        %v619 = vshll.u32 %v429, 16
        %v621 = vrot.slane %v619, 1
        %v622 = vsel %vm430, %v617, %v621
        %623 = vrot.lane.b32.xlu0 %v442, 4
        %v624 = vpop.permute.xlu0 %623
        %625 = vrot.lane.b32.xlu0 %v454, 4
        %v626 = vpop.permute.xlu0 %625
        %627 = vrot.lane.b32.xlu0 %v466, 4
        %v628 = vpop.permute.xlu0 %627
        %629 = vrot.lane.b32.xlu0 %v478, 4
        %v630 = vpop.permute.xlu0 %629
        %631 = vrot.lane.b32.xlu0 %v490, 4
        %v632 = vpop.permute.xlu0 %631
        %633 = vrot.lane.b32.xlu0 %v502, 4
        %v634 = vpop.permute.xlu0 %633
        %635 = vrot.lane.b32.xlu0 %v514, 4
        %v636 = vpop.permute.xlu0 %635
        %637 = vrot.lane.b32.xlu0 %v526, 4
        %v638 = vpop.permute.xlu0 %637
        %639 = vrot.lane.b32.xlu0 %v538, 4
        %v640 = vpop.permute.xlu0 %639
        %641 = vrot.lane.b32.xlu0 %v550, 4
        %v642 = vpop.permute.xlu0 %641
        %643 = vrot.lane.b32.xlu0 %v562, 4
        %v644 = vpop.permute.xlu0 %643
        %645 = vrot.lane.b32.xlu0 %v574, 4
        %v646 = vpop.permute.xlu0 %645
        %647 = vrot.lane.b32.xlu0 %v586, 4
        %v648 = vpop.permute.xlu0 %647
        %649 = vrot.lane.b32.xlu0 %v598, 4
        %v650 = vpop.permute.xlu0 %649
        %651 = vrot.lane.b32.xlu0 %v610, 4
        %v652 = vpop.permute.xlu0 %651
        %653 = vrot.lane.b32.xlu0 %v622, 4
        %v654 = vpop.permute.xlu0 %653
        %vm655 = vcmask 1046528
        %v656 = vrot.slane %v366, 1
        %v657 = vrot.slane %v414, 1
        %v658 = vsel %vm655, %v656, %v657
        %v659 = vrot.slane %v367, 1
        %v660 = vrot.slane %v415, 1
        %v661 = vsel %vm655, %v659, %v660
        %v662 = vrot.slane %v368, 1
        %v663 = vrot.slane %v416, 1
        %v664 = vsel %vm655, %v662, %v663
        %v665 = vrot.slane %v369, 1
        %v666 = vrot.slane %v417, 1
        %v667 = vsel %vm655, %v665, %v666
        %v668 = vrot.slane %v370, 1
        %v669 = vrot.slane %v418, 1
        %v670 = vsel %vm655, %v668, %v669
        %v671 = vrot.slane %v371, 1
        %v672 = vrot.slane %v419, 1
        %v673 = vsel %vm655, %v671, %v672
        %v674 = vrot.slane %v372, 1
        %v675 = vrot.slane %v420, 1
        %v676 = vsel %vm655, %v674, %v675
        %v677 = vrot.slane %v373, 1
        %v678 = vrot.slane %v421, 1
        %v679 = vsel %vm655, %v677, %v678
        %v680 = vrot.slane %v374, 1
        %v681 = vrot.slane %v422, 1
        %v682 = vsel %vm655, %v680, %v681
        %v683 = vrot.slane %v375, 1
        %v684 = vrot.slane %v423, 1
        %v685 = vsel %vm655, %v683, %v684
        %v686 = vrot.slane %v376, 1
        %v687 = vrot.slane %v424, 1
        %v688 = vsel %vm655, %v686, %v687
        %v689 = vrot.slane %v377, 1
        %v690 = vrot.slane %v425, 1
        %v691 = vsel %vm655, %v689, %v690
        %v692 = vrot.slane %v378, 1
        %v693 = vrot.slane %v426, 1
        %v694 = vsel %vm655, %v692, %v693
        %v695 = vrot.slane %v379, 1
        %v696 = vrot.slane %v427, 1
        %v697 = vsel %vm655, %v695, %v696
        %v698 = vrot.slane %v380, 1
        %v699 = vrot.slane %v428, 1
        %v700 = vsel %vm655, %v698, %v699
        %v701 = vrot.slane %v381, 1
        %v702 = vrot.slane %v429, 1
        %v703 = vsel %vm655, %v701, %v702
        %704 = vrot.lane.b32.xlu0 %v658, 8
        %v705 = vpop.permute.xlu0 %704
        %706 = vrot.lane.b32.xlu0 %v661, 8
        %v707 = vpop.permute.xlu0 %706
        %708 = vrot.lane.b32.xlu0 %v664, 8
        %v709 = vpop.permute.xlu0 %708
        %710 = vrot.lane.b32.xlu0 %v667, 8
        %v711 = vpop.permute.xlu0 %710
        %712 = vrot.lane.b32.xlu0 %v670, 8
        %v713 = vpop.permute.xlu0 %712
        %714 = vrot.lane.b32.xlu0 %v673, 8
        %v715 = vpop.permute.xlu0 %714
        %716 = vrot.lane.b32.xlu0 %v676, 8
        %v717 = vpop.permute.xlu0 %716
        %718 = vrot.lane.b32.xlu0 %v679, 8
        %v719 = vpop.permute.xlu0 %718
        %720 = vrot.lane.b32.xlu0 %v682, 8
        %v721 = vpop.permute.xlu0 %720
        %722 = vrot.lane.b32.xlu0 %v685, 8
        %v723 = vpop.permute.xlu0 %722
        %724 = vrot.lane.b32.xlu0 %v688, 8
        %v725 = vpop.permute.xlu0 %724
        %726 = vrot.lane.b32.xlu0 %v691, 8
        %v727 = vpop.permute.xlu0 %726
        %728 = vrot.lane.b32.xlu0 %v694, 8
        %v729 = vpop.permute.xlu0 %728
        %730 = vrot.lane.b32.xlu0 %v697, 8
        %v731 = vpop.permute.xlu0 %730
        %732 = vrot.lane.b32.xlu0 %v700, 8
        %v733 = vpop.permute.xlu0 %732
        %734 = vrot.lane.b32.xlu0 %v703, 8
        %v735 = vpop.permute.xlu0 %734
        %vm736 = vsmask.f32 6400
        %v737 = vrot.slane %v432, 1
        %v738 = vrot.slane %v434, 2
        %v739 = vor.u32 %v737, %v738
        %v740 = vshrl.u32 %v414, 16
        %v742 = vrot.slane %v740, 1
        %v743 = vrot.slane %v439, 2
        %v744 = vor.u32 %v742, %v743
        %v745 = vsel %vm736, %v739, %v744
        %v746 = vrot.slane %v444, 1
        %v747 = vrot.slane %v446, 2
        %v748 = vor.u32 %v746, %v747
        %v749 = vshrl.u32 %v415, 16
        %v751 = vrot.slane %v749, 1
        %v752 = vrot.slane %v451, 2
        %v753 = vor.u32 %v751, %v752
        %v754 = vsel %vm736, %v748, %v753
        %v755 = vrot.slane %v456, 1
        %v756 = vrot.slane %v458, 2
        %v757 = vor.u32 %v755, %v756
        %v758 = vshrl.u32 %v416, 16
        %v760 = vrot.slane %v758, 1
        %v761 = vrot.slane %v463, 2
        %v762 = vor.u32 %v760, %v761
        %v763 = vsel %vm736, %v757, %v762
        %v764 = vrot.slane %v468, 1
        %v765 = vrot.slane %v470, 2
        %v766 = vor.u32 %v764, %v765
        %v767 = vshrl.u32 %v417, 16
        %v769 = vrot.slane %v767, 1
        %v770 = vrot.slane %v475, 2
        %v771 = vor.u32 %v769, %v770
        %v772 = vsel %vm736, %v766, %v771
        %v773 = vrot.slane %v480, 1
        %v774 = vrot.slane %v482, 2
        %v775 = vor.u32 %v773, %v774
        %v776 = vshrl.u32 %v418, 16
        %v778 = vrot.slane %v776, 1
        %v779 = vrot.slane %v487, 2
        %v780 = vor.u32 %v778, %v779
        %v781 = vsel %vm736, %v775, %v780
        %v782 = vrot.slane %v492, 1
        %v783 = vrot.slane %v494, 2
        %v784 = vor.u32 %v782, %v783
        %v785 = vshrl.u32 %v419, 16
        %v787 = vrot.slane %v785, 1
        %v788 = vrot.slane %v499, 2
        %v789 = vor.u32 %v787, %v788
        %v790 = vsel %vm736, %v784, %v789
        %v791 = vrot.slane %v504, 1
        %v792 = vrot.slane %v506, 2
        %v793 = vor.u32 %v791, %v792
        %v794 = vshrl.u32 %v420, 16
        %v796 = vrot.slane %v794, 1
        %v797 = vrot.slane %v511, 2
        %v798 = vor.u32 %v796, %v797
        %v799 = vsel %vm736, %v793, %v798
        %v800 = vrot.slane %v516, 1
        %v801 = vrot.slane %v518, 2
        %v802 = vor.u32 %v800, %v801
        %v803 = vshrl.u32 %v421, 16
        %v805 = vrot.slane %v803, 1
        %v806 = vrot.slane %v523, 2
        %v807 = vor.u32 %v805, %v806
        %v808 = vsel %vm736, %v802, %v807
        %v809 = vrot.slane %v528, 1
        %v810 = vrot.slane %v530, 2
        %v811 = vor.u32 %v809, %v810
        %v812 = vshrl.u32 %v422, 16
        %v814 = vrot.slane %v812, 1
        %v815 = vrot.slane %v535, 2
        %v816 = vor.u32 %v814, %v815
        %v817 = vsel %vm736, %v811, %v816
        %v818 = vrot.slane %v540, 1
        %v819 = vrot.slane %v542, 2
        %v820 = vor.u32 %v818, %v819
        %v821 = vshrl.u32 %v423, 16
        %v823 = vrot.slane %v821, 1
        %v824 = vrot.slane %v547, 2
        %v825 = vor.u32 %v823, %v824
        %v826 = vsel %vm736, %v820, %v825
        %v827 = vrot.slane %v552, 1
        %v828 = vrot.slane %v554, 2
        %v829 = vor.u32 %v827, %v828
        %v830 = vshrl.u32 %v424, 16
        %v832 = vrot.slane %v830, 1
        %v833 = vrot.slane %v559, 2
        %v834 = vor.u32 %v832, %v833
        %v835 = vsel %vm736, %v829, %v834
        %v836 = vrot.slane %v564, 1
        %v837 = vrot.slane %v566, 2
        %v838 = vor.u32 %v836, %v837
        %v839 = vshrl.u32 %v425, 16
        %v841 = vrot.slane %v839, 1
        %v842 = vrot.slane %v571, 2
        %v843 = vor.u32 %v841, %v842
        %v844 = vsel %vm736, %v838, %v843
        %v845 = vrot.slane %v576, 1
        %v846 = vrot.slane %v578, 2
        %v847 = vor.u32 %v845, %v846
        %v848 = vshrl.u32 %v426, 16
        %v850 = vrot.slane %v848, 1
        %v851 = vrot.slane %v583, 2
        %v852 = vor.u32 %v850, %v851
        %v853 = vsel %vm736, %v847, %v852
        %v854 = vrot.slane %v588, 1
        %v855 = vrot.slane %v590, 2
        %v856 = vor.u32 %v854, %v855
        %v857 = vshrl.u32 %v427, 16
        %v859 = vrot.slane %v857, 1
        %v860 = vrot.slane %v595, 2
        %v861 = vor.u32 %v859, %v860
        %v862 = vsel %vm736, %v856, %v861
        %v863 = vrot.slane %v600, 1
        %v864 = vrot.slane %v602, 2
        %v865 = vor.u32 %v863, %v864
        %v866 = vshrl.u32 %v428, 16
        %v868 = vrot.slane %v866, 1
        %v869 = vrot.slane %v607, 2
        %v870 = vor.u32 %v868, %v869
        %v871 = vsel %vm736, %v865, %v870
        %v872 = vrot.slane %v612, 1
        %v873 = vrot.slane %v614, 2
        %v874 = vor.u32 %v872, %v873
        %v875 = vshrl.u32 %v429, 16
        %v877 = vrot.slane %v875, 1
        %v878 = vrot.slane %v619, 2
        %v879 = vor.u32 %v877, %v878
        %v880 = vsel %vm736, %v874, %v879
        %881 = vrot.lane.b32.xlu0 %v745, 12
        %v882 = vpop.permute.xlu0 %881
        %883 = vrot.lane.b32.xlu0 %v754, 12
        %v884 = vpop.permute.xlu0 %883
        %885 = vrot.lane.b32.xlu0 %v763, 12
        %v886 = vpop.permute.xlu0 %885
        %887 = vrot.lane.b32.xlu0 %v772, 12
        %v888 = vpop.permute.xlu0 %887
        %889 = vrot.lane.b32.xlu0 %v781, 12
        %v890 = vpop.permute.xlu0 %889
        %891 = vrot.lane.b32.xlu0 %v790, 12
        %v892 = vpop.permute.xlu0 %891
        %893 = vrot.lane.b32.xlu0 %v799, 12
        %v894 = vpop.permute.xlu0 %893
        %895 = vrot.lane.b32.xlu0 %v808, 12
        %v896 = vpop.permute.xlu0 %895
        %897 = vrot.lane.b32.xlu0 %v817, 12
        %v898 = vpop.permute.xlu0 %897
        %899 = vrot.lane.b32.xlu0 %v826, 12
        %v900 = vpop.permute.xlu0 %899
        %901 = vrot.lane.b32.xlu0 %v835, 12
        %v902 = vpop.permute.xlu0 %901
        %903 = vrot.lane.b32.xlu0 %v844, 12
        %v904 = vpop.permute.xlu0 %903
        %905 = vrot.lane.b32.xlu0 %v853, 12
        %v906 = vpop.permute.xlu0 %905
        %907 = vrot.lane.b32.xlu0 %v862, 12
        %v908 = vpop.permute.xlu0 %907
        %909 = vrot.lane.b32.xlu0 %v871, 12
        %v910 = vpop.permute.xlu0 %909
        %911 = vrot.lane.b32.xlu0 %v880, 12
        %v912 = vpop.permute.xlu0 %911
        %vm913 = vcmask 1045504
        %v914 = vrot.slane %v366, 2
        %v915 = vrot.slane %v414, 2
        %v916 = vsel %vm913, %v914, %v915
        %v917 = vrot.slane %v367, 2
        %v918 = vrot.slane %v415, 2
        %v919 = vsel %vm913, %v917, %v918
        %v920 = vrot.slane %v368, 2
        %v921 = vrot.slane %v416, 2
        %v922 = vsel %vm913, %v920, %v921
        %v923 = vrot.slane %v369, 2
        %v924 = vrot.slane %v417, 2
        %v925 = vsel %vm913, %v923, %v924
        %v926 = vrot.slane %v370, 2
        %v927 = vrot.slane %v418, 2
        %v928 = vsel %vm913, %v926, %v927
        %v929 = vrot.slane %v371, 2
        %v930 = vrot.slane %v419, 2
        %v931 = vsel %vm913, %v929, %v930
        %v932 = vrot.slane %v372, 2
        %v933 = vrot.slane %v420, 2
        %v934 = vsel %vm913, %v932, %v933
        %v935 = vrot.slane %v373, 2
        %v936 = vrot.slane %v421, 2
        %v937 = vsel %vm913, %v935, %v936
        %v938 = vrot.slane %v374, 2
        %v939 = vrot.slane %v422, 2
        %v940 = vsel %vm913, %v938, %v939
        %v941 = vrot.slane %v375, 2
        %v942 = vrot.slane %v423, 2
        %v943 = vsel %vm913, %v941, %v942
        %v944 = vrot.slane %v376, 2
        %v945 = vrot.slane %v424, 2
        %v946 = vsel %vm913, %v944, %v945
        %v947 = vrot.slane %v377, 2
        %v948 = vrot.slane %v425, 2
        %v949 = vsel %vm913, %v947, %v948
        %v950 = vrot.slane %v378, 2
        %v951 = vrot.slane %v426, 2
        %v952 = vsel %vm913, %v950, %v951
        %v953 = vrot.slane %v379, 2
        %v954 = vrot.slane %v427, 2
        %v955 = vsel %vm913, %v953, %v954
        %v956 = vrot.slane %v380, 2
        %v957 = vrot.slane %v428, 2
        %v958 = vsel %vm913, %v956, %v957
        %v959 = vrot.slane %v381, 2
        %v960 = vrot.slane %v429, 2
        %v961 = vsel %vm913, %v959, %v960
        %962 = vrot.lane.b32.xlu0 %v916, 16
        %v963 = vpop.permute.xlu0 %962
        %964 = vrot.lane.b32.xlu0 %v919, 16
        %v965 = vpop.permute.xlu0 %964
        %966 = vrot.lane.b32.xlu0 %v922, 16
        %v967 = vpop.permute.xlu0 %966
        %968 = vrot.lane.b32.xlu0 %v925, 16
        %v969 = vpop.permute.xlu0 %968
        %970 = vrot.lane.b32.xlu0 %v928, 16
        %v971 = vpop.permute.xlu0 %970
        %972 = vrot.lane.b32.xlu0 %v931, 16
        %v973 = vpop.permute.xlu0 %972
        %974 = vrot.lane.b32.xlu0 %v934, 16
        %v975 = vpop.permute.xlu0 %974
        %976 = vrot.lane.b32.xlu0 %v937, 16
        %v977 = vpop.permute.xlu0 %976
        %978 = vrot.lane.b32.xlu0 %v940, 16
        %v979 = vpop.permute.xlu0 %978
        %980 = vrot.lane.b32.xlu0 %v943, 16
        %v981 = vpop.permute.xlu0 %980
        %982 = vrot.lane.b32.xlu0 %v946, 16
        %v983 = vpop.permute.xlu0 %982
        %984 = vrot.lane.b32.xlu0 %v949, 16
        %v985 = vpop.permute.xlu0 %984
        %986 = vrot.lane.b32.xlu0 %v952, 16
        %v987 = vpop.permute.xlu0 %986
        %988 = vrot.lane.b32.xlu0 %v955, 16
        %v989 = vpop.permute.xlu0 %988
        %990 = vrot.lane.b32.xlu0 %v958, 16
        %v991 = vpop.permute.xlu0 %990
        %992 = vrot.lane.b32.xlu0 %v961, 16
        %v993 = vpop.permute.xlu0 %992
        %vm994 = vsmask.f32 5376
        %v995 = vrot.slane %v432, 2
        %v996 = vrot.slane %v434, 3
        %v997 = vor.u32 %v995, %v996
        %v998 = vrot.slane %v740, 2
        %v999 = vrot.slane %v439, 3
        %v1000 = vor.u32 %v998, %v999
        %v1001 = vsel %vm994, %v997, %v1000
        %v1002 = vrot.slane %v444, 2
        %v1003 = vrot.slane %v446, 3
        %v1004 = vor.u32 %v1002, %v1003
        %v1005 = vrot.slane %v749, 2
        %v1006 = vrot.slane %v451, 3
        %v1007 = vor.u32 %v1005, %v1006
        %v1008 = vsel %vm994, %v1004, %v1007
        %v1009 = vrot.slane %v456, 2
        %v1010 = vrot.slane %v458, 3
        %v1011 = vor.u32 %v1009, %v1010
        %v1012 = vrot.slane %v758, 2
        %v1013 = vrot.slane %v463, 3
        %v1014 = vor.u32 %v1012, %v1013
        %v1015 = vsel %vm994, %v1011, %v1014
        %v1016 = vrot.slane %v468, 2
        %v1017 = vrot.slane %v470, 3
        %v1018 = vor.u32 %v1016, %v1017
        %v1019 = vrot.slane %v767, 2
        %v1020 = vrot.slane %v475, 3
        %v1021 = vor.u32 %v1019, %v1020
        %v1022 = vsel %vm994, %v1018, %v1021
        %v1023 = vrot.slane %v480, 2
        %v1024 = vrot.slane %v482, 3
        %v1025 = vor.u32 %v1023, %v1024
        %v1026 = vrot.slane %v776, 2
        %v1027 = vrot.slane %v487, 3
        %v1028 = vor.u32 %v1026, %v1027
        %v1029 = vsel %vm994, %v1025, %v1028
        %v1030 = vrot.slane %v492, 2
        %v1031 = vrot.slane %v494, 3
        %v1032 = vor.u32 %v1030, %v1031
        %v1033 = vrot.slane %v785, 2
        %v1034 = vrot.slane %v499, 3
        %v1035 = vor.u32 %v1033, %v1034
        %v1036 = vsel %vm994, %v1032, %v1035
        %v1037 = vrot.slane %v504, 2
        %v1038 = vrot.slane %v506, 3
        %v1039 = vor.u32 %v1037, %v1038
        %v1040 = vrot.slane %v794, 2
        %v1041 = vrot.slane %v511, 3
        %v1042 = vor.u32 %v1040, %v1041
        %v1043 = vsel %vm994, %v1039, %v1042
        %v1044 = vrot.slane %v516, 2
        %v1045 = vrot.slane %v518, 3
        %v1046 = vor.u32 %v1044, %v1045
        %v1047 = vrot.slane %v803, 2
        %v1048 = vrot.slane %v523, 3
        %v1049 = vor.u32 %v1047, %v1048
        %v1050 = vsel %vm994, %v1046, %v1049
        %v1051 = vrot.slane %v528, 2
        %v1052 = vrot.slane %v530, 3
        %v1053 = vor.u32 %v1051, %v1052
        %v1054 = vrot.slane %v812, 2
        %v1055 = vrot.slane %v535, 3
        %v1056 = vor.u32 %v1054, %v1055
        %v1057 = vsel %vm994, %v1053, %v1056
        %v1058 = vrot.slane %v540, 2
        %v1059 = vrot.slane %v542, 3
        %v1060 = vor.u32 %v1058, %v1059
        %v1061 = vrot.slane %v821, 2
        %v1062 = vrot.slane %v547, 3
        %v1063 = vor.u32 %v1061, %v1062
        %v1064 = vsel %vm994, %v1060, %v1063
        %v1065 = vrot.slane %v552, 2
        %v1066 = vrot.slane %v554, 3
        %v1067 = vor.u32 %v1065, %v1066
        %v1068 = vrot.slane %v830, 2
        %v1069 = vrot.slane %v559, 3
        %v1070 = vor.u32 %v1068, %v1069
        %v1071 = vsel %vm994, %v1067, %v1070
        %v1072 = vrot.slane %v564, 2
        %v1073 = vrot.slane %v566, 3
        %v1074 = vor.u32 %v1072, %v1073
        %v1075 = vrot.slane %v839, 2
        %v1076 = vrot.slane %v571, 3
        %v1077 = vor.u32 %v1075, %v1076
        %v1078 = vsel %vm994, %v1074, %v1077
        %v1079 = vrot.slane %v576, 2
        %v1080 = vrot.slane %v578, 3
        %v1081 = vor.u32 %v1079, %v1080
        %v1082 = vrot.slane %v848, 2
        %v1083 = vrot.slane %v583, 3
        %v1084 = vor.u32 %v1082, %v1083
        %v1085 = vsel %vm994, %v1081, %v1084
        %v1086 = vrot.slane %v588, 2
        %v1087 = vrot.slane %v590, 3
        %v1088 = vor.u32 %v1086, %v1087
        %v1089 = vrot.slane %v857, 2
        %v1090 = vrot.slane %v595, 3
        %v1091 = vor.u32 %v1089, %v1090
        %v1092 = vsel %vm994, %v1088, %v1091
        %v1093 = vrot.slane %v600, 2
        %v1094 = vrot.slane %v602, 3
        %v1095 = vor.u32 %v1093, %v1094
        %v1096 = vrot.slane %v866, 2
        %v1097 = vrot.slane %v607, 3
        %v1098 = vor.u32 %v1096, %v1097
        %v1099 = vsel %vm994, %v1095, %v1098
        %v1100 = vrot.slane %v612, 2
        %v1101 = vrot.slane %v614, 3
        %v1102 = vor.u32 %v1100, %v1101
        %v1103 = vrot.slane %v875, 2
        %v1104 = vrot.slane %v619, 3
        %v1105 = vor.u32 %v1103, %v1104
        %v1106 = vsel %vm994, %v1102, %v1105
        %1107 = vrot.lane.b32.xlu0 %v1001, 20
        %v1108 = vpop.permute.xlu0 %1107
        %1109 = vrot.lane.b32.xlu0 %v1008, 20
        %v1110 = vpop.permute.xlu0 %1109
        %1111 = vrot.lane.b32.xlu0 %v1015, 20
        %v1112 = vpop.permute.xlu0 %1111
        %1113 = vrot.lane.b32.xlu0 %v1022, 20
        %v1114 = vpop.permute.xlu0 %1113
        %1115 = vrot.lane.b32.xlu0 %v1029, 20
        %v1116 = vpop.permute.xlu0 %1115
        %1117 = vrot.lane.b32.xlu0 %v1036, 20
        %v1118 = vpop.permute.xlu0 %1117
        %1119 = vrot.lane.b32.xlu0 %v1043, 20
        %v1120 = vpop.permute.xlu0 %1119
        %1121 = vrot.lane.b32.xlu0 %v1050, 20
        %v1122 = vpop.permute.xlu0 %1121
        %1123 = vrot.lane.b32.xlu0 %v1057, 20
        %v1124 = vpop.permute.xlu0 %1123
        %1125 = vrot.lane.b32.xlu0 %v1064, 20
        %v1126 = vpop.permute.xlu0 %1125
        %1127 = vrot.lane.b32.xlu0 %v1071, 20
        %v1128 = vpop.permute.xlu0 %1127
        %1129 = vrot.lane.b32.xlu0 %v1078, 20
        %v1130 = vpop.permute.xlu0 %1129
        %1131 = vrot.lane.b32.xlu0 %v1085, 20
        %v1132 = vpop.permute.xlu0 %1131
        %1133 = vrot.lane.b32.xlu0 %v1092, 20
        %v1134 = vpop.permute.xlu0 %1133
        %1135 = vrot.lane.b32.xlu0 %v1099, 20
        %v1136 = vpop.permute.xlu0 %1135
        %1137 = vrot.lane.b32.xlu0 %v1106, 20
        %v1138 = vpop.permute.xlu0 %1137
        %vm1139 = vcmask 1044480
        %v1140 = vrot.slane %v366, 3
        %v1141 = vrot.slane %v414, 3
        %v1142 = vsel %vm1139, %v1140, %v1141
        %v1143 = vrot.slane %v367, 3
        %v1144 = vrot.slane %v415, 3
        %v1145 = vsel %vm1139, %v1143, %v1144
        %v1146 = vrot.slane %v368, 3
        %v1147 = vrot.slane %v416, 3
        %v1148 = vsel %vm1139, %v1146, %v1147
        %v1149 = vrot.slane %v369, 3
        %v1150 = vrot.slane %v417, 3
        %v1151 = vsel %vm1139, %v1149, %v1150
        %v1152 = vrot.slane %v370, 3
        %v1153 = vrot.slane %v418, 3
        %v1154 = vsel %vm1139, %v1152, %v1153
        %v1155 = vrot.slane %v371, 3
        %v1156 = vrot.slane %v419, 3
        %v1157 = vsel %vm1139, %v1155, %v1156
        %v1158 = vrot.slane %v372, 3
        %v1159 = vrot.slane %v420, 3
        %v1160 = vsel %vm1139, %v1158, %v1159
        %v1161 = vrot.slane %v373, 3
        %v1162 = vrot.slane %v421, 3
        %v1163 = vsel %vm1139, %v1161, %v1162
        %v1164 = vrot.slane %v374, 3
        %v1165 = vrot.slane %v422, 3
        %v1166 = vsel %vm1139, %v1164, %v1165
        %v1167 = vrot.slane %v375, 3
        %v1168 = vrot.slane %v423, 3
        %v1169 = vsel %vm1139, %v1167, %v1168
        %v1170 = vrot.slane %v376, 3
        %v1171 = vrot.slane %v424, 3
        %v1172 = vsel %vm1139, %v1170, %v1171
        %v1173 = vrot.slane %v377, 3
        %v1174 = vrot.slane %v425, 3
        %v1175 = vsel %vm1139, %v1173, %v1174
        %v1176 = vrot.slane %v378, 3
        %v1177 = vrot.slane %v426, 3
        %v1178 = vsel %vm1139, %v1176, %v1177
        %v1179 = vrot.slane %v379, 3
        %v1180 = vrot.slane %v427, 3
        %v1181 = vsel %vm1139, %v1179, %v1180
        %v1182 = vrot.slane %v380, 3
        %v1183 = vrot.slane %v428, 3
        %v1184 = vsel %vm1139, %v1182, %v1183
        %v1185 = vrot.slane %v381, 3
        %v1186 = vrot.slane %v429, 3
        %v1187 = vsel %vm1139, %v1185, %v1186
        %1188 = vrot.lane.b32.xlu0 %v1142, 24
        %v1189 = vpop.permute.xlu0 %1188
        %1190 = vrot.lane.b32.xlu0 %v1145, 24
        %v1191 = vpop.permute.xlu0 %1190
        %1192 = vrot.lane.b32.xlu0 %v1148, 24
        %v1193 = vpop.permute.xlu0 %1192
        %1194 = vrot.lane.b32.xlu0 %v1151, 24
        %v1195 = vpop.permute.xlu0 %1194
        %1196 = vrot.lane.b32.xlu0 %v1154, 24
        %v1197 = vpop.permute.xlu0 %1196
        %1198 = vrot.lane.b32.xlu0 %v1157, 24
        %v1199 = vpop.permute.xlu0 %1198
        %1200 = vrot.lane.b32.xlu0 %v1160, 24
        %v1201 = vpop.permute.xlu0 %1200
        %1202 = vrot.lane.b32.xlu0 %v1163, 24
        %v1203 = vpop.permute.xlu0 %1202
        %1204 = vrot.lane.b32.xlu0 %v1166, 24
        %v1205 = vpop.permute.xlu0 %1204
        %1206 = vrot.lane.b32.xlu0 %v1169, 24
        %v1207 = vpop.permute.xlu0 %1206
        %1208 = vrot.lane.b32.xlu0 %v1172, 24
        %v1209 = vpop.permute.xlu0 %1208
        %1210 = vrot.lane.b32.xlu0 %v1175, 24
        %v1211 = vpop.permute.xlu0 %1210
        %1212 = vrot.lane.b32.xlu0 %v1178, 24
        %v1213 = vpop.permute.xlu0 %1212
        %1214 = vrot.lane.b32.xlu0 %v1181, 24
        %v1215 = vpop.permute.xlu0 %1214
        %1216 = vrot.lane.b32.xlu0 %v1184, 24
        %v1217 = vpop.permute.xlu0 %1216
        %1218 = vrot.lane.b32.xlu0 %v1187, 24
        %v1219 = vpop.permute.xlu0 %1218
        %v1222 = vunpack.c.l.b16 %v284
        %v1223 = vunpack.c.l.b16 %v285
        %v1224 = vpack.c.b16 %v1223, %v1222
        %1225 = vrot.lane.b32.xlu0 %v367, 28
        %v1226 = vpop.permute.xlu0 %1225
        %1227 = vrot.lane.b32.xlu0 %v368, 28
        %v1228 = vpop.permute.xlu0 %1227
        %1229 = vrot.lane.b32.xlu0 %v369, 28
        %v1230 = vpop.permute.xlu0 %1229
        %1231 = vrot.lane.b32.xlu0 %v370, 28
        %v1232 = vpop.permute.xlu0 %1231
        %1233 = vrot.lane.b32.xlu0 %v371, 28
        %v1234 = vpop.permute.xlu0 %1233
        %1235 = vrot.lane.b32.xlu0 %v372, 28
        %v1236 = vpop.permute.xlu0 %1235
        %1237 = vrot.lane.b32.xlu0 %v373, 28
        %v1238 = vpop.permute.xlu0 %1237
        %1239 = vrot.lane.b32.xlu0 %v374, 28
        %v1240 = vpop.permute.xlu0 %1239
        %1241 = vrot.lane.b32.xlu0 %v375, 28
        %v1242 = vpop.permute.xlu0 %1241
        %1243 = vrot.lane.b32.xlu0 %v376, 28
        %v1244 = vpop.permute.xlu0 %1243
        %1245 = vrot.lane.b32.xlu0 %v377, 28
        %v1246 = vpop.permute.xlu0 %1245
        %1247 = vrot.lane.b32.xlu0 %v378, 28
        %v1248 = vpop.permute.xlu0 %1247
        %1249 = vrot.lane.b32.xlu0 %v379, 28
        %v1250 = vpop.permute.xlu0 %1249
        %1251 = vrot.lane.b32.xlu0 %v380, 28
        %v1252 = vpop.permute.xlu0 %1251
        %1253 = vrot.lane.b32.xlu0 %v381, 28
        %v1254 = vpop.permute.xlu0 %1253
        %1255 = vrot.lane.b32.xlu0 %v1224, 28
        %v1256 = vpop.permute.xlu0 %1255
        %v1258 = vunpack.c.l.b16 %v286
        %v1259 = vpack.c.b16 %v1258, %v1258
        %v1261 = vshrl.u32 %v1224, 16
        %v1263 = vshll.u32 %v1224, 16
        %v1265 = vrot.slane %v1263, 1
        %v1266 = vor.u32 %v1261, %v1265
        %v1268 = vshll.u32 %v1259, 16
        %v1270 = vrot.slane %v1268, 1
        %v1271 = vsel %vm430, %v1266, %v1270
        %1272 = vrot.lane.b32.xlu0 %v454, 32
        %v1273 = vpop.permute.xlu0 %1272
        %1274 = vrot.lane.b32.xlu0 %v466, 32
        %v1275 = vpop.permute.xlu0 %1274
        %1276 = vrot.lane.b32.xlu0 %v478, 32
        %v1277 = vpop.permute.xlu0 %1276
        %1278 = vrot.lane.b32.xlu0 %v490, 32
        %v1279 = vpop.permute.xlu0 %1278
        %1280 = vrot.lane.b32.xlu0 %v502, 32
        %v1281 = vpop.permute.xlu0 %1280
        %1282 = vrot.lane.b32.xlu0 %v514, 32
        %v1283 = vpop.permute.xlu0 %1282
        %1284 = vrot.lane.b32.xlu0 %v526, 32
        %v1285 = vpop.permute.xlu0 %1284
        %1286 = vrot.lane.b32.xlu0 %v538, 32
        %v1287 = vpop.permute.xlu0 %1286
        %1288 = vrot.lane.b32.xlu0 %v550, 32
        %v1289 = vpop.permute.xlu0 %1288
        %1290 = vrot.lane.b32.xlu0 %v562, 32
        %v1291 = vpop.permute.xlu0 %1290
        %1292 = vrot.lane.b32.xlu0 %v574, 32
        %v1293 = vpop.permute.xlu0 %1292
        %1294 = vrot.lane.b32.xlu0 %v586, 32
        %v1295 = vpop.permute.xlu0 %1294
        %1296 = vrot.lane.b32.xlu0 %v598, 32
        %v1297 = vpop.permute.xlu0 %1296
        %1298 = vrot.lane.b32.xlu0 %v610, 32
        %v1299 = vpop.permute.xlu0 %1298
        %1300 = vrot.lane.b32.xlu0 %v622, 32
        %v1301 = vpop.permute.xlu0 %1300
        %1302 = vrot.lane.b32.xlu0 %v1271, 32
        %v1303 = vpop.permute.xlu0 %1302
        %v1304 = vrot.slane %v1224, 1
        %v1305 = vrot.slane %v1259, 1
        %v1306 = vsel %vm655, %v1304, %v1305
        %1307 = vrot.lane.b32.xlu0 %v661, 36
        %v1308 = vpop.permute.xlu0 %1307
        %1309 = vrot.lane.b32.xlu0 %v664, 36
        %v1310 = vpop.permute.xlu0 %1309
        %1311 = vrot.lane.b32.xlu0 %v667, 36
        %v1312 = vpop.permute.xlu0 %1311
        %1313 = vrot.lane.b32.xlu0 %v670, 36
        %v1314 = vpop.permute.xlu0 %1313
        %1315 = vrot.lane.b32.xlu0 %v673, 36
        %v1316 = vpop.permute.xlu0 %1315
        %1317 = vrot.lane.b32.xlu0 %v676, 36
        %v1318 = vpop.permute.xlu0 %1317
        %1319 = vrot.lane.b32.xlu0 %v679, 36
        %v1320 = vpop.permute.xlu0 %1319
        %1321 = vrot.lane.b32.xlu0 %v682, 36
        %v1322 = vpop.permute.xlu0 %1321
        %1323 = vrot.lane.b32.xlu0 %v685, 36
        %v1324 = vpop.permute.xlu0 %1323
        %1325 = vrot.lane.b32.xlu0 %v688, 36
        %v1326 = vpop.permute.xlu0 %1325
        %1327 = vrot.lane.b32.xlu0 %v691, 36
        %v1328 = vpop.permute.xlu0 %1327
        %1329 = vrot.lane.b32.xlu0 %v694, 36
        %v1330 = vpop.permute.xlu0 %1329
        %1331 = vrot.lane.b32.xlu0 %v697, 36
        %v1332 = vpop.permute.xlu0 %1331
        %1333 = vrot.lane.b32.xlu0 %v700, 36
        %v1334 = vpop.permute.xlu0 %1333
        %1335 = vrot.lane.b32.xlu0 %v703, 36
        %v1336 = vpop.permute.xlu0 %1335
        %1337 = vrot.lane.b32.xlu0 %v1306, 36
        %v1338 = vpop.permute.xlu0 %1337
        %v1339 = vrot.slane %v1261, 1
        %v1340 = vrot.slane %v1263, 2
        %v1341 = vor.u32 %v1339, %v1340
        %v1342 = vshrl.u32 %v1259, 16
        %v1344 = vrot.slane %v1342, 1
        %v1345 = vrot.slane %v1268, 2
        %v1346 = vor.u32 %v1344, %v1345
        %v1347 = vsel %vm736, %v1341, %v1346
        %1348 = vrot.lane.b32.xlu0 %v754, 40
        %v1349 = vpop.permute.xlu0 %1348
        %1350 = vrot.lane.b32.xlu0 %v763, 40
        %v1351 = vpop.permute.xlu0 %1350
        %1352 = vrot.lane.b32.xlu0 %v772, 40
        %v1353 = vpop.permute.xlu0 %1352
        %1354 = vrot.lane.b32.xlu0 %v781, 40
        %v1355 = vpop.permute.xlu0 %1354
        %1356 = vrot.lane.b32.xlu0 %v790, 40
        %v1357 = vpop.permute.xlu0 %1356
        %1358 = vrot.lane.b32.xlu0 %v799, 40
        %v1359 = vpop.permute.xlu0 %1358
        %1360 = vrot.lane.b32.xlu0 %v808, 40
        %v1361 = vpop.permute.xlu0 %1360
        %1362 = vrot.lane.b32.xlu0 %v817, 40
        %v1363 = vpop.permute.xlu0 %1362
        %1364 = vrot.lane.b32.xlu0 %v826, 40
        %v1365 = vpop.permute.xlu0 %1364
        %1366 = vrot.lane.b32.xlu0 %v835, 40
        %v1367 = vpop.permute.xlu0 %1366
        %1368 = vrot.lane.b32.xlu0 %v844, 40
        %v1369 = vpop.permute.xlu0 %1368
        %1370 = vrot.lane.b32.xlu0 %v853, 40
        %v1371 = vpop.permute.xlu0 %1370
        %1372 = vrot.lane.b32.xlu0 %v862, 40
        %v1373 = vpop.permute.xlu0 %1372
        %1374 = vrot.lane.b32.xlu0 %v871, 40
        %v1375 = vpop.permute.xlu0 %1374
        %1376 = vrot.lane.b32.xlu0 %v880, 40
        %v1377 = vpop.permute.xlu0 %1376
        %1378 = vrot.lane.b32.xlu0 %v1347, 40
        %v1379 = vpop.permute.xlu0 %1378
        %v1380 = vrot.slane %v1224, 2
        %v1381 = vrot.slane %v1259, 2
        %v1382 = vsel %vm913, %v1380, %v1381
        %1383 = vrot.lane.b32.xlu0 %v919, 44
        %v1384 = vpop.permute.xlu0 %1383
        %1385 = vrot.lane.b32.xlu0 %v922, 44
        %v1386 = vpop.permute.xlu0 %1385
        %1387 = vrot.lane.b32.xlu0 %v925, 44
        %v1388 = vpop.permute.xlu0 %1387
        %1389 = vrot.lane.b32.xlu0 %v928, 44
        %v1390 = vpop.permute.xlu0 %1389
        %1391 = vrot.lane.b32.xlu0 %v931, 44
        %v1392 = vpop.permute.xlu0 %1391
        %1393 = vrot.lane.b32.xlu0 %v934, 44
        %v1394 = vpop.permute.xlu0 %1393
        %1395 = vrot.lane.b32.xlu0 %v937, 44
        %v1396 = vpop.permute.xlu0 %1395
        %1397 = vrot.lane.b32.xlu0 %v940, 44
        %v1398 = vpop.permute.xlu0 %1397
        %1399 = vrot.lane.b32.xlu0 %v943, 44
        %v1400 = vpop.permute.xlu0 %1399
        %1401 = vrot.lane.b32.xlu0 %v946, 44
        %v1402 = vpop.permute.xlu0 %1401
        %1403 = vrot.lane.b32.xlu0 %v949, 44
        %v1404 = vpop.permute.xlu0 %1403
        %1405 = vrot.lane.b32.xlu0 %v952, 44
        %v1406 = vpop.permute.xlu0 %1405
        %1407 = vrot.lane.b32.xlu0 %v955, 44
        %v1408 = vpop.permute.xlu0 %1407
        %1409 = vrot.lane.b32.xlu0 %v958, 44
        %v1410 = vpop.permute.xlu0 %1409
        %1411 = vrot.lane.b32.xlu0 %v961, 44
        %v1412 = vpop.permute.xlu0 %1411
        %1413 = vrot.lane.b32.xlu0 %v1382, 44
        %v1414 = vpop.permute.xlu0 %1413
        %v1415 = vrot.slane %v1261, 2
        %v1416 = vrot.slane %v1263, 3
        %v1417 = vor.u32 %v1415, %v1416
        %v1418 = vrot.slane %v1342, 2
        %v1419 = vrot.slane %v1268, 3
        %v1420 = vor.u32 %v1418, %v1419
        %v1421 = vsel %vm994, %v1417, %v1420
        %1422 = vrot.lane.b32.xlu0 %v1008, 48
        %v1423 = vpop.permute.xlu0 %1422
        %1424 = vrot.lane.b32.xlu0 %v1015, 48
        %v1425 = vpop.permute.xlu0 %1424
        %1426 = vrot.lane.b32.xlu0 %v1022, 48
        %v1427 = vpop.permute.xlu0 %1426
        %1428 = vrot.lane.b32.xlu0 %v1029, 48
        %v1429 = vpop.permute.xlu0 %1428
        %1430 = vrot.lane.b32.xlu0 %v1036, 48
        %v1431 = vpop.permute.xlu0 %1430
        %1432 = vrot.lane.b32.xlu0 %v1043, 48
        %v1433 = vpop.permute.xlu0 %1432
        %1434 = vrot.lane.b32.xlu0 %v1050, 48
        %v1435 = vpop.permute.xlu0 %1434
        %1436 = vrot.lane.b32.xlu0 %v1057, 48
        %v1437 = vpop.permute.xlu0 %1436
        %1438 = vrot.lane.b32.xlu0 %v1064, 48
        %v1439 = vpop.permute.xlu0 %1438
        %1440 = vrot.lane.b32.xlu0 %v1071, 48
        %v1441 = vpop.permute.xlu0 %1440
        %1442 = vrot.lane.b32.xlu0 %v1078, 48
        %v1443 = vpop.permute.xlu0 %1442
        %1444 = vrot.lane.b32.xlu0 %v1085, 48
        %v1445 = vpop.permute.xlu0 %1444
        %1446 = vrot.lane.b32.xlu0 %v1092, 48
        %v1447 = vpop.permute.xlu0 %1446
        %1448 = vrot.lane.b32.xlu0 %v1099, 48
        %v1449 = vpop.permute.xlu0 %1448
        %1450 = vrot.lane.b32.xlu0 %v1106, 48
        %v1451 = vpop.permute.xlu0 %1450
        %1452 = vrot.lane.b32.xlu0 %v1421, 48
        %v1453 = vpop.permute.xlu0 %1452
        %v1454 = vrot.slane %v1224, 3
        %v1455 = vrot.slane %v1259, 3
        %v1456 = vsel %vm1139, %v1454, %v1455
        %1457 = vrot.lane.b32.xlu0 %v1145, 52
        %v1458 = vpop.permute.xlu0 %1457
        %1459 = vrot.lane.b32.xlu0 %v1148, 52
        %v1460 = vpop.permute.xlu0 %1459
        %1461 = vrot.lane.b32.xlu0 %v1151, 52
        %v1462 = vpop.permute.xlu0 %1461
        %1463 = vrot.lane.b32.xlu0 %v1154, 52
        %v1464 = vpop.permute.xlu0 %1463
        %1465 = vrot.lane.b32.xlu0 %v1157, 52
        %v1466 = vpop.permute.xlu0 %1465
        %1467 = vrot.lane.b32.xlu0 %v1160, 52
        %v1468 = vpop.permute.xlu0 %1467
        %1469 = vrot.lane.b32.xlu0 %v1163, 52
        %v1470 = vpop.permute.xlu0 %1469
        %1471 = vrot.lane.b32.xlu0 %v1166, 52
        %v1472 = vpop.permute.xlu0 %1471
        %1473 = vrot.lane.b32.xlu0 %v1169, 52
        %v1474 = vpop.permute.xlu0 %1473
        %1475 = vrot.lane.b32.xlu0 %v1172, 52
        %v1476 = vpop.permute.xlu0 %1475
        %1477 = vrot.lane.b32.xlu0 %v1175, 52
        %v1478 = vpop.permute.xlu0 %1477
        %1479 = vrot.lane.b32.xlu0 %v1178, 52
        %v1480 = vpop.permute.xlu0 %1479
        %1481 = vrot.lane.b32.xlu0 %v1181, 52
        %v1482 = vpop.permute.xlu0 %1481
        %1483 = vrot.lane.b32.xlu0 %v1184, 52
        %v1484 = vpop.permute.xlu0 %1483
        %1485 = vrot.lane.b32.xlu0 %v1187, 52
        %v1486 = vpop.permute.xlu0 %1485
        %1487 = vrot.lane.b32.xlu0 %v1456, 52
        %v1488 = vpop.permute.xlu0 %1487
        %v1491 = vunpack.c.l.b16 %v287
        %v1492 = vunpack.c.l.b16 %v288
        %v1493 = vpack.c.b16 %v1492, %v1491
        %1494 = vrot.lane.b32.xlu0 %v368, 56
        %v1495 = vpop.permute.xlu0 %1494
        %1496 = vrot.lane.b32.xlu0 %v369, 56
        %v1497 = vpop.permute.xlu0 %1496
        %1498 = vrot.lane.b32.xlu0 %v370, 56
        %v1499 = vpop.permute.xlu0 %1498
        %1500 = vrot.lane.b32.xlu0 %v371, 56
        %v1501 = vpop.permute.xlu0 %1500
        %1502 = vrot.lane.b32.xlu0 %v372, 56
        %v1503 = vpop.permute.xlu0 %1502
        %1504 = vrot.lane.b32.xlu0 %v373, 56
        %v1505 = vpop.permute.xlu0 %1504
        %1506 = vrot.lane.b32.xlu0 %v374, 56
        %v1507 = vpop.permute.xlu0 %1506
        %1508 = vrot.lane.b32.xlu0 %v375, 56
        %v1509 = vpop.permute.xlu0 %1508
        %1510 = vrot.lane.b32.xlu0 %v376, 56
        %v1511 = vpop.permute.xlu0 %1510
        %1512 = vrot.lane.b32.xlu0 %v377, 56
        %v1513 = vpop.permute.xlu0 %1512
        %1514 = vrot.lane.b32.xlu0 %v378, 56
        %v1515 = vpop.permute.xlu0 %1514
        %1516 = vrot.lane.b32.xlu0 %v379, 56
        %v1517 = vpop.permute.xlu0 %1516
        %1518 = vrot.lane.b32.xlu0 %v380, 56
        %v1519 = vpop.permute.xlu0 %1518
        %1520 = vrot.lane.b32.xlu0 %v381, 56
        %v1521 = vpop.permute.xlu0 %1520
        %1522 = vrot.lane.b32.xlu0 %v1224, 56
        %v1523 = vpop.permute.xlu0 %1522
        %1524 = vrot.lane.b32.xlu0 %v1493, 56
        %v1525 = vpop.permute.xlu0 %1524
        %v1527 = vunpack.c.l.b16 %v289
        %v1528 = vpack.c.b16 %v1527, %v1527
        %v1530 = vshrl.u32 %v1493, 16
        %v1532 = vshll.u32 %v1493, 16
        %v1534 = vrot.slane %v1532, 1
        %v1535 = vor.u32 %v1530, %v1534
        %v1537 = vshll.u32 %v1528, 16
        %v1539 = vrot.slane %v1537, 1
        %v1540 = vsel %vm430, %v1535, %v1539
        %1541 = vrot.lane.b32.xlu0 %v466, 60
        %v1542 = vpop.permute.xlu0 %1541
        %1543 = vrot.lane.b32.xlu0 %v478, 60
        %v1544 = vpop.permute.xlu0 %1543
        %1545 = vrot.lane.b32.xlu0 %v490, 60
        %v1546 = vpop.permute.xlu0 %1545
        %1547 = vrot.lane.b32.xlu0 %v502, 60
        %v1548 = vpop.permute.xlu0 %1547
        %1549 = vrot.lane.b32.xlu0 %v514, 60
        %v1550 = vpop.permute.xlu0 %1549
        %1551 = vrot.lane.b32.xlu0 %v526, 60
        %v1552 = vpop.permute.xlu0 %1551
        %1553 = vrot.lane.b32.xlu0 %v538, 60
        %v1554 = vpop.permute.xlu0 %1553
        %1555 = vrot.lane.b32.xlu0 %v550, 60
        %v1556 = vpop.permute.xlu0 %1555
        %1557 = vrot.lane.b32.xlu0 %v562, 60
        %v1558 = vpop.permute.xlu0 %1557
        %1559 = vrot.lane.b32.xlu0 %v574, 60
        %v1560 = vpop.permute.xlu0 %1559
        %1561 = vrot.lane.b32.xlu0 %v586, 60
        %v1562 = vpop.permute.xlu0 %1561
        %1563 = vrot.lane.b32.xlu0 %v598, 60
        %v1564 = vpop.permute.xlu0 %1563
        %1565 = vrot.lane.b32.xlu0 %v610, 60
        %v1566 = vpop.permute.xlu0 %1565
        %1567 = vrot.lane.b32.xlu0 %v622, 60
        %v1568 = vpop.permute.xlu0 %1567
        %1569 = vrot.lane.b32.xlu0 %v1271, 60
        %v1570 = vpop.permute.xlu0 %1569
        %1571 = vrot.lane.b32.xlu0 %v1540, 60
        %v1572 = vpop.permute.xlu0 %1571
        %vm1573 = vcmask 31744
        %v1575 = vsel %vm1573, %v366, %v624
        %v1577 = vsel %vm1573, %v367, %v626
        %v1579 = vsel %vm1573, %v368, %v628
        %v1581 = vsel %vm1573, %v369, %v630
        %v1583 = vsel %vm1573, %v370, %v632
        %v1585 = vsel %vm1573, %v371, %v634
        %v1587 = vsel %vm1573, %v372, %v636
        %v1589 = vsel %vm1573, %v373, %v638
        %v1591 = vsel %vm1573, %v374, %v640
        %v1593 = vsel %vm1573, %v375, %v642
        %v1595 = vsel %vm1573, %v376, %v644
        %v1597 = vsel %vm1573, %v377, %v646
        %v1599 = vsel %vm1573, %v378, %v648
        %v1601 = vsel %vm1573, %v379, %v650
        %v1603 = vsel %vm1573, %v380, %v652
        %v1605 = vsel %vm1573, %v381, %v654
        %vm1606 = vcmask 64512
        %v1608 = vsel %vm1606, %v1575, %v705
        %v1610 = vsel %vm1606, %v1577, %v707
        %v1612 = vsel %vm1606, %v1579, %v709
        %v1614 = vsel %vm1606, %v1581, %v711
        %v1616 = vsel %vm1606, %v1583, %v713
        %v1618 = vsel %vm1606, %v1585, %v715
        %v1620 = vsel %vm1606, %v1587, %v717
        %v1622 = vsel %vm1606, %v1589, %v719
        %v1624 = vsel %vm1606, %v1591, %v721
        %v1626 = vsel %vm1606, %v1593, %v723
        %v1628 = vsel %vm1606, %v1595, %v725
        %v1630 = vsel %vm1606, %v1597, %v727
        %v1632 = vsel %vm1606, %v1599, %v729
        %v1634 = vsel %vm1606, %v1601, %v731
        %v1636 = vsel %vm1606, %v1603, %v733
        %v1638 = vsel %vm1606, %v1605, %v735
        %vm1639 = vcmask 97280
        %v1641 = vsel %vm1639, %v1608, %v882
        %v1643 = vsel %vm1639, %v1610, %v884
        %v1645 = vsel %vm1639, %v1612, %v886
        %v1647 = vsel %vm1639, %v1614, %v888
        %v1649 = vsel %vm1639, %v1616, %v890
        %v1651 = vsel %vm1639, %v1618, %v892
        %v1653 = vsel %vm1639, %v1620, %v894
        %v1655 = vsel %vm1639, %v1622, %v896
        %v1657 = vsel %vm1639, %v1624, %v898
        %v1659 = vsel %vm1639, %v1626, %v900
        %v1661 = vsel %vm1639, %v1628, %v902
        %v1663 = vsel %vm1639, %v1630, %v904
        %v1665 = vsel %vm1639, %v1632, %v906
        %v1667 = vsel %vm1639, %v1634, %v908
        %v1669 = vsel %vm1639, %v1636, %v910
        %v1671 = vsel %vm1639, %v1638, %v912
        %vm1672 = vcmask 130048
        %v1674 = vsel %vm1672, %v1641, %v963
        %v1676 = vsel %vm1672, %v1643, %v965
        %v1678 = vsel %vm1672, %v1645, %v967
        %v1680 = vsel %vm1672, %v1647, %v969
        %v1682 = vsel %vm1672, %v1649, %v971
        %v1684 = vsel %vm1672, %v1651, %v973
        %v1686 = vsel %vm1672, %v1653, %v975
        %v1688 = vsel %vm1672, %v1655, %v977
        %v1690 = vsel %vm1672, %v1657, %v979
        %v1692 = vsel %vm1672, %v1659, %v981
        %v1694 = vsel %vm1672, %v1661, %v983
        %v1696 = vsel %vm1672, %v1663, %v985
        %v1698 = vsel %vm1672, %v1665, %v987
        %v1700 = vsel %vm1672, %v1667, %v989
        %v1702 = vsel %vm1672, %v1669, %v991
        %v1704 = vsel %vm1672, %v1671, %v993
        %vm1705 = vcmask 162816
        %v1707 = vsel %vm1705, %v1674, %v1108
        %v1709 = vsel %vm1705, %v1676, %v1110
        %v1711 = vsel %vm1705, %v1678, %v1112
        %v1713 = vsel %vm1705, %v1680, %v1114
        %v1715 = vsel %vm1705, %v1682, %v1116
        %v1717 = vsel %vm1705, %v1684, %v1118
        %v1719 = vsel %vm1705, %v1686, %v1120
        %v1721 = vsel %vm1705, %v1688, %v1122
        %v1723 = vsel %vm1705, %v1690, %v1124
        %v1725 = vsel %vm1705, %v1692, %v1126
        %v1727 = vsel %vm1705, %v1694, %v1128
        %v1729 = vsel %vm1705, %v1696, %v1130
        %v1731 = vsel %vm1705, %v1698, %v1132
        %v1733 = vsel %vm1705, %v1700, %v1134
        %v1735 = vsel %vm1705, %v1702, %v1136
        %v1737 = vsel %vm1705, %v1704, %v1138
        %vm1738 = vcmask 195584
        %v1740 = vsel %vm1738, %v1707, %v1189
        %v1742 = vsel %vm1738, %v1709, %v1191
        %v1744 = vsel %vm1738, %v1711, %v1193
        %v1746 = vsel %vm1738, %v1713, %v1195
        %v1748 = vsel %vm1738, %v1715, %v1197
        %v1750 = vsel %vm1738, %v1717, %v1199
        %v1752 = vsel %vm1738, %v1719, %v1201
        %v1754 = vsel %vm1738, %v1721, %v1203
        %v1756 = vsel %vm1738, %v1723, %v1205
        %v1758 = vsel %vm1738, %v1725, %v1207
        %v1760 = vsel %vm1738, %v1727, %v1209
        %v1762 = vsel %vm1738, %v1729, %v1211
        %v1764 = vsel %vm1738, %v1731, %v1213
        %v1766 = vsel %vm1738, %v1733, %v1215
        %v1768 = vsel %vm1738, %v1735, %v1217
        %v1770 = vsel %vm1738, %v1737, %v1219
        %vm1771 = vcmask 228352
        %v1773 = vsel %vm1771, %v1740, %v1226
        %v1775 = vsel %vm1771, %v1742, %v1228
        %v1777 = vsel %vm1771, %v1744, %v1230
        %v1779 = vsel %vm1771, %v1746, %v1232
        %v1781 = vsel %vm1771, %v1748, %v1234
        %v1783 = vsel %vm1771, %v1750, %v1236
        %v1785 = vsel %vm1771, %v1752, %v1238
        %v1787 = vsel %vm1771, %v1754, %v1240
        %v1789 = vsel %vm1771, %v1756, %v1242
        %v1791 = vsel %vm1771, %v1758, %v1244
        %v1793 = vsel %vm1771, %v1760, %v1246
        %v1795 = vsel %vm1771, %v1762, %v1248
        %v1797 = vsel %vm1771, %v1764, %v1250
        %v1799 = vsel %vm1771, %v1766, %v1252
        %v1801 = vsel %vm1771, %v1768, %v1254
        %v1803 = vsel %vm1771, %v1770, %v1256
        %vm1804 = vcmask 261120
        %v1806 = vsel %vm1804, %v1773, %v1273
        %v1808 = vsel %vm1804, %v1775, %v1275
        %v1810 = vsel %vm1804, %v1777, %v1277
        %v1812 = vsel %vm1804, %v1779, %v1279
        %v1814 = vsel %vm1804, %v1781, %v1281
        %v1816 = vsel %vm1804, %v1783, %v1283
        %v1818 = vsel %vm1804, %v1785, %v1285
        %v1820 = vsel %vm1804, %v1787, %v1287
        %v1822 = vsel %vm1804, %v1789, %v1289
        %v1824 = vsel %vm1804, %v1791, %v1291
        %v1826 = vsel %vm1804, %v1793, %v1293
        %v1828 = vsel %vm1804, %v1795, %v1295
        %v1830 = vsel %vm1804, %v1797, %v1297
        %v1832 = vsel %vm1804, %v1799, %v1299
        %v1834 = vsel %vm1804, %v1801, %v1301
        %v1836 = vsel %vm1804, %v1803, %v1303
        %vm1837 = vcmask 293888
        %v1839 = vsel %vm1837, %v1806, %v1308
        %v1841 = vsel %vm1837, %v1808, %v1310
        %v1843 = vsel %vm1837, %v1810, %v1312
        %v1845 = vsel %vm1837, %v1812, %v1314
        %v1847 = vsel %vm1837, %v1814, %v1316
        %v1849 = vsel %vm1837, %v1816, %v1318
        %v1851 = vsel %vm1837, %v1818, %v1320
        %v1853 = vsel %vm1837, %v1820, %v1322
        %v1855 = vsel %vm1837, %v1822, %v1324
        %v1857 = vsel %vm1837, %v1824, %v1326
        %v1859 = vsel %vm1837, %v1826, %v1328
        %v1861 = vsel %vm1837, %v1828, %v1330
        %v1863 = vsel %vm1837, %v1830, %v1332
        %v1865 = vsel %vm1837, %v1832, %v1334
        %v1867 = vsel %vm1837, %v1834, %v1336
        %v1869 = vsel %vm1837, %v1836, %v1338
        %vm1870 = vcmask 326656
        %v1872 = vsel %vm1870, %v1839, %v1349
        %v1874 = vsel %vm1870, %v1841, %v1351
        %v1876 = vsel %vm1870, %v1843, %v1353
        %v1878 = vsel %vm1870, %v1845, %v1355
        %v1880 = vsel %vm1870, %v1847, %v1357
        %v1882 = vsel %vm1870, %v1849, %v1359
        %v1884 = vsel %vm1870, %v1851, %v1361
        %v1886 = vsel %vm1870, %v1853, %v1363
        %v1888 = vsel %vm1870, %v1855, %v1365
        %v1890 = vsel %vm1870, %v1857, %v1367
        %v1892 = vsel %vm1870, %v1859, %v1369
        %v1894 = vsel %vm1870, %v1861, %v1371
        %v1896 = vsel %vm1870, %v1863, %v1373
        %v1898 = vsel %vm1870, %v1865, %v1375
        %v1900 = vsel %vm1870, %v1867, %v1377
        %v1902 = vsel %vm1870, %v1869, %v1379
        %vm1903 = vcmask 359424
        %v1905 = vsel %vm1903, %v1872, %v1384
        %v1907 = vsel %vm1903, %v1874, %v1386
        %v1909 = vsel %vm1903, %v1876, %v1388
        %v1911 = vsel %vm1903, %v1878, %v1390
        %v1913 = vsel %vm1903, %v1880, %v1392
        %v1915 = vsel %vm1903, %v1882, %v1394
        %v1917 = vsel %vm1903, %v1884, %v1396
        %v1919 = vsel %vm1903, %v1886, %v1398
        %v1921 = vsel %vm1903, %v1888, %v1400
        %v1923 = vsel %vm1903, %v1890, %v1402
        %v1925 = vsel %vm1903, %v1892, %v1404
        %v1927 = vsel %vm1903, %v1894, %v1406
        %v1929 = vsel %vm1903, %v1896, %v1408
        %v1931 = vsel %vm1903, %v1898, %v1410
        %v1933 = vsel %vm1903, %v1900, %v1412
        %v1935 = vsel %vm1903, %v1902, %v1414
        %vm1936 = vcmask 392192
        %v1938 = vsel %vm1936, %v1905, %v1423
        %v1940 = vsel %vm1936, %v1907, %v1425
        %v1942 = vsel %vm1936, %v1909, %v1427
        %v1944 = vsel %vm1936, %v1911, %v1429
        %v1946 = vsel %vm1936, %v1913, %v1431
        %v1948 = vsel %vm1936, %v1915, %v1433
        %v1950 = vsel %vm1936, %v1917, %v1435
        %v1952 = vsel %vm1936, %v1919, %v1437
        %v1954 = vsel %vm1936, %v1921, %v1439
        %v1956 = vsel %vm1936, %v1923, %v1441
        %v1958 = vsel %vm1936, %v1925, %v1443
        %v1960 = vsel %vm1936, %v1927, %v1445
        %v1962 = vsel %vm1936, %v1929, %v1447
        %v1964 = vsel %vm1936, %v1931, %v1449
        %v1966 = vsel %vm1936, %v1933, %v1451
        %v1968 = vsel %vm1936, %v1935, %v1453
        %vm1969 = vcmask 424960
        %v1971 = vsel %vm1969, %v1938, %v1458
        %v1973 = vsel %vm1969, %v1940, %v1460
        %v1975 = vsel %vm1969, %v1942, %v1462
        %v1977 = vsel %vm1969, %v1944, %v1464
        %v1979 = vsel %vm1969, %v1946, %v1466
        %v1981 = vsel %vm1969, %v1948, %v1468
        %v1983 = vsel %vm1969, %v1950, %v1470
        %v1985 = vsel %vm1969, %v1952, %v1472
        %v1987 = vsel %vm1969, %v1954, %v1474
        %v1989 = vsel %vm1969, %v1956, %v1476
        %v1991 = vsel %vm1969, %v1958, %v1478
        %v1993 = vsel %vm1969, %v1960, %v1480
        %v1995 = vsel %vm1969, %v1962, %v1482
        %v1997 = vsel %vm1969, %v1964, %v1484
        %v1999 = vsel %vm1969, %v1966, %v1486
        %v2001 = vsel %vm1969, %v1968, %v1488
        %vm2002 = vcmask 457728
        %v2004 = vsel %vm2002, %v1971, %v1495
        %v2006 = vsel %vm2002, %v1973, %v1497
        %v2008 = vsel %vm2002, %v1975, %v1499
        %v2010 = vsel %vm2002, %v1977, %v1501
        %v2012 = vsel %vm2002, %v1979, %v1503
        %v2014 = vsel %vm2002, %v1981, %v1505
        %v2016 = vsel %vm2002, %v1983, %v1507
        %v2018 = vsel %vm2002, %v1985, %v1509
        %v2020 = vsel %vm2002, %v1987, %v1511
        %v2022 = vsel %vm2002, %v1989, %v1513
        %v2024 = vsel %vm2002, %v1991, %v1515
        %v2026 = vsel %vm2002, %v1993, %v1517
        %v2028 = vsel %vm2002, %v1995, %v1519
        %v2030 = vsel %vm2002, %v1997, %v1521
        %v2032 = vsel %vm2002, %v1999, %v1523
        %v2034 = vsel %vm2002, %v2001, %v1525
        %vm2035 = vcmask 490496
        %v2037 = vsel %vm2035, %v2004, %v1542
        %v2039 = vsel %vm2035, %v2006, %v1544
        %v2041 = vsel %vm2035, %v2008, %v1546
        %v2043 = vsel %vm2035, %v2010, %v1548
        %v2045 = vsel %vm2035, %v2012, %v1550
        %v2047 = vsel %vm2035, %v2014, %v1552
        %v2049 = vsel %vm2035, %v2016, %v1554
        %v2051 = vsel %vm2035, %v2018, %v1556
        %v2053 = vsel %vm2035, %v2020, %v1558
        %v2055 = vsel %vm2035, %v2022, %v1560
        %v2057 = vsel %vm2035, %v2024, %v1562
        %v2059 = vsel %vm2035, %v2026, %v1564
        %v2061 = vsel %vm2035, %v2028, %v1566
        %v2063 = vsel %vm2035, %v2030, %v1568
        %v2065 = vsel %vm2035, %v2032, %v1570
        %v2067 = vsel %vm2035, %v2034, %v1572
        %v2068 = vor.u32 %v758, %v465
        %v2069 = vor.u32 %v767, %v477
        %v2070 = vor.u32 %v776, %v489
        %v2071 = vor.u32 %v785, %v501
        %v2072 = vor.u32 %v794, %v513
        %v2073 = vor.u32 %v803, %v525
        %v2074 = vor.u32 %v812, %v537
        %v2075 = vor.u32 %v821, %v549
        %v2076 = vor.u32 %v830, %v561
        %v2077 = vor.u32 %v839, %v573
        %v2078 = vor.u32 %v848, %v585
        %v2079 = vor.u32 %v857, %v597
        %v2080 = vor.u32 %v866, %v609
        %v2081 = vor.u32 %v875, %v621
        %v2082 = vor.u32 %v1342, %v1270
        %v2083 = vshrl.u32 %v1528, 16
        %v2085 = vor.u32 %v2083, %v1539
        %2086 = vrot.lane.b32.xlu0 %v2068, 4
        %v2087 = vpop.permute.xlu0 %2086
        %2088 = vrot.lane.b32.xlu0 %v2069, 4
        %v2089 = vpop.permute.xlu0 %2088
        %2090 = vrot.lane.b32.xlu0 %v2070, 4
        %v2091 = vpop.permute.xlu0 %2090
        %2092 = vrot.lane.b32.xlu0 %v2071, 4
        %v2093 = vpop.permute.xlu0 %2092
        %2094 = vrot.lane.b32.xlu0 %v2072, 4
        %v2095 = vpop.permute.xlu0 %2094
        %2096 = vrot.lane.b32.xlu0 %v2073, 4
        %v2097 = vpop.permute.xlu0 %2096
        %2098 = vrot.lane.b32.xlu0 %v2074, 4
        %v2099 = vpop.permute.xlu0 %2098
        %2100 = vrot.lane.b32.xlu0 %v2075, 4
        %v2101 = vpop.permute.xlu0 %2100
        %2102 = vrot.lane.b32.xlu0 %v2076, 4
        %v2103 = vpop.permute.xlu0 %2102
        %2104 = vrot.lane.b32.xlu0 %v2077, 4
        %v2105 = vpop.permute.xlu0 %2104
        %2106 = vrot.lane.b32.xlu0 %v2078, 4
        %v2107 = vpop.permute.xlu0 %2106
        %2108 = vrot.lane.b32.xlu0 %v2079, 4
        %v2109 = vpop.permute.xlu0 %2108
        %2110 = vrot.lane.b32.xlu0 %v2080, 4
        %v2111 = vpop.permute.xlu0 %2110
        %2112 = vrot.lane.b32.xlu0 %v2081, 4
        %v2113 = vpop.permute.xlu0 %2112
        %2114 = vrot.lane.b32.xlu0 %v1271, 4
        %v2115 = vpop.permute.xlu0 %2114
        %2116 = vrot.lane.b32.xlu0 %v2082, 4
        %v2117 = vpop.permute.xlu0 %2116
        %2118 = vrot.lane.b32.xlu0 %v1540, 4
        %v2119 = vpop.permute.xlu0 %2118
        %2120 = vrot.lane.b32.xlu0 %v2085, 4
        %v2121 = vpop.permute.xlu0 %2120
        %v2122 = vrot.slane %v1493, 1
        %v2123 = vrot.slane %v1528, 1
        %v2124 = vsel %vm655, %v2122, %v2123
        %2125 = vrot.lane.b32.xlu0 %v663, 8
        %v2126 = vpop.permute.xlu0 %2125
        %2127 = vrot.lane.b32.xlu0 %v666, 8
        %v2128 = vpop.permute.xlu0 %2127
        %2129 = vrot.lane.b32.xlu0 %v669, 8
        %v2130 = vpop.permute.xlu0 %2129
        %2131 = vrot.lane.b32.xlu0 %v672, 8
        %v2132 = vpop.permute.xlu0 %2131
        %2133 = vrot.lane.b32.xlu0 %v675, 8
        %v2134 = vpop.permute.xlu0 %2133
        %2135 = vrot.lane.b32.xlu0 %v678, 8
        %v2136 = vpop.permute.xlu0 %2135
        %2137 = vrot.lane.b32.xlu0 %v681, 8
        %v2138 = vpop.permute.xlu0 %2137
        %2139 = vrot.lane.b32.xlu0 %v684, 8
        %v2140 = vpop.permute.xlu0 %2139
        %2141 = vrot.lane.b32.xlu0 %v687, 8
        %v2142 = vpop.permute.xlu0 %2141
        %2143 = vrot.lane.b32.xlu0 %v690, 8
        %v2144 = vpop.permute.xlu0 %2143
        %2145 = vrot.lane.b32.xlu0 %v693, 8
        %v2146 = vpop.permute.xlu0 %2145
        %2147 = vrot.lane.b32.xlu0 %v696, 8
        %v2148 = vpop.permute.xlu0 %2147
        %2149 = vrot.lane.b32.xlu0 %v699, 8
        %v2150 = vpop.permute.xlu0 %2149
        %2151 = vrot.lane.b32.xlu0 %v702, 8
        %v2152 = vpop.permute.xlu0 %2151
        %2153 = vrot.lane.b32.xlu0 %v1306, 8
        %v2154 = vpop.permute.xlu0 %2153
        %2155 = vrot.lane.b32.xlu0 %v1305, 8
        %v2156 = vpop.permute.xlu0 %2155
        %2157 = vrot.lane.b32.xlu0 %v2124, 8
        %v2158 = vpop.permute.xlu0 %2157
        %2159 = vrot.lane.b32.xlu0 %v2123, 8
        %v2160 = vpop.permute.xlu0 %2159
        %v2161 = vrot.slane %v1530, 1
        %v2162 = vrot.slane %v1532, 2
        %v2163 = vor.u32 %v2161, %v2162
        %v2164 = vrot.slane %v2083, 1
        %v2165 = vrot.slane %v1537, 2
        %v2166 = vor.u32 %v2164, %v2165
        %v2167 = vsel %vm736, %v2163, %v2166
        %2168 = vrot.lane.b32.xlu0 %v762, 12
        %v2169 = vpop.permute.xlu0 %2168
        %2170 = vrot.lane.b32.xlu0 %v771, 12
        %v2171 = vpop.permute.xlu0 %2170
        %2172 = vrot.lane.b32.xlu0 %v780, 12
        %v2173 = vpop.permute.xlu0 %2172
        %2174 = vrot.lane.b32.xlu0 %v789, 12
        %v2175 = vpop.permute.xlu0 %2174
        %2176 = vrot.lane.b32.xlu0 %v798, 12
        %v2177 = vpop.permute.xlu0 %2176
        %2178 = vrot.lane.b32.xlu0 %v807, 12
        %v2179 = vpop.permute.xlu0 %2178
        %2180 = vrot.lane.b32.xlu0 %v816, 12
        %v2181 = vpop.permute.xlu0 %2180
        %2182 = vrot.lane.b32.xlu0 %v825, 12
        %v2183 = vpop.permute.xlu0 %2182
        %2184 = vrot.lane.b32.xlu0 %v834, 12
        %v2185 = vpop.permute.xlu0 %2184
        %2186 = vrot.lane.b32.xlu0 %v843, 12
        %v2187 = vpop.permute.xlu0 %2186
        %2188 = vrot.lane.b32.xlu0 %v852, 12
        %v2189 = vpop.permute.xlu0 %2188
        %2190 = vrot.lane.b32.xlu0 %v861, 12
        %v2191 = vpop.permute.xlu0 %2190
        %2192 = vrot.lane.b32.xlu0 %v870, 12
        %v2193 = vpop.permute.xlu0 %2192
        %2194 = vrot.lane.b32.xlu0 %v879, 12
        %v2195 = vpop.permute.xlu0 %2194
        %2196 = vrot.lane.b32.xlu0 %v1347, 12
        %v2197 = vpop.permute.xlu0 %2196
        %2198 = vrot.lane.b32.xlu0 %v1346, 12
        %v2199 = vpop.permute.xlu0 %2198
        %2200 = vrot.lane.b32.xlu0 %v2167, 12
        %v2201 = vpop.permute.xlu0 %2200
        %2202 = vrot.lane.b32.xlu0 %v2166, 12
        %v2203 = vpop.permute.xlu0 %2202
        %v2204 = vrot.slane %v1493, 2
        %v2205 = vrot.slane %v1528, 2
        %v2206 = vsel %vm913, %v2204, %v2205
        %2207 = vrot.lane.b32.xlu0 %v921, 16
        %v2208 = vpop.permute.xlu0 %2207
        %2209 = vrot.lane.b32.xlu0 %v924, 16
        %v2210 = vpop.permute.xlu0 %2209
        %2211 = vrot.lane.b32.xlu0 %v927, 16
        %v2212 = vpop.permute.xlu0 %2211
        %2213 = vrot.lane.b32.xlu0 %v930, 16
        %v2214 = vpop.permute.xlu0 %2213
        %2215 = vrot.lane.b32.xlu0 %v933, 16
        %v2216 = vpop.permute.xlu0 %2215
        %2217 = vrot.lane.b32.xlu0 %v936, 16
        %v2218 = vpop.permute.xlu0 %2217
        %2219 = vrot.lane.b32.xlu0 %v939, 16
        %v2220 = vpop.permute.xlu0 %2219
        %2221 = vrot.lane.b32.xlu0 %v942, 16
        %v2222 = vpop.permute.xlu0 %2221
        %2223 = vrot.lane.b32.xlu0 %v945, 16
        %v2224 = vpop.permute.xlu0 %2223
        %2225 = vrot.lane.b32.xlu0 %v948, 16
        %v2226 = vpop.permute.xlu0 %2225
        %2227 = vrot.lane.b32.xlu0 %v951, 16
        %v2228 = vpop.permute.xlu0 %2227
        %2229 = vrot.lane.b32.xlu0 %v954, 16
        %v2230 = vpop.permute.xlu0 %2229
        %2231 = vrot.lane.b32.xlu0 %v957, 16
        %v2232 = vpop.permute.xlu0 %2231
        %2233 = vrot.lane.b32.xlu0 %v960, 16
        %v2234 = vpop.permute.xlu0 %2233
        %2235 = vrot.lane.b32.xlu0 %v1382, 16
        %v2236 = vpop.permute.xlu0 %2235
        %2237 = vrot.lane.b32.xlu0 %v1381, 16
        %v2238 = vpop.permute.xlu0 %2237
        %2239 = vrot.lane.b32.xlu0 %v2206, 16
        %v2240 = vpop.permute.xlu0 %2239
        %2241 = vrot.lane.b32.xlu0 %v2205, 16
        %v2242 = vpop.permute.xlu0 %2241
        %v2245 = vunpack.c.l.b16 %v290
        %v2246 = vunpack.c.l.b16 %v291
        %v2247 = vpack.c.b16 %v2246, %v2245
        %v2248 = vrot.slane %v369, 7
        %v2249 = vrot.slane %v370, 7
        %v2250 = vrot.slane %v371, 7
        %v2251 = vrot.slane %v372, 7
        %v2252 = vrot.slane %v373, 7
        %v2253 = vrot.slane %v374, 7
        %v2254 = vrot.slane %v375, 7
        %v2255 = vrot.slane %v376, 7
        %v2256 = vrot.slane %v377, 7
        %v2257 = vrot.slane %v378, 7
        %v2258 = vrot.slane %v379, 7
        %v2259 = vrot.slane %v380, 7
        %v2260 = vrot.slane %v381, 7
        %v2261 = vrot.slane %v1224, 7
        %v2262 = vrot.slane %v1493, 7
        %v2263 = vrot.slane %v2247, 7
        %2264 = vrot.lane.b32.xlu0 %v2248, 20
        %v2265 = vpop.permute.xlu0 %2264
        %2266 = vrot.lane.b32.xlu0 %v2249, 20
        %v2267 = vpop.permute.xlu0 %2266
        %2268 = vrot.lane.b32.xlu0 %v2250, 20
        %v2269 = vpop.permute.xlu0 %2268
        %2270 = vrot.lane.b32.xlu0 %v2251, 20
        %v2271 = vpop.permute.xlu0 %2270
        %2272 = vrot.lane.b32.xlu0 %v2252, 20
        %v2273 = vpop.permute.xlu0 %2272
        %2274 = vrot.lane.b32.xlu0 %v2253, 20
        %v2275 = vpop.permute.xlu0 %2274
        %2276 = vrot.lane.b32.xlu0 %v2254, 20
        %v2277 = vpop.permute.xlu0 %2276
        %2278 = vrot.lane.b32.xlu0 %v2255, 20
        %v2279 = vpop.permute.xlu0 %2278
        %2280 = vrot.lane.b32.xlu0 %v2256, 20
        %v2281 = vpop.permute.xlu0 %2280
        %2282 = vrot.lane.b32.xlu0 %v2257, 20
        %v2283 = vpop.permute.xlu0 %2282
        %2284 = vrot.lane.b32.xlu0 %v2258, 20
        %v2285 = vpop.permute.xlu0 %2284
        %2286 = vrot.lane.b32.xlu0 %v2259, 20
        %v2287 = vpop.permute.xlu0 %2286
        %2288 = vrot.lane.b32.xlu0 %v2260, 20
        %v2289 = vpop.permute.xlu0 %2288
        %2290 = vrot.lane.b32.xlu0 %v2261, 20
        %v2291 = vpop.permute.xlu0 %2290
        %2292 = vrot.lane.b32.xlu0 %v2262, 20
        %v2293 = vpop.permute.xlu0 %2292
        %2294 = vrot.lane.b32.xlu0 %v2263, 20
        %v2295 = vpop.permute.xlu0 %2294
        %v2297 = vunpack.c.l.b16 %v292
        %v2298 = vpack.c.b16 %v2297, %v2297
        %vm2299 = vsmask.f32 256
        %v2300 = vrot.slane %v468, 7
        %v2301 = vor.u32 %v2300, %v470
        %v2302 = vsel %vm2299, %v2300, %v475
        %v2303 = vrot.slane %v480, 7
        %v2304 = vor.u32 %v2303, %v482
        %v2305 = vsel %vm2299, %v2303, %v487
        %v2306 = vrot.slane %v492, 7
        %v2307 = vor.u32 %v2306, %v494
        %v2308 = vsel %vm2299, %v2306, %v499
        %v2309 = vrot.slane %v504, 7
        %v2310 = vor.u32 %v2309, %v506
        %v2311 = vsel %vm2299, %v2309, %v511
        %v2312 = vrot.slane %v516, 7
        %v2313 = vor.u32 %v2312, %v518
        %v2314 = vsel %vm2299, %v2312, %v523
        %v2315 = vrot.slane %v528, 7
        %v2316 = vor.u32 %v2315, %v530
        %v2317 = vsel %vm2299, %v2315, %v535
        %v2318 = vrot.slane %v540, 7
        %v2319 = vor.u32 %v2318, %v542
        %v2320 = vsel %vm2299, %v2318, %v547
        %v2321 = vrot.slane %v552, 7
        %v2322 = vor.u32 %v2321, %v554
        %v2323 = vsel %vm2299, %v2321, %v559
        %v2324 = vrot.slane %v564, 7
        %v2325 = vor.u32 %v2324, %v566
        %v2326 = vsel %vm2299, %v2324, %v571
        %v2327 = vrot.slane %v576, 7
        %v2328 = vor.u32 %v2327, %v578
        %v2329 = vsel %vm2299, %v2327, %v583
        %v2330 = vrot.slane %v588, 7
        %v2331 = vor.u32 %v2330, %v590
        %v2332 = vsel %vm2299, %v2330, %v595
        %v2333 = vrot.slane %v600, 7
        %v2334 = vor.u32 %v2333, %v602
        %v2335 = vsel %vm2299, %v2333, %v607
        %v2336 = vrot.slane %v612, 7
        %v2337 = vor.u32 %v2336, %v614
        %v2338 = vsel %vm2299, %v2336, %v619
        %v2339 = vrot.slane %v1261, 7
        %v2340 = vor.u32 %v2339, %v1263
        %v2341 = vsel %vm2299, %v2339, %v1268
        %v2342 = vrot.slane %v1530, 7
        %v2343 = vor.u32 %v2342, %v1532
        %v2344 = vsel %vm2299, %v2342, %v1537
        %v2346 = vshrl.u32 %v2247, 16
        %v2348 = vrot.slane %v2346, 7
        %v2349 = vshll.u32 %v2247, 16
        %v2351 = vor.u32 %v2348, %v2349
        %v2353 = vshll.u32 %v2298, 16
        %v2355 = vsel %vm2299, %v2348, %v2353
        %2356 = vrot.lane.b32.xlu0 %v2301, 24
        %v2357 = vpop.permute.xlu0 %2356
        %2358 = vrot.lane.b32.xlu0 %v2302, 24
        %v2359 = vpop.permute.xlu0 %2358
        %2360 = vrot.lane.b32.xlu0 %v2304, 24
        %v2361 = vpop.permute.xlu0 %2360
        %2362 = vrot.lane.b32.xlu0 %v2305, 24
        %v2363 = vpop.permute.xlu0 %2362
        %2364 = vrot.lane.b32.xlu0 %v2307, 24
        %v2365 = vpop.permute.xlu0 %2364
        %2366 = vrot.lane.b32.xlu0 %v2308, 24
        %v2367 = vpop.permute.xlu0 %2366
        %2368 = vrot.lane.b32.xlu0 %v2310, 24
        %v2369 = vpop.permute.xlu0 %2368
        %2370 = vrot.lane.b32.xlu0 %v2311, 24
        %v2371 = vpop.permute.xlu0 %2370
        %2372 = vrot.lane.b32.xlu0 %v2313, 24
        %v2373 = vpop.permute.xlu0 %2372
        %2374 = vrot.lane.b32.xlu0 %v2314, 24
        %v2375 = vpop.permute.xlu0 %2374
        %2376 = vrot.lane.b32.xlu0 %v2316, 24
        %v2377 = vpop.permute.xlu0 %2376
        %2378 = vrot.lane.b32.xlu0 %v2317, 24
        %v2379 = vpop.permute.xlu0 %2378
        %2380 = vrot.lane.b32.xlu0 %v2319, 24
        %v2381 = vpop.permute.xlu0 %2380
        %2382 = vrot.lane.b32.xlu0 %v2320, 24
        %v2383 = vpop.permute.xlu0 %2382
        %2384 = vrot.lane.b32.xlu0 %v2322, 24
        %v2385 = vpop.permute.xlu0 %2384
        %2386 = vrot.lane.b32.xlu0 %v2323, 24
        %v2387 = vpop.permute.xlu0 %2386
        %2388 = vrot.lane.b32.xlu0 %v2325, 24
        %v2389 = vpop.permute.xlu0 %2388
        %2390 = vrot.lane.b32.xlu0 %v2326, 24
        %v2391 = vpop.permute.xlu0 %2390
        %2392 = vrot.lane.b32.xlu0 %v2328, 24
        %v2393 = vpop.permute.xlu0 %2392
        %2394 = vrot.lane.b32.xlu0 %v2329, 24
        %v2395 = vpop.permute.xlu0 %2394
        %2396 = vrot.lane.b32.xlu0 %v2331, 24
        %v2397 = vpop.permute.xlu0 %2396
        %2398 = vrot.lane.b32.xlu0 %v2332, 24
        %v2399 = vpop.permute.xlu0 %2398
        %2400 = vrot.lane.b32.xlu0 %v2334, 24
        %v2401 = vpop.permute.xlu0 %2400
        %2402 = vrot.lane.b32.xlu0 %v2335, 24
        %v2403 = vpop.permute.xlu0 %2402
        %2404 = vrot.lane.b32.xlu0 %v2337, 24
        %v2405 = vpop.permute.xlu0 %2404
        %2406 = vrot.lane.b32.xlu0 %v2338, 24
        %v2407 = vpop.permute.xlu0 %2406
        %2408 = vrot.lane.b32.xlu0 %v2340, 24
        %v2409 = vpop.permute.xlu0 %2408
        %2410 = vrot.lane.b32.xlu0 %v2341, 24
        %v2411 = vpop.permute.xlu0 %2410
        %2412 = vrot.lane.b32.xlu0 %v2343, 24
        %v2413 = vpop.permute.xlu0 %2412
        %2414 = vrot.lane.b32.xlu0 %v2344, 24
        %v2415 = vpop.permute.xlu0 %2414
        %2416 = vrot.lane.b32.xlu0 %v2351, 24
        %v2417 = vpop.permute.xlu0 %2416
        %2418 = vrot.lane.b32.xlu0 %v2355, 24
        %v2419 = vpop.permute.xlu0 %2418
        %2420 = vrot.lane.b32.xlu0 %v417, 28
        %v2421 = vpop.permute.xlu0 %2420
        %2422 = vrot.lane.b32.xlu0 %v418, 28
        %v2423 = vpop.permute.xlu0 %2422
        %2424 = vrot.lane.b32.xlu0 %v419, 28
        %v2425 = vpop.permute.xlu0 %2424
        %2426 = vrot.lane.b32.xlu0 %v420, 28
        %v2427 = vpop.permute.xlu0 %2426
        %2428 = vrot.lane.b32.xlu0 %v421, 28
        %v2429 = vpop.permute.xlu0 %2428
        %2430 = vrot.lane.b32.xlu0 %v422, 28
        %v2431 = vpop.permute.xlu0 %2430
        %2432 = vrot.lane.b32.xlu0 %v423, 28
        %v2433 = vpop.permute.xlu0 %2432
        %2434 = vrot.lane.b32.xlu0 %v424, 28
        %v2435 = vpop.permute.xlu0 %2434
        %2436 = vrot.lane.b32.xlu0 %v425, 28
        %v2437 = vpop.permute.xlu0 %2436
        %2438 = vrot.lane.b32.xlu0 %v426, 28
        %v2439 = vpop.permute.xlu0 %2438
        %2440 = vrot.lane.b32.xlu0 %v427, 28
        %v2441 = vpop.permute.xlu0 %2440
        %2442 = vrot.lane.b32.xlu0 %v428, 28
        %v2443 = vpop.permute.xlu0 %2442
        %2444 = vrot.lane.b32.xlu0 %v429, 28
        %v2445 = vpop.permute.xlu0 %2444
        %2446 = vrot.lane.b32.xlu0 %v1259, 28
        %v2447 = vpop.permute.xlu0 %2446
        %2448 = vrot.lane.b32.xlu0 %v1493, 28
        %v2449 = vpop.permute.xlu0 %2448
        %2450 = vrot.lane.b32.xlu0 %v1528, 28
        %v2451 = vpop.permute.xlu0 %2450
        %2452 = vrot.lane.b32.xlu0 %v2247, 28
        %v2453 = vpop.permute.xlu0 %2452
        %2454 = vrot.lane.b32.xlu0 %v2298, 28
        %v2455 = vpop.permute.xlu0 %2454
        %v2456 = vrot.slane %v2349, 1
        %v2457 = vor.u32 %v2346, %v2456
        %v2458 = vrot.slane %v2353, 1
        %v2459 = vsel %vm430, %v2457, %v2458
        %v2460 = vshrl.u32 %v2298, 16
        %v2462 = vor.u32 %v2460, %v2458
        %2463 = vrot.lane.b32.xlu0 %v2069, 32
        %v2464 = vpop.permute.xlu0 %2463
        %2465 = vrot.lane.b32.xlu0 %v2070, 32
        %v2466 = vpop.permute.xlu0 %2465
        %2467 = vrot.lane.b32.xlu0 %v2071, 32
        %v2468 = vpop.permute.xlu0 %2467
        %2469 = vrot.lane.b32.xlu0 %v2072, 32
        %v2470 = vpop.permute.xlu0 %2469
        %2471 = vrot.lane.b32.xlu0 %v2073, 32
        %v2472 = vpop.permute.xlu0 %2471
        %2473 = vrot.lane.b32.xlu0 %v2074, 32
        %v2474 = vpop.permute.xlu0 %2473
        %2475 = vrot.lane.b32.xlu0 %v2075, 32
        %v2476 = vpop.permute.xlu0 %2475
        %2477 = vrot.lane.b32.xlu0 %v2076, 32
        %v2478 = vpop.permute.xlu0 %2477
        %2479 = vrot.lane.b32.xlu0 %v2077, 32
        %v2480 = vpop.permute.xlu0 %2479
        %2481 = vrot.lane.b32.xlu0 %v2078, 32
        %v2482 = vpop.permute.xlu0 %2481
        %2483 = vrot.lane.b32.xlu0 %v2079, 32
        %v2484 = vpop.permute.xlu0 %2483
        %2485 = vrot.lane.b32.xlu0 %v2080, 32
        %v2486 = vpop.permute.xlu0 %2485
        %2487 = vrot.lane.b32.xlu0 %v2081, 32
        %v2488 = vpop.permute.xlu0 %2487
        %2489 = vrot.lane.b32.xlu0 %v2082, 32
        %v2490 = vpop.permute.xlu0 %2489
        %2491 = vrot.lane.b32.xlu0 %v1540, 32
        %v2492 = vpop.permute.xlu0 %2491
        %2493 = vrot.lane.b32.xlu0 %v2085, 32
        %v2494 = vpop.permute.xlu0 %2493
        %2495 = vrot.lane.b32.xlu0 %v2459, 32
        %v2496 = vpop.permute.xlu0 %2495
        %2497 = vrot.lane.b32.xlu0 %v2462, 32
        %v2498 = vpop.permute.xlu0 %2497
        %v2499 = vrot.slane %v2247, 1
        %v2500 = vrot.slane %v2298, 1
        %v2501 = vsel %vm655, %v2499, %v2500
        %2502 = vrot.lane.b32.xlu0 %v666, 36
        %v2503 = vpop.permute.xlu0 %2502
        %2504 = vrot.lane.b32.xlu0 %v669, 36
        %v2505 = vpop.permute.xlu0 %2504
        %2506 = vrot.lane.b32.xlu0 %v672, 36
        %v2507 = vpop.permute.xlu0 %2506
        %2508 = vrot.lane.b32.xlu0 %v675, 36
        %v2509 = vpop.permute.xlu0 %2508
        %2510 = vrot.lane.b32.xlu0 %v678, 36
        %v2511 = vpop.permute.xlu0 %2510
        %2512 = vrot.lane.b32.xlu0 %v681, 36
        %v2513 = vpop.permute.xlu0 %2512
        %2514 = vrot.lane.b32.xlu0 %v684, 36
        %v2515 = vpop.permute.xlu0 %2514
        %2516 = vrot.lane.b32.xlu0 %v687, 36
        %v2517 = vpop.permute.xlu0 %2516
        %2518 = vrot.lane.b32.xlu0 %v690, 36
        %v2519 = vpop.permute.xlu0 %2518
        %2520 = vrot.lane.b32.xlu0 %v693, 36
        %v2521 = vpop.permute.xlu0 %2520
        %2522 = vrot.lane.b32.xlu0 %v696, 36
        %v2523 = vpop.permute.xlu0 %2522
        %2524 = vrot.lane.b32.xlu0 %v699, 36
        %v2525 = vpop.permute.xlu0 %2524
        %2526 = vrot.lane.b32.xlu0 %v702, 36
        %v2527 = vpop.permute.xlu0 %2526
        %2528 = vrot.lane.b32.xlu0 %v1305, 36
        %v2529 = vpop.permute.xlu0 %2528
        %2530 = vrot.lane.b32.xlu0 %v2124, 36
        %v2531 = vpop.permute.xlu0 %2530
        %2532 = vrot.lane.b32.xlu0 %v2123, 36
        %v2533 = vpop.permute.xlu0 %2532
        %2534 = vrot.lane.b32.xlu0 %v2501, 36
        %v2535 = vpop.permute.xlu0 %2534
        %2536 = vrot.lane.b32.xlu0 %v2500, 36
        %v2537 = vpop.permute.xlu0 %2536
        %v2538 = vrot.slane %v2346, 1
        %v2539 = vrot.slane %v2349, 2
        %v2540 = vor.u32 %v2538, %v2539
        %v2541 = vrot.slane %v2460, 1
        %v2542 = vrot.slane %v2353, 2
        %v2543 = vor.u32 %v2541, %v2542
        %v2544 = vsel %vm736, %v2540, %v2543
        %2545 = vrot.lane.b32.xlu0 %v771, 40
        %v2546 = vpop.permute.xlu0 %2545
        %2547 = vrot.lane.b32.xlu0 %v780, 40
        %v2548 = vpop.permute.xlu0 %2547
        %2549 = vrot.lane.b32.xlu0 %v789, 40
        %v2550 = vpop.permute.xlu0 %2549
        %2551 = vrot.lane.b32.xlu0 %v798, 40
        %v2552 = vpop.permute.xlu0 %2551
        %2553 = vrot.lane.b32.xlu0 %v807, 40
        %v2554 = vpop.permute.xlu0 %2553
        %2555 = vrot.lane.b32.xlu0 %v816, 40
        %v2556 = vpop.permute.xlu0 %2555
        %2557 = vrot.lane.b32.xlu0 %v825, 40
        %v2558 = vpop.permute.xlu0 %2557
        %2559 = vrot.lane.b32.xlu0 %v834, 40
        %v2560 = vpop.permute.xlu0 %2559
        %2561 = vrot.lane.b32.xlu0 %v843, 40
        %v2562 = vpop.permute.xlu0 %2561
        %2563 = vrot.lane.b32.xlu0 %v852, 40
        %v2564 = vpop.permute.xlu0 %2563
        %2565 = vrot.lane.b32.xlu0 %v861, 40
        %v2566 = vpop.permute.xlu0 %2565
        %2567 = vrot.lane.b32.xlu0 %v870, 40
        %v2568 = vpop.permute.xlu0 %2567
        %2569 = vrot.lane.b32.xlu0 %v879, 40
        %v2570 = vpop.permute.xlu0 %2569
        %2571 = vrot.lane.b32.xlu0 %v1346, 40
        %v2572 = vpop.permute.xlu0 %2571
        %2573 = vrot.lane.b32.xlu0 %v2167, 40
        %v2574 = vpop.permute.xlu0 %2573
        %2575 = vrot.lane.b32.xlu0 %v2166, 40
        %v2576 = vpop.permute.xlu0 %2575
        %2577 = vrot.lane.b32.xlu0 %v2544, 40
        %v2578 = vpop.permute.xlu0 %2577
        %2579 = vrot.lane.b32.xlu0 %v2543, 40
        %v2580 = vpop.permute.xlu0 %2579
        %v2581 = vrot.slane %v2247, 2
        %v2582 = vrot.slane %v2298, 2
        %v2583 = vsel %vm913, %v2581, %v2582
        %2584 = vrot.lane.b32.xlu0 %v924, 44
        %v2585 = vpop.permute.xlu0 %2584
        %2586 = vrot.lane.b32.xlu0 %v927, 44
        %v2587 = vpop.permute.xlu0 %2586
        %2588 = vrot.lane.b32.xlu0 %v930, 44
        %v2589 = vpop.permute.xlu0 %2588
        %2590 = vrot.lane.b32.xlu0 %v933, 44
        %v2591 = vpop.permute.xlu0 %2590
        %2592 = vrot.lane.b32.xlu0 %v936, 44
        %v2593 = vpop.permute.xlu0 %2592
        %2594 = vrot.lane.b32.xlu0 %v939, 44
        %v2595 = vpop.permute.xlu0 %2594
        %2596 = vrot.lane.b32.xlu0 %v942, 44
        %v2597 = vpop.permute.xlu0 %2596
        %2598 = vrot.lane.b32.xlu0 %v945, 44
        %v2599 = vpop.permute.xlu0 %2598
        %2600 = vrot.lane.b32.xlu0 %v948, 44
        %v2601 = vpop.permute.xlu0 %2600
        %2602 = vrot.lane.b32.xlu0 %v951, 44
        %v2603 = vpop.permute.xlu0 %2602
        %2604 = vrot.lane.b32.xlu0 %v954, 44
        %v2605 = vpop.permute.xlu0 %2604
        %2606 = vrot.lane.b32.xlu0 %v957, 44
        %v2607 = vpop.permute.xlu0 %2606
        %2608 = vrot.lane.b32.xlu0 %v960, 44
        %v2609 = vpop.permute.xlu0 %2608
        %2610 = vrot.lane.b32.xlu0 %v1381, 44
        %v2611 = vpop.permute.xlu0 %2610
        %2612 = vrot.lane.b32.xlu0 %v2206, 44
        %v2613 = vpop.permute.xlu0 %2612
        %2614 = vrot.lane.b32.xlu0 %v2205, 44
        %v2615 = vpop.permute.xlu0 %2614
        %2616 = vrot.lane.b32.xlu0 %v2583, 44
        %v2617 = vpop.permute.xlu0 %2616
        %2618 = vrot.lane.b32.xlu0 %v2582, 44
        %v2619 = vpop.permute.xlu0 %2618
        %v2622 = vunpack.c.l.b16 %v293
        %v2623 = vunpack.c.l.b16 %v294
        %v2624 = vpack.c.b16 %v2623, %v2622
        %v2625 = vrot.slane %v2624, 7
        %2626 = vrot.lane.b32.xlu0 %v2249, 48
        %v2627 = vpop.permute.xlu0 %2626
        %2628 = vrot.lane.b32.xlu0 %v2250, 48
        %v2629 = vpop.permute.xlu0 %2628
        %2630 = vrot.lane.b32.xlu0 %v2251, 48
        %v2631 = vpop.permute.xlu0 %2630
        %2632 = vrot.lane.b32.xlu0 %v2252, 48
        %v2633 = vpop.permute.xlu0 %2632
        %2634 = vrot.lane.b32.xlu0 %v2253, 48
        %v2635 = vpop.permute.xlu0 %2634
        %2636 = vrot.lane.b32.xlu0 %v2254, 48
        %v2637 = vpop.permute.xlu0 %2636
        %2638 = vrot.lane.b32.xlu0 %v2255, 48
        %v2639 = vpop.permute.xlu0 %2638
        %2640 = vrot.lane.b32.xlu0 %v2256, 48
        %v2641 = vpop.permute.xlu0 %2640
        %2642 = vrot.lane.b32.xlu0 %v2257, 48
        %v2643 = vpop.permute.xlu0 %2642
        %2644 = vrot.lane.b32.xlu0 %v2258, 48
        %v2645 = vpop.permute.xlu0 %2644
        %2646 = vrot.lane.b32.xlu0 %v2259, 48
        %v2647 = vpop.permute.xlu0 %2646
        %2648 = vrot.lane.b32.xlu0 %v2260, 48
        %v2649 = vpop.permute.xlu0 %2648
        %2650 = vrot.lane.b32.xlu0 %v2261, 48
        %v2651 = vpop.permute.xlu0 %2650
        %2652 = vrot.lane.b32.xlu0 %v2262, 48
        %v2653 = vpop.permute.xlu0 %2652
        %2654 = vrot.lane.b32.xlu0 %v2263, 48
        %v2655 = vpop.permute.xlu0 %2654
        %2656 = vrot.lane.b32.xlu0 %v2625, 48
        %v2657 = vpop.permute.xlu0 %2656
        %v2659 = vunpack.c.l.b16 %v295
        %v2660 = vpack.c.b16 %v2659, %v2659
        %v2662 = vshrl.u32 %v2624, 16
        %v2664 = vrot.slane %v2662, 7
        %v2665 = vshll.u32 %v2624, 16
        %v2667 = vor.u32 %v2664, %v2665
        %v2669 = vshll.u32 %v2660, 16
        %v2671 = vsel %vm2299, %v2664, %v2669
        %2672 = vrot.lane.b32.xlu0 %v2304, 52
        %v2673 = vpop.permute.xlu0 %2672
        %2674 = vrot.lane.b32.xlu0 %v2305, 52
        %v2675 = vpop.permute.xlu0 %2674
        %2676 = vrot.lane.b32.xlu0 %v2307, 52
        %v2677 = vpop.permute.xlu0 %2676
        %2678 = vrot.lane.b32.xlu0 %v2308, 52
        %v2679 = vpop.permute.xlu0 %2678
        %2680 = vrot.lane.b32.xlu0 %v2310, 52
        %v2681 = vpop.permute.xlu0 %2680
        %2682 = vrot.lane.b32.xlu0 %v2311, 52
        %v2683 = vpop.permute.xlu0 %2682
        %2684 = vrot.lane.b32.xlu0 %v2313, 52
        %v2685 = vpop.permute.xlu0 %2684
        %2686 = vrot.lane.b32.xlu0 %v2314, 52
        %v2687 = vpop.permute.xlu0 %2686
        %2688 = vrot.lane.b32.xlu0 %v2316, 52
        %v2689 = vpop.permute.xlu0 %2688
        %2690 = vrot.lane.b32.xlu0 %v2317, 52
        %v2691 = vpop.permute.xlu0 %2690
        %2692 = vrot.lane.b32.xlu0 %v2319, 52
        %v2693 = vpop.permute.xlu0 %2692
        %2694 = vrot.lane.b32.xlu0 %v2320, 52
        %v2695 = vpop.permute.xlu0 %2694
        %2696 = vrot.lane.b32.xlu0 %v2322, 52
        %v2697 = vpop.permute.xlu0 %2696
        %2698 = vrot.lane.b32.xlu0 %v2323, 52
        %v2699 = vpop.permute.xlu0 %2698
        %2700 = vrot.lane.b32.xlu0 %v2325, 52
        %v2701 = vpop.permute.xlu0 %2700
        %2702 = vrot.lane.b32.xlu0 %v2326, 52
        %v2703 = vpop.permute.xlu0 %2702
        %2704 = vrot.lane.b32.xlu0 %v2328, 52
        %v2705 = vpop.permute.xlu0 %2704
        %2706 = vrot.lane.b32.xlu0 %v2329, 52
        %v2707 = vpop.permute.xlu0 %2706
        %2708 = vrot.lane.b32.xlu0 %v2331, 52
        %v2709 = vpop.permute.xlu0 %2708
        %2710 = vrot.lane.b32.xlu0 %v2332, 52
        %v2711 = vpop.permute.xlu0 %2710
        %2712 = vrot.lane.b32.xlu0 %v2334, 52
        %v2713 = vpop.permute.xlu0 %2712
        %2714 = vrot.lane.b32.xlu0 %v2335, 52
        %v2715 = vpop.permute.xlu0 %2714
        %2716 = vrot.lane.b32.xlu0 %v2337, 52
        %v2717 = vpop.permute.xlu0 %2716
        %2718 = vrot.lane.b32.xlu0 %v2338, 52
        %v2719 = vpop.permute.xlu0 %2718
        %2720 = vrot.lane.b32.xlu0 %v2340, 52
        %v2721 = vpop.permute.xlu0 %2720
        %2722 = vrot.lane.b32.xlu0 %v2341, 52
        %v2723 = vpop.permute.xlu0 %2722
        %2724 = vrot.lane.b32.xlu0 %v2343, 52
        %v2725 = vpop.permute.xlu0 %2724
        %2726 = vrot.lane.b32.xlu0 %v2344, 52
        %v2727 = vpop.permute.xlu0 %2726
        %2728 = vrot.lane.b32.xlu0 %v2351, 52
        %v2729 = vpop.permute.xlu0 %2728
        %2730 = vrot.lane.b32.xlu0 %v2355, 52
        %v2731 = vpop.permute.xlu0 %2730
        %2732 = vrot.lane.b32.xlu0 %v2667, 52
        %v2733 = vpop.permute.xlu0 %2732
        %2734 = vrot.lane.b32.xlu0 %v2671, 52
        %v2735 = vpop.permute.xlu0 %2734
        %2736 = vrot.lane.b32.xlu0 %v418, 56
        %v2737 = vpop.permute.xlu0 %2736
        %2738 = vrot.lane.b32.xlu0 %v419, 56
        %v2739 = vpop.permute.xlu0 %2738
        %2740 = vrot.lane.b32.xlu0 %v420, 56
        %v2741 = vpop.permute.xlu0 %2740
        %2742 = vrot.lane.b32.xlu0 %v421, 56
        %v2743 = vpop.permute.xlu0 %2742
        %2744 = vrot.lane.b32.xlu0 %v422, 56
        %v2745 = vpop.permute.xlu0 %2744
        %2746 = vrot.lane.b32.xlu0 %v423, 56
        %v2747 = vpop.permute.xlu0 %2746
        %2748 = vrot.lane.b32.xlu0 %v424, 56
        %v2749 = vpop.permute.xlu0 %2748
        %2750 = vrot.lane.b32.xlu0 %v425, 56
        %v2751 = vpop.permute.xlu0 %2750
        %2752 = vrot.lane.b32.xlu0 %v426, 56
        %v2753 = vpop.permute.xlu0 %2752
        %2754 = vrot.lane.b32.xlu0 %v427, 56
        %v2755 = vpop.permute.xlu0 %2754
        %2756 = vrot.lane.b32.xlu0 %v428, 56
        %v2757 = vpop.permute.xlu0 %2756
        %2758 = vrot.lane.b32.xlu0 %v429, 56
        %v2759 = vpop.permute.xlu0 %2758
        %2760 = vrot.lane.b32.xlu0 %v1259, 56
        %v2761 = vpop.permute.xlu0 %2760
        %2762 = vrot.lane.b32.xlu0 %v1528, 56
        %v2763 = vpop.permute.xlu0 %2762
        %2764 = vrot.lane.b32.xlu0 %v2247, 56
        %v2765 = vpop.permute.xlu0 %2764
        %2766 = vrot.lane.b32.xlu0 %v2298, 56
        %v2767 = vpop.permute.xlu0 %2766
        %2768 = vrot.lane.b32.xlu0 %v2624, 56
        %v2769 = vpop.permute.xlu0 %2768
        %2770 = vrot.lane.b32.xlu0 %v2660, 56
        %v2771 = vpop.permute.xlu0 %2770
        %v2772 = vrot.slane %v2665, 1
        %v2773 = vor.u32 %v2662, %v2772
        %v2774 = vrot.slane %v2669, 1
        %v2775 = vsel %vm430, %v2773, %v2774
        %v2776 = vshrl.u32 %v2660, 16
        %v2778 = vor.u32 %v2776, %v2774
        %2779 = vrot.lane.b32.xlu0 %v2070, 60
        %v2780 = vpop.permute.xlu0 %2779
        %2781 = vrot.lane.b32.xlu0 %v2071, 60
        %v2782 = vpop.permute.xlu0 %2781
        %2783 = vrot.lane.b32.xlu0 %v2072, 60
        %v2784 = vpop.permute.xlu0 %2783
        %2785 = vrot.lane.b32.xlu0 %v2073, 60
        %v2786 = vpop.permute.xlu0 %2785
        %2787 = vrot.lane.b32.xlu0 %v2074, 60
        %v2788 = vpop.permute.xlu0 %2787
        %2789 = vrot.lane.b32.xlu0 %v2075, 60
        %v2790 = vpop.permute.xlu0 %2789
        %2791 = vrot.lane.b32.xlu0 %v2076, 60
        %v2792 = vpop.permute.xlu0 %2791
        %2793 = vrot.lane.b32.xlu0 %v2077, 60
        %v2794 = vpop.permute.xlu0 %2793
        %2795 = vrot.lane.b32.xlu0 %v2078, 60
        %v2796 = vpop.permute.xlu0 %2795
        %2797 = vrot.lane.b32.xlu0 %v2079, 60
        %v2798 = vpop.permute.xlu0 %2797
        %2799 = vrot.lane.b32.xlu0 %v2080, 60
        %v2800 = vpop.permute.xlu0 %2799
        %2801 = vrot.lane.b32.xlu0 %v2081, 60
        %v2802 = vpop.permute.xlu0 %2801
        %2803 = vrot.lane.b32.xlu0 %v2082, 60
        %v2804 = vpop.permute.xlu0 %2803
        %2805 = vrot.lane.b32.xlu0 %v2085, 60
        %v2806 = vpop.permute.xlu0 %2805
        %2807 = vrot.lane.b32.xlu0 %v2459, 60
        %v2808 = vpop.permute.xlu0 %2807
        %2809 = vrot.lane.b32.xlu0 %v2462, 60
        %v2810 = vpop.permute.xlu0 %2809
        %2811 = vrot.lane.b32.xlu0 %v2775, 60
        %v2812 = vpop.permute.xlu0 %2811
        %2813 = vrot.lane.b32.xlu0 %v2778, 60
        %v2814 = vpop.permute.xlu0 %2813
        %v2816 = vsel %vm1573, %v416, %v2087
        %v2818 = vsel %vm1573, %v417, %v2089
        %v2820 = vsel %vm1573, %v418, %v2091
        %v2822 = vsel %vm1573, %v419, %v2093
        %v2824 = vsel %vm1573, %v420, %v2095
        %v2826 = vsel %vm1573, %v421, %v2097
        %v2828 = vsel %vm1573, %v422, %v2099
        %v2830 = vsel %vm1573, %v423, %v2101
        %v2832 = vsel %vm1573, %v424, %v2103
        %v2834 = vsel %vm1573, %v425, %v2105
        %v2836 = vsel %vm1573, %v426, %v2107
        %v2838 = vsel %vm1573, %v427, %v2109
        %v2840 = vsel %vm1573, %v428, %v2111
        %v2842 = vsel %vm1573, %v429, %v2113
        %v2844 = vsel %vm1573, %v1224, %v2115
        %v2846 = vsel %vm1573, %v1259, %v2117
        %v2848 = vsel %vm1573, %v1493, %v2119
        %v2850 = vsel %vm1573, %v1528, %v2121
        %v2852 = vsel %vm1606, %v2816, %v2126
        %v2854 = vsel %vm1606, %v2818, %v2128
        %v2856 = vsel %vm1606, %v2820, %v2130
        %v2858 = vsel %vm1606, %v2822, %v2132
        %v2860 = vsel %vm1606, %v2824, %v2134
        %v2862 = vsel %vm1606, %v2826, %v2136
        %v2864 = vsel %vm1606, %v2828, %v2138
        %v2866 = vsel %vm1606, %v2830, %v2140
        %v2868 = vsel %vm1606, %v2832, %v2142
        %v2870 = vsel %vm1606, %v2834, %v2144
        %v2872 = vsel %vm1606, %v2836, %v2146
        %v2874 = vsel %vm1606, %v2838, %v2148
        %v2876 = vsel %vm1606, %v2840, %v2150
        %v2878 = vsel %vm1606, %v2842, %v2152
        %v2880 = vsel %vm1606, %v2844, %v2154
        %v2882 = vsel %vm1606, %v2846, %v2156
        %v2884 = vsel %vm1606, %v2848, %v2158
        %v2886 = vsel %vm1606, %v2850, %v2160
        %v2888 = vsel %vm1639, %v2852, %v2169
        %v2890 = vsel %vm1639, %v2854, %v2171
        %v2892 = vsel %vm1639, %v2856, %v2173
        %v2894 = vsel %vm1639, %v2858, %v2175
        %v2896 = vsel %vm1639, %v2860, %v2177
        %v2898 = vsel %vm1639, %v2862, %v2179
        %v2900 = vsel %vm1639, %v2864, %v2181
        %v2902 = vsel %vm1639, %v2866, %v2183
        %v2904 = vsel %vm1639, %v2868, %v2185
        %v2906 = vsel %vm1639, %v2870, %v2187
        %v2908 = vsel %vm1639, %v2872, %v2189
        %v2910 = vsel %vm1639, %v2874, %v2191
        %v2912 = vsel %vm1639, %v2876, %v2193
        %v2914 = vsel %vm1639, %v2878, %v2195
        %v2916 = vsel %vm1639, %v2880, %v2197
        %v2918 = vsel %vm1639, %v2882, %v2199
        %v2920 = vsel %vm1639, %v2884, %v2201
        %v2922 = vsel %vm1639, %v2886, %v2203
        %v2924 = vsel %vm1672, %v2888, %v2208
        %v2926 = vsel %vm1672, %v2890, %v2210
        %v2928 = vsel %vm1672, %v2892, %v2212
        %v2930 = vsel %vm1672, %v2894, %v2214
        %v2932 = vsel %vm1672, %v2896, %v2216
        %v2934 = vsel %vm1672, %v2898, %v2218
        %v2936 = vsel %vm1672, %v2900, %v2220
        %v2938 = vsel %vm1672, %v2902, %v2222
        %v2940 = vsel %vm1672, %v2904, %v2224
        %v2942 = vsel %vm1672, %v2906, %v2226
        %v2944 = vsel %vm1672, %v2908, %v2228
        %v2946 = vsel %vm1672, %v2910, %v2230
        %v2948 = vsel %vm1672, %v2912, %v2232
        %v2950 = vsel %vm1672, %v2914, %v2234
        %v2952 = vsel %vm1672, %v2916, %v2236
        %v2954 = vsel %vm1672, %v2918, %v2238
        %v2956 = vsel %vm1672, %v2920, %v2240
        %v2958 = vsel %vm1672, %v2922, %v2242
        %v2960 = vsel %vm1705, %v1678, %v2265
        %v2961 = vsel %vm1705, %v2924, %v2265
        %v2963 = vsel %vm1705, %v1680, %v2267
        %v2964 = vsel %vm1705, %v2926, %v2267
        %v2966 = vsel %vm1705, %v1682, %v2269
        %v2967 = vsel %vm1705, %v2928, %v2269
        %v2969 = vsel %vm1705, %v1684, %v2271
        %v2970 = vsel %vm1705, %v2930, %v2271
        %v2972 = vsel %vm1705, %v1686, %v2273
        %v2973 = vsel %vm1705, %v2932, %v2273
        %v2975 = vsel %vm1705, %v1688, %v2275
        %v2976 = vsel %vm1705, %v2934, %v2275
        %v2978 = vsel %vm1705, %v1690, %v2277
        %v2979 = vsel %vm1705, %v2936, %v2277
        %v2981 = vsel %vm1705, %v1692, %v2279
        %v2982 = vsel %vm1705, %v2938, %v2279
        %v2984 = vsel %vm1705, %v1694, %v2281
        %v2985 = vsel %vm1705, %v2940, %v2281
        %v2987 = vsel %vm1705, %v1696, %v2283
        %v2988 = vsel %vm1705, %v2942, %v2283
        %v2990 = vsel %vm1705, %v1698, %v2285
        %v2991 = vsel %vm1705, %v2944, %v2285
        %v2993 = vsel %vm1705, %v1700, %v2287
        %v2994 = vsel %vm1705, %v2946, %v2287
        %v2996 = vsel %vm1705, %v1702, %v2289
        %v2997 = vsel %vm1705, %v2948, %v2289
        %v2999 = vsel %vm1705, %v1704, %v2291
        %v3000 = vsel %vm1705, %v2950, %v2291
        %v3002 = vsel %vm1705, %v2952, %v2293
        %v3003 = vsel %vm1705, %v2954, %v2293
        %v3005 = vsel %vm1705, %v2956, %v2295
        %v3006 = vsel %vm1705, %v2958, %v2295
        %v3008 = vsel %vm1738, %v2960, %v2357
        %v3010 = vsel %vm1738, %v2961, %v2359
        %v3012 = vsel %vm1738, %v2963, %v2361
        %v3014 = vsel %vm1738, %v2964, %v2363
        %v3016 = vsel %vm1738, %v2966, %v2365
        %v3018 = vsel %vm1738, %v2967, %v2367
        %v3020 = vsel %vm1738, %v2969, %v2369
        %v3022 = vsel %vm1738, %v2970, %v2371
        %v3024 = vsel %vm1738, %v2972, %v2373
        %v3026 = vsel %vm1738, %v2973, %v2375
        %v3028 = vsel %vm1738, %v2975, %v2377
        %v3030 = vsel %vm1738, %v2976, %v2379
        %v3032 = vsel %vm1738, %v2978, %v2381
        %v3034 = vsel %vm1738, %v2979, %v2383
        %v3036 = vsel %vm1738, %v2981, %v2385
        %v3038 = vsel %vm1738, %v2982, %v2387
        %v3040 = vsel %vm1738, %v2984, %v2389
        %v3042 = vsel %vm1738, %v2985, %v2391
        %v3044 = vsel %vm1738, %v2987, %v2393
        %v3046 = vsel %vm1738, %v2988, %v2395
        %v3048 = vsel %vm1738, %v2990, %v2397
        %v3050 = vsel %vm1738, %v2991, %v2399
        %v3052 = vsel %vm1738, %v2993, %v2401
        %v3054 = vsel %vm1738, %v2994, %v2403
        %v3056 = vsel %vm1738, %v2996, %v2405
        %v3058 = vsel %vm1738, %v2997, %v2407
        %v3060 = vsel %vm1738, %v2999, %v2409
        %v3062 = vsel %vm1738, %v3000, %v2411
        %v3064 = vsel %vm1738, %v3002, %v2413
        %v3066 = vsel %vm1738, %v3003, %v2415
        %v3068 = vsel %vm1738, %v3005, %v2417
        %v3070 = vsel %vm1738, %v3006, %v2419
        %v3071 = vsel %vm1771, %v3008, %v1230
        %v3073 = vsel %vm1771, %v3010, %v2421
        %v3074 = vsel %vm1771, %v3012, %v1232
        %v3076 = vsel %vm1771, %v3014, %v2423
        %v3077 = vsel %vm1771, %v3016, %v1234
        %v3079 = vsel %vm1771, %v3018, %v2425
        %v3080 = vsel %vm1771, %v3020, %v1236
        %v3082 = vsel %vm1771, %v3022, %v2427
        %v3083 = vsel %vm1771, %v3024, %v1238
        %v3085 = vsel %vm1771, %v3026, %v2429
        %v3086 = vsel %vm1771, %v3028, %v1240
        %v3088 = vsel %vm1771, %v3030, %v2431
        %v3089 = vsel %vm1771, %v3032, %v1242
        %v3091 = vsel %vm1771, %v3034, %v2433
        %v3092 = vsel %vm1771, %v3036, %v1244
        %v3094 = vsel %vm1771, %v3038, %v2435
        %v3095 = vsel %vm1771, %v3040, %v1246
        %v3097 = vsel %vm1771, %v3042, %v2437
        %v3098 = vsel %vm1771, %v3044, %v1248
        %v3100 = vsel %vm1771, %v3046, %v2439
        %v3101 = vsel %vm1771, %v3048, %v1250
        %v3103 = vsel %vm1771, %v3050, %v2441
        %v3104 = vsel %vm1771, %v3052, %v1252
        %v3106 = vsel %vm1771, %v3054, %v2443
        %v3107 = vsel %vm1771, %v3056, %v1254
        %v3109 = vsel %vm1771, %v3058, %v2445
        %v3110 = vsel %vm1771, %v3060, %v1256
        %v3112 = vsel %vm1771, %v3062, %v2447
        %v3114 = vsel %vm1771, %v3064, %v2449
        %v3116 = vsel %vm1771, %v3066, %v2451
        %v3118 = vsel %vm1771, %v3068, %v2453
        %v3120 = vsel %vm1771, %v3070, %v2455
        %v3121 = vsel %vm1804, %v3071, %v1277
        %v3123 = vsel %vm1804, %v3073, %v2464
        %v3124 = vsel %vm1804, %v3074, %v1279
        %v3126 = vsel %vm1804, %v3076, %v2466
        %v3127 = vsel %vm1804, %v3077, %v1281
        %v3129 = vsel %vm1804, %v3079, %v2468
        %v3130 = vsel %vm1804, %v3080, %v1283
        %v3132 = vsel %vm1804, %v3082, %v2470
        %v3133 = vsel %vm1804, %v3083, %v1285
        %v3135 = vsel %vm1804, %v3085, %v2472
        %v3136 = vsel %vm1804, %v3086, %v1287
        %v3138 = vsel %vm1804, %v3088, %v2474
        %v3139 = vsel %vm1804, %v3089, %v1289
        %v3141 = vsel %vm1804, %v3091, %v2476
        %v3142 = vsel %vm1804, %v3092, %v1291
        %v3144 = vsel %vm1804, %v3094, %v2478
        %v3145 = vsel %vm1804, %v3095, %v1293
        %v3147 = vsel %vm1804, %v3097, %v2480
        %v3148 = vsel %vm1804, %v3098, %v1295
        %v3150 = vsel %vm1804, %v3100, %v2482
        %v3151 = vsel %vm1804, %v3101, %v1297
        %v3153 = vsel %vm1804, %v3103, %v2484
        %v3154 = vsel %vm1804, %v3104, %v1299
        %v3156 = vsel %vm1804, %v3106, %v2486
        %v3157 = vsel %vm1804, %v3107, %v1301
        %v3159 = vsel %vm1804, %v3109, %v2488
        %v3160 = vsel %vm1804, %v3110, %v1303
        %v3162 = vsel %vm1804, %v3112, %v2490
        %v3164 = vsel %vm1804, %v3114, %v2492
        %v3166 = vsel %vm1804, %v3116, %v2494
        %v3168 = vsel %vm1804, %v3118, %v2496
        %v3170 = vsel %vm1804, %v3120, %v2498
        %v3171 = vsel %vm1837, %v3121, %v1312
        %v3173 = vsel %vm1837, %v3123, %v2503
        %v3174 = vsel %vm1837, %v3124, %v1314
        %v3176 = vsel %vm1837, %v3126, %v2505
        %v3177 = vsel %vm1837, %v3127, %v1316
        %v3179 = vsel %vm1837, %v3129, %v2507
        %v3180 = vsel %vm1837, %v3130, %v1318
        %v3182 = vsel %vm1837, %v3132, %v2509
        %v3183 = vsel %vm1837, %v3133, %v1320
        %v3185 = vsel %vm1837, %v3135, %v2511
        %v3186 = vsel %vm1837, %v3136, %v1322
        %v3188 = vsel %vm1837, %v3138, %v2513
        %v3189 = vsel %vm1837, %v3139, %v1324
        %v3191 = vsel %vm1837, %v3141, %v2515
        %v3192 = vsel %vm1837, %v3142, %v1326
        %v3194 = vsel %vm1837, %v3144, %v2517
        %v3195 = vsel %vm1837, %v3145, %v1328
        %v3197 = vsel %vm1837, %v3147, %v2519
        %v3198 = vsel %vm1837, %v3148, %v1330
        %v3200 = vsel %vm1837, %v3150, %v2521
        %v3201 = vsel %vm1837, %v3151, %v1332
        %v3203 = vsel %vm1837, %v3153, %v2523
        %v3204 = vsel %vm1837, %v3154, %v1334
        %v3206 = vsel %vm1837, %v3156, %v2525
        %v3207 = vsel %vm1837, %v3157, %v1336
        %v3209 = vsel %vm1837, %v3159, %v2527
        %v3210 = vsel %vm1837, %v3160, %v1338
        %v3212 = vsel %vm1837, %v3162, %v2529
        %v3214 = vsel %vm1837, %v3164, %v2531
        %v3216 = vsel %vm1837, %v3166, %v2533
        %v3218 = vsel %vm1837, %v3168, %v2535
        %v3220 = vsel %vm1837, %v3170, %v2537
        %v3221 = vsel %vm1870, %v3171, %v1353
        %v3223 = vsel %vm1870, %v3173, %v2546
        %v3224 = vsel %vm1870, %v3174, %v1355
        %v3226 = vsel %vm1870, %v3176, %v2548
        %v3227 = vsel %vm1870, %v3177, %v1357
        %v3229 = vsel %vm1870, %v3179, %v2550
        %v3230 = vsel %vm1870, %v3180, %v1359
        %v3232 = vsel %vm1870, %v3182, %v2552
        %v3233 = vsel %vm1870, %v3183, %v1361
        %v3235 = vsel %vm1870, %v3185, %v2554
        %v3236 = vsel %vm1870, %v3186, %v1363
        %v3238 = vsel %vm1870, %v3188, %v2556
        %v3239 = vsel %vm1870, %v3189, %v1365
        %v3241 = vsel %vm1870, %v3191, %v2558
        %v3242 = vsel %vm1870, %v3192, %v1367
        %v3244 = vsel %vm1870, %v3194, %v2560
        %v3245 = vsel %vm1870, %v3195, %v1369
        %v3247 = vsel %vm1870, %v3197, %v2562
        %v3248 = vsel %vm1870, %v3198, %v1371
        %v3250 = vsel %vm1870, %v3200, %v2564
        %v3251 = vsel %vm1870, %v3201, %v1373
        %v3253 = vsel %vm1870, %v3203, %v2566
        %v3254 = vsel %vm1870, %v3204, %v1375
        %v3256 = vsel %vm1870, %v3206, %v2568
        %v3257 = vsel %vm1870, %v3207, %v1377
        %v3259 = vsel %vm1870, %v3209, %v2570
        %v3260 = vsel %vm1870, %v3210, %v1379
        %v3262 = vsel %vm1870, %v3212, %v2572
        %v3264 = vsel %vm1870, %v3214, %v2574
        %v3266 = vsel %vm1870, %v3216, %v2576
        %v3268 = vsel %vm1870, %v3218, %v2578
        %v3270 = vsel %vm1870, %v3220, %v2580
        %v3271 = vsel %vm1903, %v3221, %v1388
        %v3273 = vsel %vm1903, %v3223, %v2585
        %v3274 = vsel %vm1903, %v3224, %v1390
        %v3276 = vsel %vm1903, %v3226, %v2587
        %v3277 = vsel %vm1903, %v3227, %v1392
        %v3279 = vsel %vm1903, %v3229, %v2589
        %v3280 = vsel %vm1903, %v3230, %v1394
        %v3282 = vsel %vm1903, %v3232, %v2591
        %v3283 = vsel %vm1903, %v3233, %v1396
        %v3285 = vsel %vm1903, %v3235, %v2593
        %v3286 = vsel %vm1903, %v3236, %v1398
        %v3288 = vsel %vm1903, %v3238, %v2595
        %v3289 = vsel %vm1903, %v3239, %v1400
        %v3291 = vsel %vm1903, %v3241, %v2597
        %v3292 = vsel %vm1903, %v3242, %v1402
        %v3294 = vsel %vm1903, %v3244, %v2599
        %v3295 = vsel %vm1903, %v3245, %v1404
        %v3297 = vsel %vm1903, %v3247, %v2601
        %v3298 = vsel %vm1903, %v3248, %v1406
        %v3300 = vsel %vm1903, %v3250, %v2603
        %v3301 = vsel %vm1903, %v3251, %v1408
        %v3303 = vsel %vm1903, %v3253, %v2605
        %v3304 = vsel %vm1903, %v3254, %v1410
        %v3306 = vsel %vm1903, %v3256, %v2607
        %v3307 = vsel %vm1903, %v3257, %v1412
        %v3309 = vsel %vm1903, %v3259, %v2609
        %v3310 = vsel %vm1903, %v3260, %v1414
        %v3312 = vsel %vm1903, %v3262, %v2611
        %v3314 = vsel %vm1903, %v3264, %v2613
        %v3316 = vsel %vm1903, %v3266, %v2615
        %v3318 = vsel %vm1903, %v3268, %v2617
        %v3320 = vsel %vm1903, %v3270, %v2619
        %v3322 = vsel %vm1936, %v3271, %v2627
        %v3323 = vsel %vm1936, %v3273, %v2627
        %v3325 = vsel %vm1936, %v3274, %v2629
        %v3326 = vsel %vm1936, %v3276, %v2629
        %v3328 = vsel %vm1936, %v3277, %v2631
        %v3329 = vsel %vm1936, %v3279, %v2631
        %v3331 = vsel %vm1936, %v3280, %v2633
        %v3332 = vsel %vm1936, %v3282, %v2633
        %v3334 = vsel %vm1936, %v3283, %v2635
        %v3335 = vsel %vm1936, %v3285, %v2635
        %v3337 = vsel %vm1936, %v3286, %v2637
        %v3338 = vsel %vm1936, %v3288, %v2637
        %v3340 = vsel %vm1936, %v3289, %v2639
        %v3341 = vsel %vm1936, %v3291, %v2639
        %v3343 = vsel %vm1936, %v3292, %v2641
        %v3344 = vsel %vm1936, %v3294, %v2641
        %v3346 = vsel %vm1936, %v3295, %v2643
        %v3347 = vsel %vm1936, %v3297, %v2643
        %v3349 = vsel %vm1936, %v3298, %v2645
        %v3350 = vsel %vm1936, %v3300, %v2645
        %v3352 = vsel %vm1936, %v3301, %v2647
        %v3353 = vsel %vm1936, %v3303, %v2647
        %v3355 = vsel %vm1936, %v3304, %v2649
        %v3356 = vsel %vm1936, %v3306, %v2649
        %v3358 = vsel %vm1936, %v3307, %v2651
        %v3359 = vsel %vm1936, %v3309, %v2651
        %v3361 = vsel %vm1936, %v3310, %v2653
        %v3362 = vsel %vm1936, %v3312, %v2653
        %v3364 = vsel %vm1936, %v3314, %v2655
        %v3365 = vsel %vm1936, %v3316, %v2655
        %v3367 = vsel %vm1936, %v3318, %v2657
        %v3368 = vsel %vm1936, %v3320, %v2657
        %v3370 = vsel %vm1969, %v3322, %v2673
        %v3372 = vsel %vm1969, %v3323, %v2675
        %v3374 = vsel %vm1969, %v3325, %v2677
        %v3376 = vsel %vm1969, %v3326, %v2679
        %v3378 = vsel %vm1969, %v3328, %v2681
        %v3380 = vsel %vm1969, %v3329, %v2683
        %v3382 = vsel %vm1969, %v3331, %v2685
        %v3384 = vsel %vm1969, %v3332, %v2687
        %v3386 = vsel %vm1969, %v3334, %v2689
        %v3388 = vsel %vm1969, %v3335, %v2691
        %v3390 = vsel %vm1969, %v3337, %v2693
        %v3392 = vsel %vm1969, %v3338, %v2695
        %v3394 = vsel %vm1969, %v3340, %v2697
        %v3396 = vsel %vm1969, %v3341, %v2699
        %v3398 = vsel %vm1969, %v3343, %v2701
        %v3400 = vsel %vm1969, %v3344, %v2703
        %v3402 = vsel %vm1969, %v3346, %v2705
        %v3404 = vsel %vm1969, %v3347, %v2707
        %v3406 = vsel %vm1969, %v3349, %v2709
        %v3408 = vsel %vm1969, %v3350, %v2711
        %v3410 = vsel %vm1969, %v3352, %v2713
        %v3412 = vsel %vm1969, %v3353, %v2715
        %v3414 = vsel %vm1969, %v3355, %v2717
        %v3416 = vsel %vm1969, %v3356, %v2719
        %v3418 = vsel %vm1969, %v3358, %v2721
        %v3420 = vsel %vm1969, %v3359, %v2723
        %v3422 = vsel %vm1969, %v3361, %v2725
        %v3424 = vsel %vm1969, %v3362, %v2727
        %v3426 = vsel %vm1969, %v3364, %v2729
        %v3428 = vsel %vm1969, %v3365, %v2731
        %v3430 = vsel %vm1969, %v3367, %v2733
        %v3432 = vsel %vm1969, %v3368, %v2735
        %v3433 = vsel %vm2002, %v3370, %v1499
        %v3435 = vsel %vm2002, %v3372, %v2737
        %v3436 = vsel %vm2002, %v3374, %v1501
        %v3438 = vsel %vm2002, %v3376, %v2739
        %v3439 = vsel %vm2002, %v3378, %v1503
        %v3441 = vsel %vm2002, %v3380, %v2741
        %v3442 = vsel %vm2002, %v3382, %v1505
        %v3444 = vsel %vm2002, %v3384, %v2743
        %v3445 = vsel %vm2002, %v3386, %v1507
        %v3447 = vsel %vm2002, %v3388, %v2745
        %v3448 = vsel %vm2002, %v3390, %v1509
        %v3450 = vsel %vm2002, %v3392, %v2747
        %v3451 = vsel %vm2002, %v3394, %v1511
        %v3453 = vsel %vm2002, %v3396, %v2749
        %v3454 = vsel %vm2002, %v3398, %v1513
        %v3456 = vsel %vm2002, %v3400, %v2751
        %v3457 = vsel %vm2002, %v3402, %v1515
        %v3459 = vsel %vm2002, %v3404, %v2753
        %v3460 = vsel %vm2002, %v3406, %v1517
        %v3462 = vsel %vm2002, %v3408, %v2755
        %v3463 = vsel %vm2002, %v3410, %v1519
        %v3465 = vsel %vm2002, %v3412, %v2757
        %v3466 = vsel %vm2002, %v3414, %v1521
        %v3468 = vsel %vm2002, %v3416, %v2759
        %v3469 = vsel %vm2002, %v3418, %v1523
        %v3471 = vsel %vm2002, %v3420, %v2761
        %v3472 = vsel %vm2002, %v3422, %v1525
        %v3474 = vsel %vm2002, %v3424, %v2763
        %v3476 = vsel %vm2002, %v3426, %v2765
        %v3478 = vsel %vm2002, %v3428, %v2767
        %v3480 = vsel %vm2002, %v3430, %v2769
        %v3482 = vsel %vm2002, %v3432, %v2771
        %v3483 = vsel %vm2035, %v3433, %v1546
        %v3485 = vsel %vm2035, %v3435, %v2780
        %v3486 = vsel %vm2035, %v3436, %v1548
        %v3488 = vsel %vm2035, %v3438, %v2782
        %v3489 = vsel %vm2035, %v3439, %v1550
        %v3491 = vsel %vm2035, %v3441, %v2784
        %v3492 = vsel %vm2035, %v3442, %v1552
        %v3494 = vsel %vm2035, %v3444, %v2786
        %v3495 = vsel %vm2035, %v3445, %v1554
        %v3497 = vsel %vm2035, %v3447, %v2788
        %v3498 = vsel %vm2035, %v3448, %v1556
        %v3500 = vsel %vm2035, %v3450, %v2790
        %v3501 = vsel %vm2035, %v3451, %v1558
        %v3503 = vsel %vm2035, %v3453, %v2792
        %v3504 = vsel %vm2035, %v3454, %v1560
        %v3506 = vsel %vm2035, %v3456, %v2794
        %v3507 = vsel %vm2035, %v3457, %v1562
        %v3509 = vsel %vm2035, %v3459, %v2796
        %v3510 = vsel %vm2035, %v3460, %v1564
        %v3512 = vsel %vm2035, %v3462, %v2798
        %v3513 = vsel %vm2035, %v3463, %v1566
        %v3515 = vsel %vm2035, %v3465, %v2800
        %v3516 = vsel %vm2035, %v3466, %v1568
        %v3518 = vsel %vm2035, %v3468, %v2802
        %v3519 = vsel %vm2035, %v3469, %v1570
        %v3521 = vsel %vm2035, %v3471, %v2804
        %v3522 = vsel %vm2035, %v3472, %v1572
        %v3524 = vsel %vm2035, %v3474, %v2806
        %v3526 = vsel %vm2035, %v3476, %v2808
        %v3528 = vsel %vm2035, %v3478, %v2810
        %v3530 = vsel %vm2035, %v3480, %v2812
        %v3532 = vsel %vm2035, %v3482, %v2814
        %3533 = vrot.lane.b32.xlu0 %v2459, 4
        %v3534 = vpop.permute.xlu0 %3533
        %3535 = vrot.lane.b32.xlu0 %v2462, 4
        %v3536 = vpop.permute.xlu0 %3535
        %3537 = vrot.lane.b32.xlu0 %v2775, 4
        %v3538 = vpop.permute.xlu0 %3537
        %3539 = vrot.lane.b32.xlu0 %v2778, 4
        %v3540 = vpop.permute.xlu0 %3539
        %v3541 = vrot.slane %v2624, 1
        %v3542 = vrot.slane %v2660, 1
        %v3543 = vsel %vm655, %v3541, %v3542
        %3544 = vrot.lane.b32.xlu0 %v2501, 8
        %v3545 = vpop.permute.xlu0 %3544
        %3546 = vrot.lane.b32.xlu0 %v2500, 8
        %v3547 = vpop.permute.xlu0 %3546
        %3548 = vrot.lane.b32.xlu0 %v3543, 8
        %v3549 = vpop.permute.xlu0 %3548
        %3550 = vrot.lane.b32.xlu0 %v3542, 8
        %v3551 = vpop.permute.xlu0 %3550
        %v3554 = vunpack.c.l.b16 %v296
        %v3555 = vunpack.c.l.b16 %v297
        %v3556 = vpack.c.b16 %v3555, %v3554
        %v3557 = vrot.slane %v371, 6
        %v3558 = vrot.slane %v372, 6
        %v3559 = vrot.slane %v373, 6
        %v3560 = vrot.slane %v374, 6
        %v3561 = vrot.slane %v375, 6
        %v3562 = vrot.slane %v376, 6
        %v3563 = vrot.slane %v377, 6
        %v3564 = vrot.slane %v378, 6
        %v3565 = vrot.slane %v379, 6
        %v3566 = vrot.slane %v380, 6
        %v3567 = vrot.slane %v381, 6
        %v3568 = vrot.slane %v1224, 6
        %v3569 = vrot.slane %v1493, 6
        %v3570 = vrot.slane %v2247, 6
        %v3571 = vrot.slane %v2624, 6
        %v3572 = vrot.slane %v3556, 6
        %3573 = vrot.lane.b32.xlu0 %v3557, 12
        %v3574 = vpop.permute.xlu0 %3573
        %3575 = vrot.lane.b32.xlu0 %v3558, 12
        %v3576 = vpop.permute.xlu0 %3575
        %3577 = vrot.lane.b32.xlu0 %v3559, 12
        %v3578 = vpop.permute.xlu0 %3577
        %3579 = vrot.lane.b32.xlu0 %v3560, 12
        %v3580 = vpop.permute.xlu0 %3579
        %3581 = vrot.lane.b32.xlu0 %v3561, 12
        %v3582 = vpop.permute.xlu0 %3581
        %3583 = vrot.lane.b32.xlu0 %v3562, 12
        %v3584 = vpop.permute.xlu0 %3583
        %3585 = vrot.lane.b32.xlu0 %v3563, 12
        %v3586 = vpop.permute.xlu0 %3585
        %3587 = vrot.lane.b32.xlu0 %v3564, 12
        %v3588 = vpop.permute.xlu0 %3587
        %3589 = vrot.lane.b32.xlu0 %v3565, 12
        %v3590 = vpop.permute.xlu0 %3589
        %3591 = vrot.lane.b32.xlu0 %v3566, 12
        %v3592 = vpop.permute.xlu0 %3591
        %3593 = vrot.lane.b32.xlu0 %v3567, 12
        %v3594 = vpop.permute.xlu0 %3593
        %3595 = vrot.lane.b32.xlu0 %v3568, 12
        %v3596 = vpop.permute.xlu0 %3595
        %3597 = vrot.lane.b32.xlu0 %v3569, 12
        %v3598 = vpop.permute.xlu0 %3597
        %3599 = vrot.lane.b32.xlu0 %v3570, 12
        %v3600 = vpop.permute.xlu0 %3599
        %3601 = vrot.lane.b32.xlu0 %v3571, 12
        %v3602 = vpop.permute.xlu0 %3601
        %3603 = vrot.lane.b32.xlu0 %v3572, 12
        %v3604 = vpop.permute.xlu0 %3603
        %v3606 = vunpack.c.l.b16 %v298
        %v3607 = vpack.c.b16 %v3606, %v3606
        %vm3608 = vsmask.f32 1280
        %v3609 = vrot.slane %v492, 6
        %v3610 = vrot.slane %v494, 7
        %v3611 = vor.u32 %v3609, %v3610
        %v3612 = vrot.slane %v499, 7
        %v3613 = vsel %vm3608, %v3611, %v3612
        %v3614 = vrot.slane %v504, 6
        %v3615 = vrot.slane %v506, 7
        %v3616 = vor.u32 %v3614, %v3615
        %v3617 = vrot.slane %v511, 7
        %v3618 = vsel %vm3608, %v3616, %v3617
        %v3619 = vrot.slane %v516, 6
        %v3620 = vrot.slane %v518, 7
        %v3621 = vor.u32 %v3619, %v3620
        %v3622 = vrot.slane %v523, 7
        %v3623 = vsel %vm3608, %v3621, %v3622
        %v3624 = vrot.slane %v528, 6
        %v3625 = vrot.slane %v530, 7
        %v3626 = vor.u32 %v3624, %v3625
        %v3627 = vrot.slane %v535, 7
        %v3628 = vsel %vm3608, %v3626, %v3627
        %v3629 = vrot.slane %v540, 6
        %v3630 = vrot.slane %v542, 7
        %v3631 = vor.u32 %v3629, %v3630
        %v3632 = vrot.slane %v547, 7
        %v3633 = vsel %vm3608, %v3631, %v3632
        %v3634 = vrot.slane %v552, 6
        %v3635 = vrot.slane %v554, 7
        %v3636 = vor.u32 %v3634, %v3635
        %v3637 = vrot.slane %v559, 7
        %v3638 = vsel %vm3608, %v3636, %v3637
        %v3639 = vrot.slane %v564, 6
        %v3640 = vrot.slane %v566, 7
        %v3641 = vor.u32 %v3639, %v3640
        %v3642 = vrot.slane %v571, 7
        %v3643 = vsel %vm3608, %v3641, %v3642
        %v3644 = vrot.slane %v576, 6
        %v3645 = vrot.slane %v578, 7
        %v3646 = vor.u32 %v3644, %v3645
        %v3647 = vrot.slane %v583, 7
        %v3648 = vsel %vm3608, %v3646, %v3647
        %v3649 = vrot.slane %v588, 6
        %v3650 = vrot.slane %v590, 7
        %v3651 = vor.u32 %v3649, %v3650
        %v3652 = vrot.slane %v595, 7
        %v3653 = vsel %vm3608, %v3651, %v3652
        %v3654 = vrot.slane %v600, 6
        %v3655 = vrot.slane %v602, 7
        %v3656 = vor.u32 %v3654, %v3655
        %v3657 = vrot.slane %v607, 7
        %v3658 = vsel %vm3608, %v3656, %v3657
        %v3659 = vrot.slane %v612, 6
        %v3660 = vrot.slane %v614, 7
        %v3661 = vor.u32 %v3659, %v3660
        %v3662 = vrot.slane %v619, 7
        %v3663 = vsel %vm3608, %v3661, %v3662
        %v3664 = vrot.slane %v1261, 6
        %v3665 = vrot.slane %v1263, 7
        %v3666 = vor.u32 %v3664, %v3665
        %v3667 = vrot.slane %v1268, 7
        %v3668 = vsel %vm3608, %v3666, %v3667
        %v3669 = vrot.slane %v1530, 6
        %v3670 = vrot.slane %v1532, 7
        %v3671 = vor.u32 %v3669, %v3670
        %v3672 = vrot.slane %v1537, 7
        %v3673 = vsel %vm3608, %v3671, %v3672
        %v3674 = vrot.slane %v2346, 6
        %v3675 = vrot.slane %v2349, 7
        %v3676 = vor.u32 %v3674, %v3675
        %v3677 = vrot.slane %v2353, 7
        %v3678 = vsel %vm3608, %v3676, %v3677
        %v3679 = vrot.slane %v2662, 6
        %v3680 = vrot.slane %v2665, 7
        %v3681 = vor.u32 %v3679, %v3680
        %v3682 = vrot.slane %v2669, 7
        %v3683 = vsel %vm3608, %v3681, %v3682
        %v3685 = vshrl.u32 %v3556, 16
        %v3687 = vrot.slane %v3685, 6
        %v3688 = vshll.u32 %v3556, 16
        %v3690 = vrot.slane %v3688, 7
        %v3691 = vor.u32 %v3687, %v3690
        %v3693 = vshll.u32 %v3607, 16
        %v3695 = vrot.slane %v3693, 7
        %v3696 = vsel %vm3608, %v3691, %v3695
        %3697 = vrot.lane.b32.xlu0 %v3611, 16
        %v3698 = vpop.permute.xlu0 %3697
        %3699 = vrot.lane.b32.xlu0 %v3613, 16
        %v3700 = vpop.permute.xlu0 %3699
        %3701 = vrot.lane.b32.xlu0 %v3616, 16
        %v3702 = vpop.permute.xlu0 %3701
        %3703 = vrot.lane.b32.xlu0 %v3618, 16
        %v3704 = vpop.permute.xlu0 %3703
        %3705 = vrot.lane.b32.xlu0 %v3621, 16
        %v3706 = vpop.permute.xlu0 %3705
        %3707 = vrot.lane.b32.xlu0 %v3623, 16
        %v3708 = vpop.permute.xlu0 %3707
        %3709 = vrot.lane.b32.xlu0 %v3626, 16
        %v3710 = vpop.permute.xlu0 %3709
        %3711 = vrot.lane.b32.xlu0 %v3628, 16
        %v3712 = vpop.permute.xlu0 %3711
        %3713 = vrot.lane.b32.xlu0 %v3631, 16
        %v3714 = vpop.permute.xlu0 %3713
        %3715 = vrot.lane.b32.xlu0 %v3633, 16
        %v3716 = vpop.permute.xlu0 %3715
        %3717 = vrot.lane.b32.xlu0 %v3636, 16
        %v3718 = vpop.permute.xlu0 %3717
        %3719 = vrot.lane.b32.xlu0 %v3638, 16
        %v3720 = vpop.permute.xlu0 %3719
        %3721 = vrot.lane.b32.xlu0 %v3641, 16
        %v3722 = vpop.permute.xlu0 %3721
        %3723 = vrot.lane.b32.xlu0 %v3643, 16
        %v3724 = vpop.permute.xlu0 %3723
        %3725 = vrot.lane.b32.xlu0 %v3646, 16
        %v3726 = vpop.permute.xlu0 %3725
        %3727 = vrot.lane.b32.xlu0 %v3648, 16
        %v3728 = vpop.permute.xlu0 %3727
        %3729 = vrot.lane.b32.xlu0 %v3651, 16
        %v3730 = vpop.permute.xlu0 %3729
        %3731 = vrot.lane.b32.xlu0 %v3653, 16
        %v3732 = vpop.permute.xlu0 %3731
        %3733 = vrot.lane.b32.xlu0 %v3656, 16
        %v3734 = vpop.permute.xlu0 %3733
        %3735 = vrot.lane.b32.xlu0 %v3658, 16
        %v3736 = vpop.permute.xlu0 %3735
        %3737 = vrot.lane.b32.xlu0 %v3661, 16
        %v3738 = vpop.permute.xlu0 %3737
        %3739 = vrot.lane.b32.xlu0 %v3663, 16
        %v3740 = vpop.permute.xlu0 %3739
        %3741 = vrot.lane.b32.xlu0 %v3666, 16
        %v3742 = vpop.permute.xlu0 %3741
        %3743 = vrot.lane.b32.xlu0 %v3668, 16
        %v3744 = vpop.permute.xlu0 %3743
        %3745 = vrot.lane.b32.xlu0 %v3671, 16
        %v3746 = vpop.permute.xlu0 %3745
        %3747 = vrot.lane.b32.xlu0 %v3673, 16
        %v3748 = vpop.permute.xlu0 %3747
        %3749 = vrot.lane.b32.xlu0 %v3676, 16
        %v3750 = vpop.permute.xlu0 %3749
        %3751 = vrot.lane.b32.xlu0 %v3678, 16
        %v3752 = vpop.permute.xlu0 %3751
        %3753 = vrot.lane.b32.xlu0 %v3681, 16
        %v3754 = vpop.permute.xlu0 %3753
        %3755 = vrot.lane.b32.xlu0 %v3683, 16
        %v3756 = vpop.permute.xlu0 %3755
        %3757 = vrot.lane.b32.xlu0 %v3691, 16
        %v3758 = vpop.permute.xlu0 %3757
        %3759 = vrot.lane.b32.xlu0 %v3696, 16
        %v3760 = vpop.permute.xlu0 %3759
        %vm3761 = vcmask 1040384
        %v3762 = vrot.slane %v419, 7
        %v3763 = vsel %vm3761, %v2250, %v3762
        %v3764 = vrot.slane %v420, 7
        %v3765 = vsel %vm3761, %v2251, %v3764
        %v3766 = vrot.slane %v421, 7
        %v3767 = vsel %vm3761, %v2252, %v3766
        %v3768 = vrot.slane %v422, 7
        %v3769 = vsel %vm3761, %v2253, %v3768
        %v3770 = vrot.slane %v423, 7
        %v3771 = vsel %vm3761, %v2254, %v3770
        %v3772 = vrot.slane %v424, 7
        %v3773 = vsel %vm3761, %v2255, %v3772
        %v3774 = vrot.slane %v425, 7
        %v3775 = vsel %vm3761, %v2256, %v3774
        %v3776 = vrot.slane %v426, 7
        %v3777 = vsel %vm3761, %v2257, %v3776
        %v3778 = vrot.slane %v427, 7
        %v3779 = vsel %vm3761, %v2258, %v3778
        %v3780 = vrot.slane %v428, 7
        %v3781 = vsel %vm3761, %v2259, %v3780
        %v3782 = vrot.slane %v429, 7
        %v3783 = vsel %vm3761, %v2260, %v3782
        %v3784 = vrot.slane %v1259, 7
        %v3785 = vsel %vm3761, %v2261, %v3784
        %v3786 = vrot.slane %v1528, 7
        %v3787 = vsel %vm3761, %v2262, %v3786
        %v3788 = vrot.slane %v2298, 7
        %v3789 = vsel %vm3761, %v2263, %v3788
        %v3790 = vrot.slane %v2660, 7
        %v3791 = vsel %vm3761, %v2625, %v3790
        %v3792 = vrot.slane %v3556, 7
        %v3793 = vrot.slane %v3607, 7
        %v3794 = vsel %vm3761, %v3792, %v3793
        %3795 = vrot.lane.b32.xlu0 %v3763, 20
        %v3796 = vpop.permute.xlu0 %3795
        %3797 = vrot.lane.b32.xlu0 %v3765, 20
        %v3798 = vpop.permute.xlu0 %3797
        %3799 = vrot.lane.b32.xlu0 %v3767, 20
        %v3800 = vpop.permute.xlu0 %3799
        %3801 = vrot.lane.b32.xlu0 %v3769, 20
        %v3802 = vpop.permute.xlu0 %3801
        %3803 = vrot.lane.b32.xlu0 %v3771, 20
        %v3804 = vpop.permute.xlu0 %3803
        %3805 = vrot.lane.b32.xlu0 %v3773, 20
        %v3806 = vpop.permute.xlu0 %3805
        %3807 = vrot.lane.b32.xlu0 %v3775, 20
        %v3808 = vpop.permute.xlu0 %3807
        %3809 = vrot.lane.b32.xlu0 %v3777, 20
        %v3810 = vpop.permute.xlu0 %3809
        %3811 = vrot.lane.b32.xlu0 %v3779, 20
        %v3812 = vpop.permute.xlu0 %3811
        %3813 = vrot.lane.b32.xlu0 %v3781, 20
        %v3814 = vpop.permute.xlu0 %3813
        %3815 = vrot.lane.b32.xlu0 %v3783, 20
        %v3816 = vpop.permute.xlu0 %3815
        %3817 = vrot.lane.b32.xlu0 %v3785, 20
        %v3818 = vpop.permute.xlu0 %3817
        %3819 = vrot.lane.b32.xlu0 %v3787, 20
        %v3820 = vpop.permute.xlu0 %3819
        %3821 = vrot.lane.b32.xlu0 %v3789, 20
        %v3822 = vpop.permute.xlu0 %3821
        %3823 = vrot.lane.b32.xlu0 %v2625, 20
        %v3824 = vpop.permute.xlu0 %3823
        %3825 = vrot.lane.b32.xlu0 %v3791, 20
        %v3826 = vpop.permute.xlu0 %3825
        %3827 = vrot.lane.b32.xlu0 %v3792, 20
        %v3828 = vpop.permute.xlu0 %3827
        %3829 = vrot.lane.b32.xlu0 %v3794, 20
        %v3830 = vpop.permute.xlu0 %3829
        %v3831 = vrot.slane %v785, 7
        %v3832 = vor.u32 %v3831, %v499
        %v3833 = vsel %vm2299, %v2306, %v3832
        %v3834 = vrot.slane %v794, 7
        %v3835 = vor.u32 %v3834, %v511
        %v3836 = vsel %vm2299, %v2309, %v3835
        %v3837 = vrot.slane %v803, 7
        %v3838 = vor.u32 %v3837, %v523
        %v3839 = vsel %vm2299, %v2312, %v3838
        %v3840 = vrot.slane %v812, 7
        %v3841 = vor.u32 %v3840, %v535
        %v3842 = vsel %vm2299, %v2315, %v3841
        %v3843 = vrot.slane %v821, 7
        %v3844 = vor.u32 %v3843, %v547
        %v3845 = vsel %vm2299, %v2318, %v3844
        %v3846 = vrot.slane %v830, 7
        %v3847 = vor.u32 %v3846, %v559
        %v3848 = vsel %vm2299, %v2321, %v3847
        %v3849 = vrot.slane %v839, 7
        %v3850 = vor.u32 %v3849, %v571
        %v3851 = vsel %vm2299, %v2324, %v3850
        %v3852 = vrot.slane %v848, 7
        %v3853 = vor.u32 %v3852, %v583
        %v3854 = vsel %vm2299, %v2327, %v3853
        %v3855 = vrot.slane %v857, 7
        %v3856 = vor.u32 %v3855, %v595
        %v3857 = vsel %vm2299, %v2330, %v3856
        %v3858 = vrot.slane %v866, 7
        %v3859 = vor.u32 %v3858, %v607
        %v3860 = vsel %vm2299, %v2333, %v3859
        %v3861 = vrot.slane %v875, 7
        %v3862 = vor.u32 %v3861, %v619
        %v3863 = vsel %vm2299, %v2336, %v3862
        %v3864 = vrot.slane %v1342, 7
        %v3865 = vor.u32 %v3864, %v1268
        %v3866 = vsel %vm2299, %v2339, %v3865
        %v3867 = vrot.slane %v2083, 7
        %v3868 = vor.u32 %v3867, %v1537
        %v3869 = vsel %vm2299, %v2342, %v3868
        %v3870 = vrot.slane %v2460, 7
        %v3871 = vor.u32 %v3870, %v2353
        %v3872 = vsel %vm2299, %v2348, %v3871
        %v3873 = vrot.slane %v2776, 7
        %v3874 = vor.u32 %v3873, %v2669
        %v3875 = vsel %vm2299, %v2664, %v3874
        %v3876 = vrot.slane %v3685, 7
        %v3877 = vor.u32 %v3876, %v3688
        %v3878 = vshrl.u32 %v3607, 16
        %v3880 = vrot.slane %v3878, 7
        %v3881 = vor.u32 %v3880, %v3693
        %v3882 = vsel %vm2299, %v3876, %v3881
        %3883 = vrot.lane.b32.xlu0 %v3833, 24
        %v3884 = vpop.permute.xlu0 %3883
        %3885 = vrot.lane.b32.xlu0 %v3836, 24
        %v3886 = vpop.permute.xlu0 %3885
        %3887 = vrot.lane.b32.xlu0 %v3839, 24
        %v3888 = vpop.permute.xlu0 %3887
        %3889 = vrot.lane.b32.xlu0 %v3842, 24
        %v3890 = vpop.permute.xlu0 %3889
        %3891 = vrot.lane.b32.xlu0 %v3845, 24
        %v3892 = vpop.permute.xlu0 %3891
        %3893 = vrot.lane.b32.xlu0 %v3848, 24
        %v3894 = vpop.permute.xlu0 %3893
        %3895 = vrot.lane.b32.xlu0 %v3851, 24
        %v3896 = vpop.permute.xlu0 %3895
        %3897 = vrot.lane.b32.xlu0 %v3854, 24
        %v3898 = vpop.permute.xlu0 %3897
        %3899 = vrot.lane.b32.xlu0 %v3857, 24
        %v3900 = vpop.permute.xlu0 %3899
        %3901 = vrot.lane.b32.xlu0 %v3860, 24
        %v3902 = vpop.permute.xlu0 %3901
        %3903 = vrot.lane.b32.xlu0 %v3863, 24
        %v3904 = vpop.permute.xlu0 %3903
        %3905 = vrot.lane.b32.xlu0 %v3866, 24
        %v3906 = vpop.permute.xlu0 %3905
        %3907 = vrot.lane.b32.xlu0 %v3869, 24
        %v3908 = vpop.permute.xlu0 %3907
        %3909 = vrot.lane.b32.xlu0 %v3872, 24
        %v3910 = vpop.permute.xlu0 %3909
        %3911 = vrot.lane.b32.xlu0 %v2667, 24
        %v3912 = vpop.permute.xlu0 %3911
        %3913 = vrot.lane.b32.xlu0 %v3875, 24
        %v3914 = vpop.permute.xlu0 %3913
        %3915 = vrot.lane.b32.xlu0 %v3877, 24
        %v3916 = vpop.permute.xlu0 %3915
        %3917 = vrot.lane.b32.xlu0 %v3882, 24
        %v3918 = vpop.permute.xlu0 %3917
        %3919 = vrot.lane.b32.xlu0 %v2624, 28
        %v3920 = vpop.permute.xlu0 %3919
        %3921 = vrot.lane.b32.xlu0 %v2660, 28
        %v3922 = vpop.permute.xlu0 %3921
        %3923 = vrot.lane.b32.xlu0 %v3556, 28
        %v3924 = vpop.permute.xlu0 %3923
        %3925 = vrot.lane.b32.xlu0 %v3607, 28
        %v3926 = vpop.permute.xlu0 %3925
        %v3927 = vrot.slane %v3688, 1
        %v3928 = vor.u32 %v3685, %v3927
        %v3929 = vrot.slane %v3693, 1
        %v3930 = vsel %vm430, %v3928, %v3929
        %v3931 = vor.u32 %v3878, %v3929
        %3932 = vrot.lane.b32.xlu0 %v2775, 32
        %v3933 = vpop.permute.xlu0 %3932
        %3934 = vrot.lane.b32.xlu0 %v2778, 32
        %v3935 = vpop.permute.xlu0 %3934
        %3936 = vrot.lane.b32.xlu0 %v3930, 32
        %v3937 = vpop.permute.xlu0 %3936
        %3938 = vrot.lane.b32.xlu0 %v3931, 32
        %v3939 = vpop.permute.xlu0 %3938
        %v3940 = vrot.slane %v3556, 1
        %v3941 = vrot.slane %v3607, 1
        %v3942 = vsel %vm655, %v3940, %v3941
        %3943 = vrot.lane.b32.xlu0 %v3543, 36
        %v3944 = vpop.permute.xlu0 %3943
        %3945 = vrot.lane.b32.xlu0 %v3542, 36
        %v3946 = vpop.permute.xlu0 %3945
        %3947 = vrot.lane.b32.xlu0 %v3942, 36
        %v3948 = vpop.permute.xlu0 %3947
        %3949 = vrot.lane.b32.xlu0 %v3941, 36
        %v3950 = vpop.permute.xlu0 %3949
        %v3953 = vunpack.c.l.b16 %v299
        %v3954 = vunpack.c.l.b16 %v300
        %v3955 = vpack.c.b16 %v3954, %v3953
        %v3956 = vrot.slane %v3955, 6
        %3957 = vrot.lane.b32.xlu0 %v3558, 40
        %v3958 = vpop.permute.xlu0 %3957
        %3959 = vrot.lane.b32.xlu0 %v3559, 40
        %v3960 = vpop.permute.xlu0 %3959
        %3961 = vrot.lane.b32.xlu0 %v3560, 40
        %v3962 = vpop.permute.xlu0 %3961
        %3963 = vrot.lane.b32.xlu0 %v3561, 40
        %v3964 = vpop.permute.xlu0 %3963
        %3965 = vrot.lane.b32.xlu0 %v3562, 40
        %v3966 = vpop.permute.xlu0 %3965
        %3967 = vrot.lane.b32.xlu0 %v3563, 40
        %v3968 = vpop.permute.xlu0 %3967
        %3969 = vrot.lane.b32.xlu0 %v3564, 40
        %v3970 = vpop.permute.xlu0 %3969
        %3971 = vrot.lane.b32.xlu0 %v3565, 40
        %v3972 = vpop.permute.xlu0 %3971
        %3973 = vrot.lane.b32.xlu0 %v3566, 40
        %v3974 = vpop.permute.xlu0 %3973
        %3975 = vrot.lane.b32.xlu0 %v3567, 40
        %v3976 = vpop.permute.xlu0 %3975
        %3977 = vrot.lane.b32.xlu0 %v3568, 40
        %v3978 = vpop.permute.xlu0 %3977
        %3979 = vrot.lane.b32.xlu0 %v3569, 40
        %v3980 = vpop.permute.xlu0 %3979
        %3981 = vrot.lane.b32.xlu0 %v3570, 40
        %v3982 = vpop.permute.xlu0 %3981
        %3983 = vrot.lane.b32.xlu0 %v3571, 40
        %v3984 = vpop.permute.xlu0 %3983
        %3985 = vrot.lane.b32.xlu0 %v3572, 40
        %v3986 = vpop.permute.xlu0 %3985
        %3987 = vrot.lane.b32.xlu0 %v3956, 40
        %v3988 = vpop.permute.xlu0 %3987
        %v3990 = vunpack.c.l.b16 %v301
        %v3991 = vpack.c.b16 %v3990, %v3990
        %v3993 = vshrl.u32 %v3955, 16
        %v3995 = vrot.slane %v3993, 6
        %v3996 = vshll.u32 %v3955, 16
        %v3998 = vrot.slane %v3996, 7
        %v3999 = vor.u32 %v3995, %v3998
        %v4001 = vshll.u32 %v3991, 16
        %v4003 = vrot.slane %v4001, 7
        %v4004 = vsel %vm3608, %v3999, %v4003
        %4005 = vrot.lane.b32.xlu0 %v3616, 44
        %v4006 = vpop.permute.xlu0 %4005
        %4007 = vrot.lane.b32.xlu0 %v3618, 44
        %v4008 = vpop.permute.xlu0 %4007
        %4009 = vrot.lane.b32.xlu0 %v3621, 44
        %v4010 = vpop.permute.xlu0 %4009
        %4011 = vrot.lane.b32.xlu0 %v3623, 44
        %v4012 = vpop.permute.xlu0 %4011
        %4013 = vrot.lane.b32.xlu0 %v3626, 44
        %v4014 = vpop.permute.xlu0 %4013
        %4015 = vrot.lane.b32.xlu0 %v3628, 44
        %v4016 = vpop.permute.xlu0 %4015
        %4017 = vrot.lane.b32.xlu0 %v3631, 44
        %v4018 = vpop.permute.xlu0 %4017
        %4019 = vrot.lane.b32.xlu0 %v3633, 44
        %v4020 = vpop.permute.xlu0 %4019
        %4021 = vrot.lane.b32.xlu0 %v3636, 44
        %v4022 = vpop.permute.xlu0 %4021
        %4023 = vrot.lane.b32.xlu0 %v3638, 44
        %v4024 = vpop.permute.xlu0 %4023
        %4025 = vrot.lane.b32.xlu0 %v3641, 44
        %v4026 = vpop.permute.xlu0 %4025
        %4027 = vrot.lane.b32.xlu0 %v3643, 44
        %v4028 = vpop.permute.xlu0 %4027
        %4029 = vrot.lane.b32.xlu0 %v3646, 44
        %v4030 = vpop.permute.xlu0 %4029
        %4031 = vrot.lane.b32.xlu0 %v3648, 44
        %v4032 = vpop.permute.xlu0 %4031
        %4033 = vrot.lane.b32.xlu0 %v3651, 44
        %v4034 = vpop.permute.xlu0 %4033
        %4035 = vrot.lane.b32.xlu0 %v3653, 44
        %v4036 = vpop.permute.xlu0 %4035
        %4037 = vrot.lane.b32.xlu0 %v3656, 44
        %v4038 = vpop.permute.xlu0 %4037
        %4039 = vrot.lane.b32.xlu0 %v3658, 44
        %v4040 = vpop.permute.xlu0 %4039
        %4041 = vrot.lane.b32.xlu0 %v3661, 44
        %v4042 = vpop.permute.xlu0 %4041
        %4043 = vrot.lane.b32.xlu0 %v3663, 44
        %v4044 = vpop.permute.xlu0 %4043
        %4045 = vrot.lane.b32.xlu0 %v3666, 44
        %v4046 = vpop.permute.xlu0 %4045
        %4047 = vrot.lane.b32.xlu0 %v3668, 44
        %v4048 = vpop.permute.xlu0 %4047
        %4049 = vrot.lane.b32.xlu0 %v3671, 44
        %v4050 = vpop.permute.xlu0 %4049
        %4051 = vrot.lane.b32.xlu0 %v3673, 44
        %v4052 = vpop.permute.xlu0 %4051
        %4053 = vrot.lane.b32.xlu0 %v3676, 44
        %v4054 = vpop.permute.xlu0 %4053
        %4055 = vrot.lane.b32.xlu0 %v3678, 44
        %v4056 = vpop.permute.xlu0 %4055
        %4057 = vrot.lane.b32.xlu0 %v3681, 44
        %v4058 = vpop.permute.xlu0 %4057
        %4059 = vrot.lane.b32.xlu0 %v3683, 44
        %v4060 = vpop.permute.xlu0 %4059
        %4061 = vrot.lane.b32.xlu0 %v3691, 44
        %v4062 = vpop.permute.xlu0 %4061
        %4063 = vrot.lane.b32.xlu0 %v3696, 44
        %v4064 = vpop.permute.xlu0 %4063
        %4065 = vrot.lane.b32.xlu0 %v3999, 44
        %v4066 = vpop.permute.xlu0 %4065
        %4067 = vrot.lane.b32.xlu0 %v4004, 44
        %v4068 = vpop.permute.xlu0 %4067
        %v4069 = vrot.slane %v3955, 7
        %v4070 = vrot.slane %v3991, 7
        %v4071 = vsel %vm3761, %v4069, %v4070
        %4072 = vrot.lane.b32.xlu0 %v3765, 48
        %v4073 = vpop.permute.xlu0 %4072
        %4074 = vrot.lane.b32.xlu0 %v3767, 48
        %v4075 = vpop.permute.xlu0 %4074
        %4076 = vrot.lane.b32.xlu0 %v3769, 48
        %v4077 = vpop.permute.xlu0 %4076
        %4078 = vrot.lane.b32.xlu0 %v3771, 48
        %v4079 = vpop.permute.xlu0 %4078
        %4080 = vrot.lane.b32.xlu0 %v3773, 48
        %v4081 = vpop.permute.xlu0 %4080
        %4082 = vrot.lane.b32.xlu0 %v3775, 48
        %v4083 = vpop.permute.xlu0 %4082
        %4084 = vrot.lane.b32.xlu0 %v3777, 48
        %v4085 = vpop.permute.xlu0 %4084
        %4086 = vrot.lane.b32.xlu0 %v3779, 48
        %v4087 = vpop.permute.xlu0 %4086
        %4088 = vrot.lane.b32.xlu0 %v3781, 48
        %v4089 = vpop.permute.xlu0 %4088
        %4090 = vrot.lane.b32.xlu0 %v3783, 48
        %v4091 = vpop.permute.xlu0 %4090
        %4092 = vrot.lane.b32.xlu0 %v3785, 48
        %v4093 = vpop.permute.xlu0 %4092
        %4094 = vrot.lane.b32.xlu0 %v3787, 48
        %v4095 = vpop.permute.xlu0 %4094
        %4096 = vrot.lane.b32.xlu0 %v3789, 48
        %v4097 = vpop.permute.xlu0 %4096
        %4098 = vrot.lane.b32.xlu0 %v3791, 48
        %v4099 = vpop.permute.xlu0 %4098
        %4100 = vrot.lane.b32.xlu0 %v3792, 48
        %v4101 = vpop.permute.xlu0 %4100
        %4102 = vrot.lane.b32.xlu0 %v3794, 48
        %v4103 = vpop.permute.xlu0 %4102
        %4104 = vrot.lane.b32.xlu0 %v4069, 48
        %v4105 = vpop.permute.xlu0 %4104
        %4106 = vrot.lane.b32.xlu0 %v4071, 48
        %v4107 = vpop.permute.xlu0 %4106
        %v4108 = vrot.slane %v3993, 7
        %v4109 = vor.u32 %v4108, %v3996
        %v4110 = vshrl.u32 %v3991, 16
        %v4112 = vrot.slane %v4110, 7
        %v4113 = vor.u32 %v4112, %v4001
        %v4114 = vsel %vm2299, %v4108, %v4113
        %4115 = vrot.lane.b32.xlu0 %v3836, 52
        %v4116 = vpop.permute.xlu0 %4115
        %4117 = vrot.lane.b32.xlu0 %v3839, 52
        %v4118 = vpop.permute.xlu0 %4117
        %4119 = vrot.lane.b32.xlu0 %v3842, 52
        %v4120 = vpop.permute.xlu0 %4119
        %4121 = vrot.lane.b32.xlu0 %v3845, 52
        %v4122 = vpop.permute.xlu0 %4121
        %4123 = vrot.lane.b32.xlu0 %v3848, 52
        %v4124 = vpop.permute.xlu0 %4123
        %4125 = vrot.lane.b32.xlu0 %v3851, 52
        %v4126 = vpop.permute.xlu0 %4125
        %4127 = vrot.lane.b32.xlu0 %v3854, 52
        %v4128 = vpop.permute.xlu0 %4127
        %4129 = vrot.lane.b32.xlu0 %v3857, 52
        %v4130 = vpop.permute.xlu0 %4129
        %4131 = vrot.lane.b32.xlu0 %v3860, 52
        %v4132 = vpop.permute.xlu0 %4131
        %4133 = vrot.lane.b32.xlu0 %v3863, 52
        %v4134 = vpop.permute.xlu0 %4133
        %4135 = vrot.lane.b32.xlu0 %v3866, 52
        %v4136 = vpop.permute.xlu0 %4135
        %4137 = vrot.lane.b32.xlu0 %v3869, 52
        %v4138 = vpop.permute.xlu0 %4137
        %4139 = vrot.lane.b32.xlu0 %v3872, 52
        %v4140 = vpop.permute.xlu0 %4139
        %4141 = vrot.lane.b32.xlu0 %v3875, 52
        %v4142 = vpop.permute.xlu0 %4141
        %4143 = vrot.lane.b32.xlu0 %v3877, 52
        %v4144 = vpop.permute.xlu0 %4143
        %4145 = vrot.lane.b32.xlu0 %v3882, 52
        %v4146 = vpop.permute.xlu0 %4145
        %4147 = vrot.lane.b32.xlu0 %v4109, 52
        %v4148 = vpop.permute.xlu0 %4147
        %4149 = vrot.lane.b32.xlu0 %v4114, 52
        %v4150 = vpop.permute.xlu0 %4149
        %4151 = vrot.lane.b32.xlu0 %v3556, 56
        %v4152 = vpop.permute.xlu0 %4151
        %4153 = vrot.lane.b32.xlu0 %v3607, 56
        %v4154 = vpop.permute.xlu0 %4153
        %4155 = vrot.lane.b32.xlu0 %v3955, 56
        %v4156 = vpop.permute.xlu0 %4155
        %4157 = vrot.lane.b32.xlu0 %v3991, 56
        %v4158 = vpop.permute.xlu0 %4157
        %v4159 = vrot.slane %v3996, 1
        %v4160 = vor.u32 %v3993, %v4159
        %v4161 = vrot.slane %v4001, 1
        %v4162 = vsel %vm430, %v4160, %v4161
        %v4163 = vor.u32 %v4110, %v4161
        %4164 = vrot.lane.b32.xlu0 %v3930, 60
        %v4165 = vpop.permute.xlu0 %4164
        %4166 = vrot.lane.b32.xlu0 %v3931, 60
        %v4167 = vpop.permute.xlu0 %4166
        %4168 = vrot.lane.b32.xlu0 %v4162, 60
        %v4169 = vpop.permute.xlu0 %4168
        %4170 = vrot.lane.b32.xlu0 %v4163, 60
        %v4171 = vpop.permute.xlu0 %4170
        %v4173 = vsel %vm1573, %v2247, %v3534
        %v4175 = vsel %vm1573, %v2298, %v3536
        %v4177 = vsel %vm1573, %v2624, %v3538
        %v4179 = vsel %vm1573, %v2660, %v3540
        %v4181 = vsel %vm1606, %v4173, %v3545
        %v4183 = vsel %vm1606, %v4175, %v3547
        %v4185 = vsel %vm1606, %v4177, %v3549
        %v4187 = vsel %vm1606, %v4179, %v3551
        %v4189 = vsel %vm1639, %v1616, %v3574
        %v4190 = vsel %vm1639, %v2856, %v3574
        %v4192 = vsel %vm1639, %v1618, %v3576
        %v4193 = vsel %vm1639, %v2858, %v3576
        %v4195 = vsel %vm1639, %v1620, %v3578
        %v4196 = vsel %vm1639, %v2860, %v3578
        %v4198 = vsel %vm1639, %v1622, %v3580
        %v4199 = vsel %vm1639, %v2862, %v3580
        %v4201 = vsel %vm1639, %v1624, %v3582
        %v4202 = vsel %vm1639, %v2864, %v3582
        %v4204 = vsel %vm1639, %v1626, %v3584
        %v4205 = vsel %vm1639, %v2866, %v3584
        %v4207 = vsel %vm1639, %v1628, %v3586
        %v4208 = vsel %vm1639, %v2868, %v3586
        %v4210 = vsel %vm1639, %v1630, %v3588
        %v4211 = vsel %vm1639, %v2870, %v3588
        %v4213 = vsel %vm1639, %v1632, %v3590
        %v4214 = vsel %vm1639, %v2872, %v3590
        %v4216 = vsel %vm1639, %v1634, %v3592
        %v4217 = vsel %vm1639, %v2874, %v3592
        %v4219 = vsel %vm1639, %v1636, %v3594
        %v4220 = vsel %vm1639, %v2876, %v3594
        %v4222 = vsel %vm1639, %v1638, %v3596
        %v4223 = vsel %vm1639, %v2878, %v3596
        %v4225 = vsel %vm1639, %v2880, %v3598
        %v4226 = vsel %vm1639, %v2882, %v3598
        %v4228 = vsel %vm1639, %v2884, %v3600
        %v4229 = vsel %vm1639, %v2886, %v3600
        %v4231 = vsel %vm1639, %v4181, %v3602
        %v4232 = vsel %vm1639, %v4183, %v3602
        %v4234 = vsel %vm1639, %v4185, %v3604
        %v4235 = vsel %vm1639, %v4187, %v3604
        %v4237 = vsel %vm1672, %v4189, %v3698
        %v4239 = vsel %vm1672, %v4190, %v3700
        %v4241 = vsel %vm1672, %v4192, %v3702
        %v4243 = vsel %vm1672, %v4193, %v3704
        %v4245 = vsel %vm1672, %v4195, %v3706
        %v4247 = vsel %vm1672, %v4196, %v3708
        %v4249 = vsel %vm1672, %v4198, %v3710
        %v4251 = vsel %vm1672, %v4199, %v3712
        %v4253 = vsel %vm1672, %v4201, %v3714
        %v4255 = vsel %vm1672, %v4202, %v3716
        %v4257 = vsel %vm1672, %v4204, %v3718
        %v4259 = vsel %vm1672, %v4205, %v3720
        %v4261 = vsel %vm1672, %v4207, %v3722
        %v4263 = vsel %vm1672, %v4208, %v3724
        %v4265 = vsel %vm1672, %v4210, %v3726
        %v4267 = vsel %vm1672, %v4211, %v3728
        %v4269 = vsel %vm1672, %v4213, %v3730
        %v4271 = vsel %vm1672, %v4214, %v3732
        %v4273 = vsel %vm1672, %v4216, %v3734
        %v4275 = vsel %vm1672, %v4217, %v3736
        %v4277 = vsel %vm1672, %v4219, %v3738
        %v4279 = vsel %vm1672, %v4220, %v3740
        %v4281 = vsel %vm1672, %v4222, %v3742
        %v4283 = vsel %vm1672, %v4223, %v3744
        %v4285 = vsel %vm1672, %v4225, %v3746
        %v4287 = vsel %vm1672, %v4226, %v3748
        %v4289 = vsel %vm1672, %v4228, %v3750
        %v4291 = vsel %vm1672, %v4229, %v3752
        %v4293 = vsel %vm1672, %v4231, %v3754
        %v4295 = vsel %vm1672, %v4232, %v3756
        %v4297 = vsel %vm1672, %v4234, %v3758
        %v4299 = vsel %vm1672, %v4235, %v3760
        %v4300 = vsel %vm1705, %v4237, %v2269
        %v4302 = vsel %vm1705, %v4239, %v3796
        %v4303 = vsel %vm1705, %v4241, %v2271
        %v4305 = vsel %vm1705, %v4243, %v3798
        %v4306 = vsel %vm1705, %v4245, %v2273
        %v4308 = vsel %vm1705, %v4247, %v3800
        %v4309 = vsel %vm1705, %v4249, %v2275
        %v4311 = vsel %vm1705, %v4251, %v3802
        %v4312 = vsel %vm1705, %v4253, %v2277
        %v4314 = vsel %vm1705, %v4255, %v3804
        %v4315 = vsel %vm1705, %v4257, %v2279
        %v4317 = vsel %vm1705, %v4259, %v3806
        %v4318 = vsel %vm1705, %v4261, %v2281
        %v4320 = vsel %vm1705, %v4263, %v3808
        %v4321 = vsel %vm1705, %v4265, %v2283
        %v4323 = vsel %vm1705, %v4267, %v3810
        %v4324 = vsel %vm1705, %v4269, %v2285
        %v4326 = vsel %vm1705, %v4271, %v3812
        %v4327 = vsel %vm1705, %v4273, %v2287
        %v4329 = vsel %vm1705, %v4275, %v3814
        %v4330 = vsel %vm1705, %v4277, %v2289
        %v4332 = vsel %vm1705, %v4279, %v3816
        %v4333 = vsel %vm1705, %v4281, %v2291
        %v4335 = vsel %vm1705, %v4283, %v3818
        %v4336 = vsel %vm1705, %v4285, %v2293
        %v4338 = vsel %vm1705, %v4287, %v3820
        %v4339 = vsel %vm1705, %v4289, %v2295
        %v4341 = vsel %vm1705, %v4291, %v3822
        %v4343 = vsel %vm1705, %v4293, %v3824
        %v4345 = vsel %vm1705, %v4295, %v3826
        %v4347 = vsel %vm1705, %v4297, %v3828
        %v4349 = vsel %vm1705, %v4299, %v3830
        %v4350 = vsel %vm1738, %v4300, %v2365
        %v4352 = vsel %vm1738, %v4302, %v3884
        %v4353 = vsel %vm1738, %v4303, %v2369
        %v4355 = vsel %vm1738, %v4305, %v3886
        %v4356 = vsel %vm1738, %v4306, %v2373
        %v4358 = vsel %vm1738, %v4308, %v3888
        %v4359 = vsel %vm1738, %v4309, %v2377
        %v4361 = vsel %vm1738, %v4311, %v3890
        %v4362 = vsel %vm1738, %v4312, %v2381
        %v4364 = vsel %vm1738, %v4314, %v3892
        %v4365 = vsel %vm1738, %v4315, %v2385
        %v4367 = vsel %vm1738, %v4317, %v3894
        %v4368 = vsel %vm1738, %v4318, %v2389
        %v4370 = vsel %vm1738, %v4320, %v3896
        %v4371 = vsel %vm1738, %v4321, %v2393
        %v4373 = vsel %vm1738, %v4323, %v3898
        %v4374 = vsel %vm1738, %v4324, %v2397
        %v4376 = vsel %vm1738, %v4326, %v3900
        %v4377 = vsel %vm1738, %v4327, %v2401
        %v4379 = vsel %vm1738, %v4329, %v3902
        %v4380 = vsel %vm1738, %v4330, %v2405
        %v4382 = vsel %vm1738, %v4332, %v3904
        %v4383 = vsel %vm1738, %v4333, %v2409
        %v4385 = vsel %vm1738, %v4335, %v3906
        %v4386 = vsel %vm1738, %v4336, %v2413
        %v4388 = vsel %vm1738, %v4338, %v3908
        %v4389 = vsel %vm1738, %v4339, %v2417
        %v4391 = vsel %vm1738, %v4341, %v3910
        %v4393 = vsel %vm1738, %v4343, %v3912
        %v4395 = vsel %vm1738, %v4345, %v3914
        %v4397 = vsel %vm1738, %v4347, %v3916
        %v4399 = vsel %vm1738, %v4349, %v3918
        %v4400 = vsel %vm1771, %v4350, %v1234
        %v4401 = vsel %vm1771, %v4352, %v2425
        %v4402 = vsel %vm1771, %v4353, %v1236
        %v4403 = vsel %vm1771, %v4355, %v2427
        %v4404 = vsel %vm1771, %v4356, %v1238
        %v4405 = vsel %vm1771, %v4358, %v2429
        %v4406 = vsel %vm1771, %v4359, %v1240
        %v4407 = vsel %vm1771, %v4361, %v2431
        %v4408 = vsel %vm1771, %v4362, %v1242
        %v4409 = vsel %vm1771, %v4364, %v2433
        %v4410 = vsel %vm1771, %v4365, %v1244
        %v4411 = vsel %vm1771, %v4367, %v2435
        %v4412 = vsel %vm1771, %v4368, %v1246
        %v4413 = vsel %vm1771, %v4370, %v2437
        %v4414 = vsel %vm1771, %v4371, %v1248
        %v4415 = vsel %vm1771, %v4373, %v2439
        %v4416 = vsel %vm1771, %v4374, %v1250
        %v4417 = vsel %vm1771, %v4376, %v2441
        %v4418 = vsel %vm1771, %v4377, %v1252
        %v4419 = vsel %vm1771, %v4379, %v2443
        %v4420 = vsel %vm1771, %v4380, %v1254
        %v4421 = vsel %vm1771, %v4382, %v2445
        %v4422 = vsel %vm1771, %v4383, %v1256
        %v4423 = vsel %vm1771, %v4385, %v2447
        %v4424 = vsel %vm1771, %v4386, %v2449
        %v4425 = vsel %vm1771, %v4388, %v2451
        %v4426 = vsel %vm1771, %v4389, %v2453
        %v4427 = vsel %vm1771, %v4391, %v2455
        %v4429 = vsel %vm1771, %v4393, %v3920
        %v4431 = vsel %vm1771, %v4395, %v3922
        %v4433 = vsel %vm1771, %v4397, %v3924
        %v4435 = vsel %vm1771, %v4399, %v3926
        %v4436 = vsel %vm1804, %v4400, %v1281
        %v4437 = vsel %vm1804, %v4401, %v2468
        %v4438 = vsel %vm1804, %v4402, %v1283
        %v4439 = vsel %vm1804, %v4403, %v2470
        %v4440 = vsel %vm1804, %v4404, %v1285
        %v4441 = vsel %vm1804, %v4405, %v2472
        %v4442 = vsel %vm1804, %v4406, %v1287
        %v4443 = vsel %vm1804, %v4407, %v2474
        %v4444 = vsel %vm1804, %v4408, %v1289
        %v4445 = vsel %vm1804, %v4409, %v2476
        %v4446 = vsel %vm1804, %v4410, %v1291
        %v4447 = vsel %vm1804, %v4411, %v2478
        %v4448 = vsel %vm1804, %v4412, %v1293
        %v4449 = vsel %vm1804, %v4413, %v2480
        %v4450 = vsel %vm1804, %v4414, %v1295
        %v4451 = vsel %vm1804, %v4415, %v2482
        %v4452 = vsel %vm1804, %v4416, %v1297
        %v4453 = vsel %vm1804, %v4417, %v2484
        %v4454 = vsel %vm1804, %v4418, %v1299
        %v4455 = vsel %vm1804, %v4419, %v2486
        %v4456 = vsel %vm1804, %v4420, %v1301
        %v4457 = vsel %vm1804, %v4421, %v2488
        %v4458 = vsel %vm1804, %v4422, %v1303
        %v4459 = vsel %vm1804, %v4423, %v2490
        %v4460 = vsel %vm1804, %v4424, %v2492
        %v4461 = vsel %vm1804, %v4425, %v2494
        %v4462 = vsel %vm1804, %v4426, %v2496
        %v4463 = vsel %vm1804, %v4427, %v2498
        %v4465 = vsel %vm1804, %v4429, %v3933
        %v4467 = vsel %vm1804, %v4431, %v3935
        %v4469 = vsel %vm1804, %v4433, %v3937
        %v4471 = vsel %vm1804, %v4435, %v3939
        %v4472 = vsel %vm1837, %v4436, %v1316
        %v4473 = vsel %vm1837, %v4437, %v2507
        %v4474 = vsel %vm1837, %v4438, %v1318
        %v4475 = vsel %vm1837, %v4439, %v2509
        %v4476 = vsel %vm1837, %v4440, %v1320
        %v4477 = vsel %vm1837, %v4441, %v2511
        %v4478 = vsel %vm1837, %v4442, %v1322
        %v4479 = vsel %vm1837, %v4443, %v2513
        %v4480 = vsel %vm1837, %v4444, %v1324
        %v4481 = vsel %vm1837, %v4445, %v2515
        %v4482 = vsel %vm1837, %v4446, %v1326
        %v4483 = vsel %vm1837, %v4447, %v2517
        %v4484 = vsel %vm1837, %v4448, %v1328
        %v4485 = vsel %vm1837, %v4449, %v2519
        %v4486 = vsel %vm1837, %v4450, %v1330
        %v4487 = vsel %vm1837, %v4451, %v2521
        %v4488 = vsel %vm1837, %v4452, %v1332
        %v4489 = vsel %vm1837, %v4453, %v2523
        %v4490 = vsel %vm1837, %v4454, %v1334
        %v4491 = vsel %vm1837, %v4455, %v2525
        %v4492 = vsel %vm1837, %v4456, %v1336
        %v4493 = vsel %vm1837, %v4457, %v2527
        %v4494 = vsel %vm1837, %v4458, %v1338
        %v4495 = vsel %vm1837, %v4459, %v2529
        %v4496 = vsel %vm1837, %v4460, %v2531
        %v4497 = vsel %vm1837, %v4461, %v2533
        %v4498 = vsel %vm1837, %v4462, %v2535
        %v4499 = vsel %vm1837, %v4463, %v2537
        %v4501 = vsel %vm1837, %v4465, %v3944
        %v4503 = vsel %vm1837, %v4467, %v3946
        %v4505 = vsel %vm1837, %v4469, %v3948
        %v4507 = vsel %vm1837, %v4471, %v3950
        %v4509 = vsel %vm1870, %v4472, %v3958
        %v4510 = vsel %vm1870, %v4473, %v3958
        %v4512 = vsel %vm1870, %v4474, %v3960
        %v4513 = vsel %vm1870, %v4475, %v3960
        %v4515 = vsel %vm1870, %v4476, %v3962
        %v4516 = vsel %vm1870, %v4477, %v3962
        %v4518 = vsel %vm1870, %v4478, %v3964
        %v4519 = vsel %vm1870, %v4479, %v3964
        %v4521 = vsel %vm1870, %v4480, %v3966
        %v4522 = vsel %vm1870, %v4481, %v3966
        %v4524 = vsel %vm1870, %v4482, %v3968
        %v4525 = vsel %vm1870, %v4483, %v3968
        %v4527 = vsel %vm1870, %v4484, %v3970
        %v4528 = vsel %vm1870, %v4485, %v3970
        %v4530 = vsel %vm1870, %v4486, %v3972
        %v4531 = vsel %vm1870, %v4487, %v3972
        %v4533 = vsel %vm1870, %v4488, %v3974
        %v4534 = vsel %vm1870, %v4489, %v3974
        %v4536 = vsel %vm1870, %v4490, %v3976
        %v4537 = vsel %vm1870, %v4491, %v3976
        %v4539 = vsel %vm1870, %v4492, %v3978
        %v4540 = vsel %vm1870, %v4493, %v3978
        %v4542 = vsel %vm1870, %v4494, %v3980
        %v4543 = vsel %vm1870, %v4495, %v3980
        %v4545 = vsel %vm1870, %v4496, %v3982
        %v4546 = vsel %vm1870, %v4497, %v3982
        %v4548 = vsel %vm1870, %v4498, %v3984
        %v4549 = vsel %vm1870, %v4499, %v3984
        %v4551 = vsel %vm1870, %v4501, %v3986
        %v4552 = vsel %vm1870, %v4503, %v3986
        %v4554 = vsel %vm1870, %v4505, %v3988
        %v4555 = vsel %vm1870, %v4507, %v3988
        %v4557 = vsel %vm1903, %v4509, %v4006
        %v4559 = vsel %vm1903, %v4510, %v4008
        %v4561 = vsel %vm1903, %v4512, %v4010
        %v4563 = vsel %vm1903, %v4513, %v4012
        %v4565 = vsel %vm1903, %v4515, %v4014
        %v4567 = vsel %vm1903, %v4516, %v4016
        %v4569 = vsel %vm1903, %v4518, %v4018
        %v4571 = vsel %vm1903, %v4519, %v4020
        %v4573 = vsel %vm1903, %v4521, %v4022
        %v4575 = vsel %vm1903, %v4522, %v4024
        %v4577 = vsel %vm1903, %v4524, %v4026
        %v4579 = vsel %vm1903, %v4525, %v4028
        %v4581 = vsel %vm1903, %v4527, %v4030
        %v4583 = vsel %vm1903, %v4528, %v4032
        %v4585 = vsel %vm1903, %v4530, %v4034
        %v4587 = vsel %vm1903, %v4531, %v4036
        %v4589 = vsel %vm1903, %v4533, %v4038
        %v4591 = vsel %vm1903, %v4534, %v4040
        %v4593 = vsel %vm1903, %v4536, %v4042
        %v4595 = vsel %vm1903, %v4537, %v4044
        %v4597 = vsel %vm1903, %v4539, %v4046
        %v4599 = vsel %vm1903, %v4540, %v4048
        %v4601 = vsel %vm1903, %v4542, %v4050
        %v4603 = vsel %vm1903, %v4543, %v4052
        %v4605 = vsel %vm1903, %v4545, %v4054
        %v4607 = vsel %vm1903, %v4546, %v4056
        %v4609 = vsel %vm1903, %v4548, %v4058
        %v4611 = vsel %vm1903, %v4549, %v4060
        %v4613 = vsel %vm1903, %v4551, %v4062
        %v4615 = vsel %vm1903, %v4552, %v4064
        %v4617 = vsel %vm1903, %v4554, %v4066
        %v4619 = vsel %vm1903, %v4555, %v4068
        %v4620 = vsel %vm1936, %v4557, %v2631
        %v4622 = vsel %vm1936, %v4559, %v4073
        %v4623 = vsel %vm1936, %v4561, %v2633
        %v4625 = vsel %vm1936, %v4563, %v4075
        %v4626 = vsel %vm1936, %v4565, %v2635
        %v4628 = vsel %vm1936, %v4567, %v4077
        %v4629 = vsel %vm1936, %v4569, %v2637
        %v4631 = vsel %vm1936, %v4571, %v4079
        %v4632 = vsel %vm1936, %v4573, %v2639
        %v4634 = vsel %vm1936, %v4575, %v4081
        %v4635 = vsel %vm1936, %v4577, %v2641
        %v4637 = vsel %vm1936, %v4579, %v4083
        %v4638 = vsel %vm1936, %v4581, %v2643
        %v4640 = vsel %vm1936, %v4583, %v4085
        %v4641 = vsel %vm1936, %v4585, %v2645
        %v4643 = vsel %vm1936, %v4587, %v4087
        %v4644 = vsel %vm1936, %v4589, %v2647
        %v4646 = vsel %vm1936, %v4591, %v4089
        %v4647 = vsel %vm1936, %v4593, %v2649
        %v4649 = vsel %vm1936, %v4595, %v4091
        %v4650 = vsel %vm1936, %v4597, %v2651
        %v4652 = vsel %vm1936, %v4599, %v4093
        %v4653 = vsel %vm1936, %v4601, %v2653
        %v4655 = vsel %vm1936, %v4603, %v4095
        %v4656 = vsel %vm1936, %v4605, %v2655
        %v4658 = vsel %vm1936, %v4607, %v4097
        %v4659 = vsel %vm1936, %v4609, %v2657
        %v4661 = vsel %vm1936, %v4611, %v4099
        %v4663 = vsel %vm1936, %v4613, %v4101
        %v4665 = vsel %vm1936, %v4615, %v4103
        %v4667 = vsel %vm1936, %v4617, %v4105
        %v4669 = vsel %vm1936, %v4619, %v4107
        %v4670 = vsel %vm1969, %v4620, %v2681
        %v4672 = vsel %vm1969, %v4622, %v4116
        %v4673 = vsel %vm1969, %v4623, %v2685
        %v4675 = vsel %vm1969, %v4625, %v4118
        %v4676 = vsel %vm1969, %v4626, %v2689
        %v4678 = vsel %vm1969, %v4628, %v4120
        %v4679 = vsel %vm1969, %v4629, %v2693
        %v4681 = vsel %vm1969, %v4631, %v4122
        %v4682 = vsel %vm1969, %v4632, %v2697
        %v4684 = vsel %vm1969, %v4634, %v4124
        %v4685 = vsel %vm1969, %v4635, %v2701
        %v4687 = vsel %vm1969, %v4637, %v4126
        %v4688 = vsel %vm1969, %v4638, %v2705
        %v4690 = vsel %vm1969, %v4640, %v4128
        %v4691 = vsel %vm1969, %v4641, %v2709
        %v4693 = vsel %vm1969, %v4643, %v4130
        %v4694 = vsel %vm1969, %v4644, %v2713
        %v4696 = vsel %vm1969, %v4646, %v4132
        %v4697 = vsel %vm1969, %v4647, %v2717
        %v4699 = vsel %vm1969, %v4649, %v4134
        %v4700 = vsel %vm1969, %v4650, %v2721
        %v4702 = vsel %vm1969, %v4652, %v4136
        %v4703 = vsel %vm1969, %v4653, %v2725
        %v4705 = vsel %vm1969, %v4655, %v4138
        %v4706 = vsel %vm1969, %v4656, %v2729
        %v4708 = vsel %vm1969, %v4658, %v4140
        %v4709 = vsel %vm1969, %v4659, %v2733
        %v4711 = vsel %vm1969, %v4661, %v4142
        %v4713 = vsel %vm1969, %v4663, %v4144
        %v4715 = vsel %vm1969, %v4665, %v4146
        %v4717 = vsel %vm1969, %v4667, %v4148
        %v4719 = vsel %vm1969, %v4669, %v4150
        %v4720 = vsel %vm2002, %v4670, %v1503
        %v4721 = vsel %vm2002, %v4672, %v2741
        %v4722 = vsel %vm2002, %v4673, %v1505
        %v4723 = vsel %vm2002, %v4675, %v2743
        %v4724 = vsel %vm2002, %v4676, %v1507
        %v4725 = vsel %vm2002, %v4678, %v2745
        %v4726 = vsel %vm2002, %v4679, %v1509
        %v4727 = vsel %vm2002, %v4681, %v2747
        %v4728 = vsel %vm2002, %v4682, %v1511
        %v4729 = vsel %vm2002, %v4684, %v2749
        %v4730 = vsel %vm2002, %v4685, %v1513
        %v4731 = vsel %vm2002, %v4687, %v2751
        %v4732 = vsel %vm2002, %v4688, %v1515
        %v4733 = vsel %vm2002, %v4690, %v2753
        %v4734 = vsel %vm2002, %v4691, %v1517
        %v4735 = vsel %vm2002, %v4693, %v2755
        %v4736 = vsel %vm2002, %v4694, %v1519
        %v4737 = vsel %vm2002, %v4696, %v2757
        %v4738 = vsel %vm2002, %v4697, %v1521
        %v4739 = vsel %vm2002, %v4699, %v2759
        %v4740 = vsel %vm2002, %v4700, %v1523
        %v4741 = vsel %vm2002, %v4702, %v2761
        %v4742 = vsel %vm2002, %v4703, %v1525
        %v4743 = vsel %vm2002, %v4705, %v2763
        %v4744 = vsel %vm2002, %v4706, %v2765
        %v4745 = vsel %vm2002, %v4708, %v2767
        %v4746 = vsel %vm2002, %v4709, %v2769
        %v4747 = vsel %vm2002, %v4711, %v2771
        %v4749 = vsel %vm2002, %v4713, %v4152
        %v4751 = vsel %vm2002, %v4715, %v4154
        %v4753 = vsel %vm2002, %v4717, %v4156
        %v4755 = vsel %vm2002, %v4719, %v4158
        %v4756 = vsel %vm2035, %v4720, %v1550
        %v4757 = vsel %vm2035, %v4721, %v2784
        %v4758 = vsel %vm2035, %v4722, %v1552
        %v4759 = vsel %vm2035, %v4723, %v2786
        %v4760 = vsel %vm2035, %v4724, %v1554
        %v4761 = vsel %vm2035, %v4725, %v2788
        %v4762 = vsel %vm2035, %v4726, %v1556
        %v4763 = vsel %vm2035, %v4727, %v2790
        %v4764 = vsel %vm2035, %v4728, %v1558
        %v4765 = vsel %vm2035, %v4729, %v2792
        %v4766 = vsel %vm2035, %v4730, %v1560
        %v4767 = vsel %vm2035, %v4731, %v2794
        %v4768 = vsel %vm2035, %v4732, %v1562
        %v4769 = vsel %vm2035, %v4733, %v2796
        %v4770 = vsel %vm2035, %v4734, %v1564
        %v4771 = vsel %vm2035, %v4735, %v2798
        %v4772 = vsel %vm2035, %v4736, %v1566
        %v4773 = vsel %vm2035, %v4737, %v2800
        %v4774 = vsel %vm2035, %v4738, %v1568
        %v4775 = vsel %vm2035, %v4739, %v2802
        %v4776 = vsel %vm2035, %v4740, %v1570
        %v4777 = vsel %vm2035, %v4741, %v2804
        %v4778 = vsel %vm2035, %v4742, %v1572
        %v4779 = vsel %vm2035, %v4743, %v2806
        %v4780 = vsel %vm2035, %v4744, %v2808
        %v4781 = vsel %vm2035, %v4745, %v2810
        %v4782 = vsel %vm2035, %v4746, %v2812
        %v4783 = vsel %vm2035, %v4747, %v2814
        %v4785 = vsel %vm2035, %v4749, %v4165
        %v4787 = vsel %vm2035, %v4751, %v4167
        %v4789 = vsel %vm2035, %v4753, %v4169
        %v4791 = vsel %vm2035, %v4755, %v4171
        %v4824 = vrot.slane %v3483, 1
        %v4825 = vrot.slane %v3485, 1
        %v4826 = vsel %vm655, %v4824, %v4825
        %v4827 = vrot.slane %v3486, 1
        %v4828 = vrot.slane %v3488, 1
        %v4829 = vsel %vm655, %v4827, %v4828
        %v4830 = vrot.slane %v3489, 1
        %v4831 = vrot.slane %v3491, 1
        %v4832 = vsel %vm655, %v4830, %v4831
        %v4833 = vrot.slane %v3492, 1
        %v4834 = vrot.slane %v3494, 1
        %v4835 = vsel %vm655, %v4833, %v4834
        %v4836 = vrot.slane %v3495, 1
        %v4837 = vrot.slane %v3497, 1
        %v4838 = vsel %vm655, %v4836, %v4837
        %v4839 = vrot.slane %v3498, 1
        %v4840 = vrot.slane %v3500, 1
        %v4841 = vsel %vm655, %v4839, %v4840
        %v4842 = vrot.slane %v3501, 1
        %v4843 = vrot.slane %v3503, 1
        %v4844 = vsel %vm655, %v4842, %v4843
        %v4845 = vrot.slane %v3504, 1
        %v4846 = vrot.slane %v3506, 1
        %v4847 = vsel %vm655, %v4845, %v4846
        %v4848 = vrot.slane %v3507, 1
        %v4849 = vrot.slane %v3509, 1
        %v4850 = vsel %vm655, %v4848, %v4849
        %v4851 = vrot.slane %v3510, 1
        %v4852 = vrot.slane %v3512, 1
        %v4853 = vsel %vm655, %v4851, %v4852
        %v4854 = vrot.slane %v3513, 1
        %v4855 = vrot.slane %v3515, 1
        %v4856 = vsel %vm655, %v4854, %v4855
        %v4857 = vrot.slane %v3516, 1
        %v4858 = vrot.slane %v3518, 1
        %v4859 = vsel %vm655, %v4857, %v4858
        %v4860 = vrot.slane %v3519, 1
        %v4861 = vrot.slane %v3521, 1
        %v4862 = vsel %vm655, %v4860, %v4861
        %v4863 = vrot.slane %v3522, 1
        %v4864 = vrot.slane %v3524, 1
        %v4865 = vsel %vm655, %v4863, %v4864
        %v4866 = vrot.slane %v3526, 1
        %v4867 = vrot.slane %v3528, 1
        %v4868 = vsel %vm655, %v4866, %v4867
        %v4869 = vrot.slane %v3530, 1
        %v4870 = vrot.slane %v3532, 1
        %v4871 = vsel %vm655, %v4869, %v4870
        %4872 = vrot.lane.b32.xlu0 %v4826, 64
        %v4873 = vpop.permute.xlu0 %4872
        %4874 = vrot.lane.b32.xlu0 %v4829, 64
        %v4875 = vpop.permute.xlu0 %4874
        %4876 = vrot.lane.b32.xlu0 %v4832, 64
        %v4877 = vpop.permute.xlu0 %4876
        %4878 = vrot.lane.b32.xlu0 %v4835, 64
        %v4879 = vpop.permute.xlu0 %4878
        %4880 = vrot.lane.b32.xlu0 %v4838, 64
        %v4881 = vpop.permute.xlu0 %4880
        %4882 = vrot.lane.b32.xlu0 %v4841, 64
        %v4883 = vpop.permute.xlu0 %4882
        %4884 = vrot.lane.b32.xlu0 %v4844, 64
        %v4885 = vpop.permute.xlu0 %4884
        %4886 = vrot.lane.b32.xlu0 %v4847, 64
        %v4887 = vpop.permute.xlu0 %4886
        %4888 = vrot.lane.b32.xlu0 %v4850, 64
        %v4889 = vpop.permute.xlu0 %4888
        %4890 = vrot.lane.b32.xlu0 %v4853, 64
        %v4891 = vpop.permute.xlu0 %4890
        %4892 = vrot.lane.b32.xlu0 %v4856, 64
        %v4893 = vpop.permute.xlu0 %4892
        %4894 = vrot.lane.b32.xlu0 %v4859, 64
        %v4895 = vpop.permute.xlu0 %4894
        %4896 = vrot.lane.b32.xlu0 %v4862, 64
        %v4897 = vpop.permute.xlu0 %4896
        %4898 = vrot.lane.b32.xlu0 %v4865, 64
        %v4899 = vpop.permute.xlu0 %4898
        %4900 = vrot.lane.b32.xlu0 %v4868, 64
        %v4901 = vpop.permute.xlu0 %4900
        %4902 = vrot.lane.b32.xlu0 %v4871, 64
        %v4903 = vpop.permute.xlu0 %4902
        %v4936 = vrot.slane %v4756, 2
        %v4937 = vrot.slane %v4757, 2
        %v4938 = vsel %vm913, %v4936, %v4937
        %v4939 = vrot.slane %v4758, 2
        %v4940 = vrot.slane %v4759, 2
        %v4941 = vsel %vm913, %v4939, %v4940
        %v4942 = vrot.slane %v4760, 2
        %v4943 = vrot.slane %v4761, 2
        %v4944 = vsel %vm913, %v4942, %v4943
        %v4945 = vrot.slane %v4762, 2
        %v4946 = vrot.slane %v4763, 2
        %v4947 = vsel %vm913, %v4945, %v4946
        %v4948 = vrot.slane %v4764, 2
        %v4949 = vrot.slane %v4765, 2
        %v4950 = vsel %vm913, %v4948, %v4949
        %v4951 = vrot.slane %v4766, 2
        %v4952 = vrot.slane %v4767, 2
        %v4953 = vsel %vm913, %v4951, %v4952
        %v4954 = vrot.slane %v4768, 2
        %v4955 = vrot.slane %v4769, 2
        %v4956 = vsel %vm913, %v4954, %v4955
        %v4957 = vrot.slane %v4770, 2
        %v4958 = vrot.slane %v4771, 2
        %v4959 = vsel %vm913, %v4957, %v4958
        %v4960 = vrot.slane %v4772, 2
        %v4961 = vrot.slane %v4773, 2
        %v4962 = vsel %vm913, %v4960, %v4961
        %v4963 = vrot.slane %v4774, 2
        %v4964 = vrot.slane %v4775, 2
        %v4965 = vsel %vm913, %v4963, %v4964
        %v4966 = vrot.slane %v4776, 2
        %v4967 = vrot.slane %v4777, 2
        %v4968 = vsel %vm913, %v4966, %v4967
        %v4969 = vrot.slane %v4778, 2
        %v4970 = vrot.slane %v4779, 2
        %v4971 = vsel %vm913, %v4969, %v4970
        %v4972 = vrot.slane %v4780, 2
        %v4973 = vrot.slane %v4781, 2
        %v4974 = vsel %vm913, %v4972, %v4973
        %v4975 = vrot.slane %v4782, 2
        %v4976 = vrot.slane %v4783, 2
        %v4977 = vsel %vm913, %v4975, %v4976
        %v4978 = vrot.slane %v4785, 2
        %v4979 = vrot.slane %v4787, 2
        %v4980 = vsel %vm913, %v4978, %v4979
        %v4981 = vrot.slane %v4789, 2
        %v4982 = vrot.slane %v4791, 2
        %v4983 = vsel %vm913, %v4981, %v4982
        %v4984 = vrot.slane %v1493, 3
        %v4985 = vrot.slane %v1528, 3
        %v4986 = vsel %vm1139, %v4984, %v4985
        %v4987 = vrot.slane %v2247, 3
        %v4988 = vrot.slane %v2298, 3
        %v4989 = vsel %vm1139, %v4987, %v4988
        %v4990 = vrot.slane %v2624, 3
        %v4991 = vrot.slane %v2660, 3
        %v4992 = vsel %vm1139, %v4990, %v4991
        %v4993 = vrot.slane %v3556, 3
        %v4994 = vrot.slane %v3607, 3
        %v4995 = vsel %vm1139, %v4993, %v4994
        %v4996 = vrot.slane %v3955, 3
        %v4997 = vrot.slane %v3991, 3
        %v4998 = vsel %vm1139, %v4996, %v4997
        %4999 = vrot.lane.b32.xlu0 %v1160, 64
        %v5000 = vpop.permute.xlu0 %4999
        %5001 = vrot.lane.b32.xlu0 %v1163, 64
        %v5002 = vpop.permute.xlu0 %5001
        %5003 = vrot.lane.b32.xlu0 %v1166, 64
        %v5004 = vpop.permute.xlu0 %5003
        %5005 = vrot.lane.b32.xlu0 %v1169, 64
        %v5006 = vpop.permute.xlu0 %5005
        %5007 = vrot.lane.b32.xlu0 %v1172, 64
        %v5008 = vpop.permute.xlu0 %5007
        %5009 = vrot.lane.b32.xlu0 %v1175, 64
        %v5010 = vpop.permute.xlu0 %5009
        %5011 = vrot.lane.b32.xlu0 %v1178, 64
        %v5012 = vpop.permute.xlu0 %5011
        %5013 = vrot.lane.b32.xlu0 %v1181, 64
        %v5014 = vpop.permute.xlu0 %5013
        %5015 = vrot.lane.b32.xlu0 %v1184, 64
        %v5016 = vpop.permute.xlu0 %5015
        %5017 = vrot.lane.b32.xlu0 %v1187, 64
        %v5018 = vpop.permute.xlu0 %5017
        %5019 = vrot.lane.b32.xlu0 %v1456, 64
        %v5020 = vpop.permute.xlu0 %5019
        %5021 = vrot.lane.b32.xlu0 %v4986, 64
        %v5022 = vpop.permute.xlu0 %5021
        %5023 = vrot.lane.b32.xlu0 %v4989, 64
        %v5024 = vpop.permute.xlu0 %5023
        %5025 = vrot.lane.b32.xlu0 %v4992, 64
        %v5026 = vpop.permute.xlu0 %5025
        %5027 = vrot.lane.b32.xlu0 %v4995, 64
        %v5028 = vpop.permute.xlu0 %5027
        %5029 = vrot.lane.b32.xlu0 %v4998, 64
        %v5030 = vpop.permute.xlu0 %5029
        %vm5031 = vcmask 523264
        %v5033 = vsel %vm5031, %v2037, %v4873
        %v5036 = vsel %vm5031, %v2039, %v4875
        %v5039 = vsel %vm5031, %v2041, %v4877
        %v5042 = vsel %vm5031, %v2043, %v4879
        %v5045 = vsel %vm5031, %v2045, %v4881
        %v5048 = vsel %vm5031, %v2047, %v4883
        %v5051 = vsel %vm5031, %v2049, %v4885
        %v5054 = vsel %vm5031, %v2051, %v4887
        %v5057 = vsel %vm5031, %v2053, %v4889
        %v5060 = vsel %vm5031, %v2055, %v4891
        %v5063 = vsel %vm5031, %v2057, %v4893
        %v5066 = vsel %vm5031, %v2059, %v4895
        %v5069 = vsel %vm5031, %v2061, %v4897
        %v5072 = vsel %vm5031, %v2063, %v4899
        %v5075 = vsel %vm5031, %v2065, %v4901
        %v5078 = vsel %vm5031, %v2067, %v4903
        %v5082 = vsel %vm5031, %v4938, %v5000
        %v5085 = vsel %vm5031, %v4941, %v5002
        %v5088 = vsel %vm5031, %v4944, %v5004
        %v5091 = vsel %vm5031, %v4947, %v5006
        %v5094 = vsel %vm5031, %v4950, %v5008
        %v5097 = vsel %vm5031, %v4953, %v5010
        %v5100 = vsel %vm5031, %v4956, %v5012
        %v5103 = vsel %vm5031, %v4959, %v5014
        %v5106 = vsel %vm5031, %v4962, %v5016
        %v5109 = vsel %vm5031, %v4965, %v5018
        %v5112 = vsel %vm5031, %v4968, %v5020
        %v5115 = vsel %vm5031, %v4971, %v5022
        %v5118 = vsel %vm5031, %v4974, %v5024
        %v5121 = vsel %vm5031, %v4977, %v5026
        %v5124 = vsel %vm5031, %v4980, %v5028
        %v5127 = vsel %vm5031, %v4983, %v5030
        %v5128 = vld [vmem:[%s1] sm:$0xf]
        %v5129 = vld [vmem:[%s1 + $0x4] sm:$0xf]
        %v5130 = vld [vmem:[%s1 + $0x8] sm:$0xf]
        %v5131 = vld [vmem:[%s1 + $0xc] sm:$0xf]
        %v5132 = vld [vmem:[%s1 + $0x10] sm:$0xf]
        %v5133 = vld [vmem:[%s1 + $0x14] sm:$0xf]
        %v5134 = vld [vmem:[%s1 + $0x18] sm:$0xf]
        %v5135 = vld [vmem:[%s1 + $0x1c] sm:$0xf]
        %v5136 = vld [vmem:[%s1 + $0x20] sm:$0xf]
        %v5137 = vld [vmem:[%s1 + $0x24] sm:$0xf]
        %v5138 = vld [vmem:[%s1 + $0x28] sm:$0xf]
        %v5139 = vld [vmem:[%s1 + $0x2c] sm:$0xf]
        %v5140 = vld [vmem:[%s1 + $0x30] sm:$0xf]
        %v5141 = vld [vmem:[%s1 + $0x34] sm:$0xf]
        %v5142 = vld [vmem:[%s1 + $0x38] sm:$0xf]
        %v5143 = vld [vmem:[%s1 + $0x3c] sm:$0xf]
        %v5144 = vld [vmem:[%s1 + $0x40] sm:$0xf]
        %v5145 = vld [vmem:[%s1 + $0x44] sm:$0xf]
        %v5146 = vld [vmem:[%s1 + $0x48] sm:$0xf]
        %v5147 = vld [vmem:[%s1 + $0x4c] sm:$0xf]
        %v5148 = vld [vmem:[%s1 + $0x50] sm:$0xf]
        %v5149 = vld [vmem:[%s1 + $0x54] sm:$0xf]
        %v5150 = vld [vmem:[%s1 + $0x58] sm:$0xf]
        %v5151 = vld [vmem:[%s1 + $0x5c] sm:$0xf]
        %v5152 = vld [vmem:[%s1 + $0x60] sm:$0x3]
        %v5178 = vunpack.c.l.b16 %v5128
        %v5179 = vunpack.c.l.b16 %v5129
        %v5180 = vunpack.c.l.b16 %v5130
        %v5181 = vunpack.c.l.b16 %v5131
        %v5182 = vunpack.c.l.b16 %v5132
        %v5183 = vunpack.c.l.b16 %v5133
        %v5184 = vunpack.c.l.b16 %v5134
        %v5185 = vunpack.c.l.b16 %v5135
        %v5186 = vunpack.c.l.b16 %v5136
        %v5187 = vunpack.c.l.b16 %v5137
        %v5188 = vunpack.c.l.b16 %v5138
        %v5189 = vunpack.c.l.b16 %v5139
        %v5190 = vunpack.c.l.b16 %v5140
        %v5191 = vunpack.c.l.b16 %v5141
        %v5192 = vunpack.c.l.b16 %v5142
        %v5193 = vunpack.c.l.b16 %v5143
        %v5194 = vunpack.c.l.b16 %v5144
        %v5195 = vunpack.c.l.b16 %v5145
        %v5196 = vunpack.c.l.b16 %v5146
        %v5197 = vunpack.c.l.b16 %v5147
        %v5198 = vunpack.c.l.b16 %v5148
        %v5199 = vunpack.c.l.b16 %v5149
        %v5200 = vunpack.c.l.b16 %v5150
        %v5201 = vunpack.c.l.b16 %v5151
        %v5202 = vunpack.c.l.b16 %v5152
        %v5203 = vpack.c.b16 %v5179, %v5178
        %v5204 = vpack.c.b16 %v5181, %v5180
        %v5205 = vpack.c.b16 %v5183, %v5182
        %v5206 = vpack.c.b16 %v5185, %v5184
        %v5207 = vpack.c.b16 %v5187, %v5186
        %v5208 = vpack.c.b16 %v5189, %v5188
        %v5209 = vpack.c.b16 %v5191, %v5190
        %v5210 = vpack.c.b16 %v5193, %v5192
        %v5211 = vpack.c.b16 %v5195, %v5194
        %v5212 = vpack.c.b16 %v5197, %v5196
        %v5213 = vpack.c.b16 %v5199, %v5198
        %v5214 = vpack.c.b16 %v5201, %v5200
        %v5215 = vpack.c.b16 %v5202, %v5202
        %vm5228 = vcmask 556032
        %v5229 = vsel %vm5228, %v5082, 0
        %v5231 = vsel %vm5228, %v5085, 0
        %v5233 = vsel %vm5228, %v5088, 0
        %v5235 = vsel %vm5228, %v5091, 0
        %v5237 = vsel %vm5228, %v5094, 0
        %v5239 = vsel %vm5228, %v5097, 0
        %v5241 = vsel %vm5228, %v5100, 0
        %v5243 = vsel %vm5228, %v5103, 0
        %v5245 = vsel %vm5228, %v5106, 0
        %v5247 = vsel %vm5228, %v5109, 0
        %v5249 = vsel %vm5228, %v5112, 0
        %v5251 = vsel %vm5228, %v5115, 0
        %v5253 = vsel %vm5228, %v5118, 0
        %v5255 = vsel %vm5228, %v5121, 0
        %v5257 = vsel %vm5228, %v5124, 0
        %v5259 = vsel %vm5228, %v5127, 0
        %vm5261 = vcmask 1041408
        %v5263 = vsel %vm5261, %v5215, 0
        %5265 = vmatprep.subr.bf16.mxu0 0
        %5266 = vmatpush1.bf16.msra.mxu0 %v5203
        %5267 = vmatprep.subr.bf16.mxu0 0
        %5268 = vmatpush1.bf16.msra.mxu0 %v5204
        %5269 = vmatprep.subr.bf16.mxu0 0
        %5270 = vmatpush1.bf16.msra.mxu0 %v5205
        %5271 = vmatprep.subr.bf16.mxu0 0
        %5272 = vmatpush1.bf16.msra.mxu0 %v5206
        %5273 = vmatprep.subr.bf16.mxu0 0
        %5274 = vmatpush1.bf16.msra.mxu0 %v5207
        %5275 = vmatprep.subr.bf16.mxu0 0
        %5276 = vmatpush1.bf16.msra.mxu0 %v5208
        %5277 = vmatprep.subr.bf16.mxu0 0
        %5278 = vmatpush1.bf16.msra.mxu0 %v5209
        %5279 = vmatprep.subr.bf16.mxu0 0
        %5280 = vmatpush1.bf16.msra.mxu0 %v5210
        %5281 = vmatprep.subr.bf16.mxu0 0
        %5282 = vmatpush1.bf16.msra.mxu0 %v5211
        %5283 = vmatprep.subr.bf16.mxu0 0
        %5284 = vmatpush1.bf16.msra.mxu0 %v5212
        %5285 = vmatprep.subr.bf16.mxu0 0
        %5286 = vmatpush1.bf16.msra.mxu0 %v5213
        %5287 = vmatprep.subr.bf16.mxu0 0
        %5288 = vmatpush1.bf16.msra.mxu0 %v5214
        %5289 = vmatprep.subr.bf16.mxu0 0
        %5290 = vmatpush1.bf16.msra.mxu0 %v5263
        %5291 = vmatprep.subr.bf16.mxu0 0
        %5292 = vmatpush1.bf16.msra.mxu0 0
        %5293 = vmatprep.subr.bf16.mxu0 0
        %5294 = vmatpush1.bf16.msra.mxu0 0
        %5295 = vmatprep.subr.bf16.mxu0 0
        %5296 = vmatpush1.bf16.msra.mxu0 0
        %5297 = vmatprep.mubr.bf16.mxu0 %v5229
        %5298 = vmatmul.mubr.bf16.gmra.mrb[0].mxu0 %v5033
        %v5299 = vpop.f32.mrb[0].mxu0
        %v5300 = vadd.f32 0.0, %v5299
        %v5301 = vpop.f32.mrb[0].mxu0
        %v5302 = vpop.f32.mrb[0].mxu0
        %v5303 = vadd.f32 0.0, %v5302
        %v5304 = vpop.f32.mrb[0].mxu0
        %5305 = vmatprep.mubr.bf16.mxu0 %v5231
        %5306 = vmatmul.mubr.bf16.gmra.mrb[0].mxu0 %v5036
        %v5307 = vpop.f32.mrb[0].mxu0
        %v5308 = vadd.f32 0.0, %v5307
        %v5309 = vpop.f32.mrb[0].mxu0
        %v5310 = vpop.f32.mrb[0].mxu0
        %v5311 = vadd.f32 0.0, %v5310
        %v5312 = vpop.f32.mrb[0].mxu0
        %5313 = vmatprep.mubr.bf16.mxu0 %v5233
        %5314 = vmatmul.mubr.bf16.gmra.mrb[0].mxu0 %v5039
        %v5315 = vpop.f32.mrb[0].mxu0
        %v5316 = vadd.f32 0.0, %v5315
        %v5317 = vpop.f32.mrb[0].mxu0
        %v5318 = vpop.f32.mrb[0].mxu0
        %v5319 = vadd.f32 0.0, %v5318
        %v5320 = vpop.f32.mrb[0].mxu0
        %5321 = vmatprep.mubr.bf16.mxu0 %v5235
        %5322 = vmatmul.mubr.bf16.gmra.mrb[0].mxu0 %v5042
        %v5323 = vpop.f32.mrb[0].mxu0
        %v5324 = vadd.f32 0.0, %v5323
        %v5325 = vpop.f32.mrb[0].mxu0
        %v5326 = vpop.f32.mrb[0].mxu0
        %v5327 = vadd.f32 0.0, %v5326
        %v5328 = vpop.f32.mrb[0].mxu0
        %5329 = vmatprep.mubr.bf16.mxu0 %v5237
        %5330 = vmatmul.mubr.bf16.gmra.mrb[0].mxu0 %v5045
        %v5331 = vpop.f32.mrb[0].mxu0
        %v5332 = vadd.f32 0.0, %v5331
        %v5333 = vpop.f32.mrb[0].mxu0
        %v5334 = vpop.f32.mrb[0].mxu0
        %v5335 = vadd.f32 0.0, %v5334
        %v5336 = vpop.f32.mrb[0].mxu0
        %5337 = vmatprep.mubr.bf16.mxu0 %v5239
        %5338 = vmatmul.mubr.bf16.gmra.mrb[0].mxu0 %v5048
        %v5339 = vpop.f32.mrb[0].mxu0
        %v5340 = vadd.f32 0.0, %v5339
        %v5341 = vpop.f32.mrb[0].mxu0
        %v5342 = vpop.f32.mrb[0].mxu0
        %v5343 = vadd.f32 0.0, %v5342
        %v5344 = vpop.f32.mrb[0].mxu0
        %5345 = vmatprep.mubr.bf16.mxu0 %v5241
        %5346 = vmatmul.mubr.bf16.gmra.mrb[0].mxu0 %v5051
        %v5347 = vpop.f32.mrb[0].mxu0
        %v5348 = vadd.f32 0.0, %v5347
        %v5349 = vpop.f32.mrb[0].mxu0
        %v5350 = vpop.f32.mrb[0].mxu0
        %v5351 = vadd.f32 0.0, %v5350
        %v5352 = vpop.f32.mrb[0].mxu0
        %5353 = vmatprep.mubr.bf16.mxu0 %v5243
        %5354 = vmatmul.mubr.bf16.gmra.mrb[0].mxu0 %v5054
        %v5355 = vpop.f32.mrb[0].mxu0
        %v5356 = vadd.f32 0.0, %v5355
        %v5357 = vpop.f32.mrb[0].mxu0
        %v5358 = vpop.f32.mrb[0].mxu0
        %v5359 = vadd.f32 0.0, %v5358
        %v5360 = vpop.f32.mrb[0].mxu0
        %5361 = vmatprep.mubr.bf16.mxu0 %v5245
        %5362 = vmatmul.mubr.bf16.gmra.mrb[0].mxu0 %v5057
        %v5363 = vpop.f32.mrb[0].mxu0
        %v5364 = vadd.f32 0.0, %v5363
        %v5365 = vpop.f32.mrb[0].mxu0
        %v5366 = vpop.f32.mrb[0].mxu0
        %v5367 = vadd.f32 0.0, %v5366
        %v5368 = vpop.f32.mrb[0].mxu0
        %5369 = vmatprep.mubr.bf16.mxu0 %v5247
        %5370 = vmatmul.mubr.bf16.gmra.mrb[0].mxu0 %v5060
        %v5371 = vpop.f32.mrb[0].mxu0
        %v5372 = vadd.f32 0.0, %v5371
        %v5373 = vpop.f32.mrb[0].mxu0
        %v5374 = vpop.f32.mrb[0].mxu0
        %v5375 = vadd.f32 0.0, %v5374
        %v5376 = vpop.f32.mrb[0].mxu0
        %5377 = vmatprep.mubr.bf16.mxu0 %v5249
        %5378 = vmatmul.mubr.bf16.gmra.mrb[0].mxu0 %v5063
        %v5379 = vpop.f32.mrb[0].mxu0
        %v5380 = vadd.f32 0.0, %v5379
        %v5381 = vpop.f32.mrb[0].mxu0
        %v5382 = vpop.f32.mrb[0].mxu0
        %v5383 = vadd.f32 0.0, %v5382
        %v5384 = vpop.f32.mrb[0].mxu0
        %5385 = vmatprep.mubr.bf16.mxu0 %v5251
        %5386 = vmatmul.mubr.bf16.gmra.mrb[0].mxu0 %v5066
        %v5387 = vpop.f32.mrb[0].mxu0
        %v5388 = vadd.f32 0.0, %v5387
        %v5389 = vpop.f32.mrb[0].mxu0
        %v5390 = vpop.f32.mrb[0].mxu0
        %v5391 = vadd.f32 0.0, %v5390
        %v5392 = vpop.f32.mrb[0].mxu0
        %5393 = vmatprep.mubr.bf16.mxu0 %v5253
        %5394 = vmatmul.mubr.bf16.gmra.mrb[0].mxu0 %v5069
        %v5395 = vpop.f32.mrb[0].mxu0
        %v5396 = vadd.f32 0.0, %v5395
        %v5397 = vpop.f32.mrb[0].mxu0
        %v5398 = vpop.f32.mrb[0].mxu0
        %v5399 = vadd.f32 0.0, %v5398
        %v5400 = vpop.f32.mrb[0].mxu0
        %5401 = vmatprep.mubr.bf16.mxu0 %v5255
        %5402 = vmatmul.mubr.bf16.gmra.mrb[0].mxu0 %v5072
        %v5403 = vpop.f32.mrb[0].mxu0
        %v5404 = vadd.f32 0.0, %v5403
        %v5405 = vpop.f32.mrb[0].mxu0
        %v5406 = vpop.f32.mrb[0].mxu0
        %v5407 = vadd.f32 0.0, %v5406
        %v5408 = vpop.f32.mrb[0].mxu0
        %5409 = vmatprep.mubr.bf16.mxu0 %v5257
        %5410 = vmatmul.mubr.bf16.gmra.mrb[0].mxu0 %v5075
        %v5411 = vpop.f32.mrb[0].mxu0
        %v5412 = vadd.f32 0.0, %v5411
        %v5413 = vpop.f32.mrb[0].mxu0
        %v5414 = vpop.f32.mrb[0].mxu0
        %v5415 = vadd.f32 0.0, %v5414
        %v5416 = vpop.f32.mrb[0].mxu0
        %5417 = vmatprep.mubr.bf16.mxu0 %v5259
        %5418 = vmatmul.mubr.bf16.gmra.mrb[0].mxu0 %v5078
        %v5419 = vpop.f32.mrb[0].mxu0
        %v5420 = vadd.f32 0.0, %v5419
        %v5421 = vpop.f32.mrb[0].mxu0
        %v5422 = vpop.f32.mrb[0].mxu0
        %v5423 = vadd.f32 0.0, %v5422
        %v5424 = vpop.f32.mrb[0].mxu0
        %5425 = vdwg.mxu0
        %v5426 = vpack.c.bf16 %v5303, %v5300
        %v5427 = vpack.c.bf16 %v5311, %v5308
        %v5428 = vpack.c.bf16 %v5319, %v5316
        %v5429 = vpack.c.bf16 %v5327, %v5324
        %v5430 = vpack.c.bf16 %v5335, %v5332
        %v5431 = vpack.c.bf16 %v5343, %v5340
        %v5432 = vpack.c.bf16 %v5351, %v5348
        %v5433 = vpack.c.bf16 %v5359, %v5356
        %v5434 = vpack.c.bf16 %v5367, %v5364
        %v5435 = vpack.c.bf16 %v5375, %v5372
        %v5436 = vpack.c.bf16 %v5383, %v5380
        %v5437 = vpack.c.bf16 %v5391, %v5388
        %v5438 = vpack.c.bf16 %v5399, %v5396
        %v5439 = vpack.c.bf16 %v5407, %v5404
        %v5440 = vpack.c.bf16 %v5415, %v5412
        %v5441 = vpack.c.bf16 %v5423, %v5420
        %v5458 = vunpack.c.l.b16 %v5426
        %v5459 = vunpack.c.h.b16 %v5426
        %v5460 = vunpack.c.l.b16 %v5427
        %v5461 = vunpack.c.h.b16 %v5427
        %v5462 = vunpack.c.l.b16 %v5428
        %v5463 = vunpack.c.h.b16 %v5428
        %v5464 = vunpack.c.l.b16 %v5429
        %v5465 = vunpack.c.h.b16 %v5429
        %v5466 = vunpack.c.l.b16 %v5430
        %v5467 = vunpack.c.h.b16 %v5430
        %v5468 = vunpack.c.l.b16 %v5431
        %v5469 = vunpack.c.h.b16 %v5431
        %v5470 = vunpack.c.l.b16 %v5432
        %v5471 = vunpack.c.h.b16 %v5432
        %v5472 = vunpack.c.l.b16 %v5433
        %v5473 = vunpack.c.h.b16 %v5433
        %v5474 = vunpack.c.l.b16 %v5434
        %v5475 = vunpack.c.h.b16 %v5434
        %v5476 = vunpack.c.l.b16 %v5435
        %v5477 = vunpack.c.h.b16 %v5435
        %v5478 = vunpack.c.l.b16 %v5436
        %v5479 = vunpack.c.h.b16 %v5436
        %v5480 = vunpack.c.l.b16 %v5437
        %v5481 = vunpack.c.h.b16 %v5437
        %v5482 = vunpack.c.l.b16 %v5438
        %v5483 = vunpack.c.h.b16 %v5438
        %v5484 = vunpack.c.l.b16 %v5439
        %v5485 = vunpack.c.h.b16 %v5439
        %v5486 = vunpack.c.l.b16 %v5440
        %v5487 = vunpack.c.h.b16 %v5440
        %v5488 = vunpack.c.l.b16 %v5441
        %v5489 = vunpack.c.h.b16 %v5441
        %v5490 = vpack.c.b16 %v5458, %v5458
        %v5491 = vpack.c.b16 %v5459, %v5459
        %v5492 = vpack.c.b16 %v5460, %v5460
        %v5493 = vpack.c.b16 %v5461, %v5461
        %v5494 = vpack.c.b16 %v5462, %v5462
        %v5495 = vpack.c.b16 %v5463, %v5463
        %v5496 = vpack.c.b16 %v5464, %v5464
        %v5497 = vpack.c.b16 %v5465, %v5465
        %v5498 = vpack.c.b16 %v5466, %v5466
        %v5499 = vpack.c.b16 %v5467, %v5467
        %v5500 = vpack.c.b16 %v5468, %v5468
        %v5501 = vpack.c.b16 %v5469, %v5469
        %v5502 = vpack.c.b16 %v5470, %v5470
        %v5503 = vpack.c.b16 %v5471, %v5471
        %v5504 = vpack.c.b16 %v5472, %v5472
        %v5505 = vpack.c.b16 %v5473, %v5473
        %v5506 = vpack.c.b16 %v5474, %v5474
        %v5507 = vpack.c.b16 %v5475, %v5475
        %v5508 = vpack.c.b16 %v5476, %v5476
        %v5509 = vpack.c.b16 %v5477, %v5477
        %v5510 = vpack.c.b16 %v5478, %v5478
        %v5511 = vpack.c.b16 %v5479, %v5479
        %v5512 = vpack.c.b16 %v5480, %v5480
        %v5513 = vpack.c.b16 %v5481, %v5481
        %v5514 = vpack.c.b16 %v5482, %v5482
        %v5515 = vpack.c.b16 %v5483, %v5483
        %v5516 = vpack.c.b16 %v5484, %v5484
        %v5517 = vpack.c.b16 %v5485, %v5485
        %v5518 = vpack.c.b16 %v5486, %v5486
        %v5519 = vpack.c.b16 %v5487, %v5487
        %v5520 = vpack.c.b16 %v5488, %v5488
        %v5521 = vpack.c.b16 %v5489, %v5489
        %5554 = vst [vmem:[%s212] sm:$0xf] %v5490
        %5555 = vst [vmem:[%s212 + $0x4] sm:$0xf] %v5491
        %5556 = vst [vmem:[%s212 + $0x8] sm:$0xf] %v5492
        %5557 = vst [vmem:[%s212 + $0xc] sm:$0xf] %v5493
        %5558 = vst [vmem:[%s212 + $0x10] sm:$0xf] %v5494
        %5559 = vst [vmem:[%s212 + $0x14] sm:$0xf] %v5495
        %5560 = vst [vmem:[%s212 + $0x18] sm:$0xf] %v5496
        %5561 = vst [vmem:[%s212 + $0x1c] sm:$0xf] %v5497
        %5562 = vst [vmem:[%s212 + $0x20] sm:$0xf] %v5498
        %5563 = vst [vmem:[%s212 + $0x24] sm:$0xf] %v5499
        %5564 = vst [vmem:[%s212 + $0x28] sm:$0xf] %v5500
        %5565 = vst [vmem:[%s212 + $0x2c] sm:$0xf] %v5501
        %5566 = vst [vmem:[%s212 + $0x30] sm:$0xf] %v5502
        %5567 = vst [vmem:[%s212 + $0x34] sm:$0xf] %v5503
        %5568 = vst [vmem:[%s212 + $0x38] sm:$0xf] %v5504
        %5569 = vst [vmem:[%s212 + $0x3c] sm:$0xf] %v5505
        %5570 = vst [vmem:[%s212 + $0x40] sm:$0xf] %v5506
        %5571 = vst [vmem:[%s212 + $0x44] sm:$0xf] %v5507
        %5572 = vst [vmem:[%s212 + $0x48] sm:$0xf] %v5508
        %5573 = vst [vmem:[%s212 + $0x4c] sm:$0xf] %v5509
        %5574 = vst [vmem:[%s212 + $0x50] sm:$0xf] %v5510
        %5575 = vst [vmem:[%s212 + $0x54] sm:$0xf] %v5511
        %5576 = vst [vmem:[%s212 + $0x58] sm:$0xf] %v5512
        %5577 = vst [vmem:[%s212 + $0x5c] sm:$0xf] %v5513
        %5578 = vst [vmem:[%s212 + $0x60] sm:$0xf] %v5514
        %5579 = vst [vmem:[%s212 + $0x64] sm:$0xf] %v5515
        %5580 = vst [vmem:[%s212 + $0x68] sm:$0xf] %v5516
        %5581 = vst [vmem:[%s212 + $0x6c] sm:$0xf] %v5517
        %5582 = vst [vmem:[%s212 + $0x70] sm:$0xf] %v5518
        %5583 = vst [vmem:[%s212 + $0x74] sm:$0xf] %v5519
        %5584 = vst [vmem:[%s212 + $0x78] sm:$0xf] %v5520
        %5585 = vst [vmem:[%s212 + $0x7c] sm:$0xf] %v5521
        %v5586 = vadd.f32 %v5300, %v5303
        %v5587 = vadd.f32 %v5586, %v5308
        %v5588 = vadd.f32 %v5587, %v5311
        %v5589 = vadd.f32 %v5588, %v5316
        %v5590 = vadd.f32 %v5589, %v5319
        %v5591 = vadd.f32 %v5590, %v5324
        %v5592 = vadd.f32 %v5591, %v5327
        %v5593 = vadd.f32 %v5592, %v5332
        %v5594 = vadd.f32 %v5593, %v5335
        %v5595 = vadd.f32 %v5594, %v5340
        %v5596 = vadd.f32 %v5595, %v5343
        %v5597 = vadd.f32 %v5596, %v5348
        %v5598 = vadd.f32 %v5597, %v5351
        %v5599 = vadd.f32 %v5598, %v5356
        %v5600 = vadd.f32 %v5599, %v5359
        %v5601 = vadd.f32 %v5600, %v5364
        %v5602 = vadd.f32 %v5601, %v5367
        %v5603 = vadd.f32 %v5602, %v5372
        %v5604 = vadd.f32 %v5603, %v5375
        %v5605 = vadd.f32 %v5604, %v5380
        %v5606 = vadd.f32 %v5605, %v5383
        %v5607 = vadd.f32 %v5606, %v5388
        %v5608 = vadd.f32 %v5607, %v5391
        %v5609 = vadd.f32 %v5608, %v5396
        %v5610 = vadd.f32 %v5609, %v5399
        %v5611 = vadd.f32 %v5610, %v5404
        %v5612 = vadd.f32 %v5611, %v5407
        %v5613 = vadd.f32 %v5612, %v5412
        %v5614 = vadd.f32 %v5613, %v5415
        %v5615 = vadd.f32 %v5614, %v5420
        %v5616 = vadd.f32 %v5615, %v5423
        %v5617 = vrot.slane %v5616, 4
        %v5618 = vadd.f32 %v5616, %v5617
        %v5619 = vrot.slane %v5618, 2
        %v5620 = vadd.f32 %v5618, %v5619
        %v5621 = vrot.slane %v5620, 1
        %v5622 = vadd.f32 %v5620, %v5621
        %5623 = vst [vmem:[%s218] sm:$0x1] %v5622
        %v5624 = vmul.f32 %v5300, %v5300
        %v5625 = vmul.f32 %v5303, %v5303
        %v5626 = vmul.f32 %v5308, %v5308
        %v5627 = vmul.f32 %v5311, %v5311
        %v5628 = vmul.f32 %v5316, %v5316
        %v5629 = vmul.f32 %v5319, %v5319
        %v5630 = vmul.f32 %v5324, %v5324
        %v5631 = vmul.f32 %v5327, %v5327
        %v5632 = vmul.f32 %v5332, %v5332
        %v5633 = vmul.f32 %v5335, %v5335
        %v5634 = vmul.f32 %v5340, %v5340
        %v5635 = vmul.f32 %v5343, %v5343
        %v5636 = vmul.f32 %v5348, %v5348
        %v5637 = vmul.f32 %v5351, %v5351
        %v5638 = vmul.f32 %v5356, %v5356
        %v5639 = vmul.f32 %v5359, %v5359
        %v5640 = vmul.f32 %v5364, %v5364
        %v5641 = vmul.f32 %v5367, %v5367
        %v5642 = vmul.f32 %v5372, %v5372
        %v5643 = vmul.f32 %v5375, %v5375
        %v5644 = vmul.f32 %v5380, %v5380
        %v5645 = vmul.f32 %v5383, %v5383
        %v5646 = vmul.f32 %v5388, %v5388
        %v5647 = vmul.f32 %v5391, %v5391
        %v5648 = vmul.f32 %v5396, %v5396
        %v5649 = vmul.f32 %v5399, %v5399
        %v5650 = vmul.f32 %v5404, %v5404
        %v5651 = vmul.f32 %v5407, %v5407
        %v5652 = vmul.f32 %v5412, %v5412
        %v5653 = vmul.f32 %v5415, %v5415
        %v5654 = vmul.f32 %v5420, %v5420
        %v5655 = vmul.f32 %v5423, %v5423
        %v5656 = vadd.f32 %v5624, %v5625
        %v5657 = vadd.f32 %v5656, %v5626
        %v5658 = vadd.f32 %v5657, %v5627
        %v5659 = vadd.f32 %v5658, %v5628
        %v5660 = vadd.f32 %v5659, %v5629
        %v5661 = vadd.f32 %v5660, %v5630
        %v5662 = vadd.f32 %v5661, %v5631
        %v5663 = vadd.f32 %v5662, %v5632
        %v5664 = vadd.f32 %v5663, %v5633
        %v5665 = vadd.f32 %v5664, %v5634
        %v5666 = vadd.f32 %v5665, %v5635
        %v5667 = vadd.f32 %v5666, %v5636
        %v5668 = vadd.f32 %v5667, %v5637
        %v5669 = vadd.f32 %v5668, %v5638
        %v5670 = vadd.f32 %v5669, %v5639
        %v5671 = vadd.f32 %v5670, %v5640
        %v5672 = vadd.f32 %v5671, %v5641
        %v5673 = vadd.f32 %v5672, %v5642
        %v5674 = vadd.f32 %v5673, %v5643
        %v5675 = vadd.f32 %v5674, %v5644
        %v5676 = vadd.f32 %v5675, %v5645
        %v5677 = vadd.f32 %v5676, %v5646
        %v5678 = vadd.f32 %v5677, %v5647
        %v5679 = vadd.f32 %v5678, %v5648
        %v5680 = vadd.f32 %v5679, %v5649
        %v5681 = vadd.f32 %v5680, %v5650
        %v5682 = vadd.f32 %v5681, %v5651
        %v5683 = vadd.f32 %v5682, %v5652
        %v5684 = vadd.f32 %v5683, %v5653
        %v5685 = vadd.f32 %v5684, %v5654
        %v5686 = vadd.f32 %v5685, %v5655
        %v5687 = vrot.slane %v5686, 4
        %v5688 = vadd.f32 %v5686, %v5687
        %v5689 = vrot.slane %v5688, 2
        %v5690 = vadd.f32 %v5688, %v5689
        %v5691 = vrot.slane %v5690, 1
        %v5692 = vadd.f32 %v5690, %v5691
        %5693 = vst [vmem:[%s224] sm:$0x1] %v5692
        %s5694 = sand.u32 %s91, 1
        %s5695 = scalar_lea.sflag [#allocation3], %s5694
        %s5696 = sand.u32 %s91, 1
        %s5697 = smul.addr %s5696, 128
        %s5698 = scalar_lea.vmem [#allocation2], %s5697
        %s5699 = sand.u32 %s22, 1
        %s5700 = scalar_lea.sflag [#allocation5], %s5699
        %s5701 = sand.u32 %s119, 1
        %s5702 = scalar_lea.vmem [#allocation4], %s5701
        %s5703 = sand.u32 %s22, 1
        %s5704 = scalar_lea.sflag [#allocation5], %s5703
        %s5705 = sand.u32 %s147, 1
        %s5706 = scalar_lea.vmem [#allocation6], %s5705
        // Predicated region
        $region29: #{tpu_custom_call.1} parent=27 // pred_check
          %p5707 = pneg %p101
        $region30: #{tpu_custom_call.1} parent=27 // pred_check_branch
          %5709 = sbr.rel (%p5707) target = $region32
        $region31: #{tpu_custom_call.1} parent=27 // pred_region
          %s5710 = smul.u32 16, %s27
          %s5712 = ssub.s32 2048, 2048
          %5713 = vsyncadd %s5695, %s5712
          %s5714 = smul.addr %s5710, 2
          %s5715 = smul.addr %s26, 32
          %s5716 = sadd.s32 %s5714, %s5715
          %s5717 = smul.addr %s5716, 64
          %s5718 = scalar_lea.hbm %s2, %s5717
          %s5719 = sshll.u32 %s5698, 4
          %s5720 = int_to_ptr.vmem [resolvable:$true] %s5719
          %5725 = dma.vmem_to_hbm [thread:$0]  %s5720, 2048, %s5718, %s5695, 64, 64, 4
        $region32: #{tpu_custom_call.1} parent=27 // pred_fallthru
          _
        // Predicated region
        $region33: #{tpu_custom_call.1} parent=27 // pred_check
          %p5726 = pneg %p129
        $region34: #{tpu_custom_call.1} parent=27 // pred_check_branch
          %5728 = sbr.rel (%p5726) target = $region36
        $region35: #{tpu_custom_call.1} parent=27 // pred_region
          %s5730 = ssub.s32 16, 16
          %5731 = vsyncadd %s5700, %s5730
          %s5732 = sadd.s32 %s27, %s26
          %s5733 = smul.addr %s5732, 16
          %s5734 = scalar_lea.hbm %s3, %s5733
          %s5736 = sshll.u32 %s5702, 4
          %s5737 = int_to_ptr.vmem [resolvable:$true] %s5736
          %5739 = dma.vmem_to_hbm [thread:$0]  %s5737, 16, %s5734, %s5700
        $region36: #{tpu_custom_call.1} parent=27 // pred_fallthru
          _
        // Predicated region
        $region37: #{tpu_custom_call.1} parent=27 // pred_check
          %p5740 = pneg %p157
        $region38: #{tpu_custom_call.1} parent=27 // pred_check_branch
          %5742 = sbr.rel (%p5740) target = $region40
        $region39: #{tpu_custom_call.1} parent=27 // pred_region
          %s5744 = ssub.s32 16, 16
          %5745 = vsyncadd %s5704, %s5744
          %s5746 = sadd.s32 %s27, %s26
          %s5747 = smul.addr %s5746, 16
          %s5748 = scalar_lea.hbm %s4, %s5747
          %s5750 = sshll.u32 %s5706, 4
          %s5751 = int_to_ptr.vmem [resolvable:$true] %s5750
          %5753 = dma.vmem_to_hbm [thread:$0]  %s5751, 16, %s5748, %s5704
        $region40: #{tpu_custom_call.1} parent=27 // pred_fallthru
          _
      $region28: #{tpu_custom_call.1} parent=5 // pred_fallthru
        _
      %p5754 = scmp.le.s32.totalorder 2, %s17
      // Predicated region
      $region41: #{tpu_custom_call.1} parent=5 // pred_check
        %p5755 = pneg %p5754
      $region42: #{tpu_custom_call.1} parent=5 // pred_check_branch
        %5757 = sbr.rel (%p5755) target = $region44
      $region43: #{tpu_custom_call.1} parent=5 // pred_region
        %s5758 = ssub.s32 %s17, 2
        // Predicated region
        $region45: #{tpu_custom_call.1} parent=43 // pred_check
          %p5759 = pneg %p107
        $region46: #{tpu_custom_call.1} parent=43 // pred_check_branch
          %5761 = sbr.rel (%p5759) target = $region48
        $region47: #{tpu_custom_call.1} parent=43 // pred_region
          %s5762 = sand.u32 %s92, 1
          %s5763 = scalar_lea.sflag [#allocation3], %s5762
          %s5764 = sand.u32 %s92, 1
          %s5765 = smul.addr %s5764, 128
          %s5766 = scalar_lea.vmem [#allocation2], %s5765
          %5767 = dma.done %s5763, 2048
        $region48: #{tpu_custom_call.1} parent=43 // pred_fallthru
          _
        // Predicated region
        $region49: #{tpu_custom_call.1} parent=43 // pred_check
          %p5768 = pneg %p135
        $region50: #{tpu_custom_call.1} parent=43 // pred_check_branch
          %5770 = sbr.rel (%p5768) target = $region52
        $region51: #{tpu_custom_call.1} parent=43 // pred_region
          %s5771 = sand.u32 %s23, 1
          %s5772 = scalar_lea.sflag [#allocation5], %s5771
          %s5773 = sand.u32 %s120, 1
          %s5774 = scalar_lea.vmem [#allocation4], %s5773
          %5775 = dma.done %s5772, 16
        $region52: #{tpu_custom_call.1} parent=43 // pred_fallthru
          _
        // Predicated region
        $region53: #{tpu_custom_call.1} parent=43 // pred_check
          %p5776 = pneg %p163
        $region54: #{tpu_custom_call.1} parent=43 // pred_check_branch
          %5778 = sbr.rel (%p5776) target = $region56
        $region55: #{tpu_custom_call.1} parent=43 // pred_region
          %s5779 = sand.u32 %s23, 1
          %s5780 = scalar_lea.sflag [#allocation5], %s5779
          %s5781 = sand.u32 %s148, 1
          %s5782 = scalar_lea.vmem [#allocation6], %s5781
          %5783 = dma.done %s5780, 16
        $region56: #{tpu_custom_call.1} parent=43 // pred_fallthru
          _
      $region44: #{tpu_custom_call.1} parent=5 // pred_fallthru
        _
    $region6: #{tpu_custom_call.1} parent=1 // loop_footer
      %s21 = sadd.s32 1, %s17
    $region7: #{tpu_custom_call.1} parent=1 // loop_footer_branch
      %16 = sbr.rel target = $region3
    $region8: #{tpu_custom_call.1} parent=1 // loop_exit
      _
    %5784 = vsyncpa [#allocation3], 1
    %s5785 = scalar_lea.sflag [#allocation3], 1
    %5786 = vsyncpa %s5785, 1
    %5787 = vsyncpa [#allocation5], 1
    %s5788 = scalar_lea.sflag [#allocation5], 1
    %5789 = vsyncpa %s5788, 1

</llo_original>
